<compile_context>
chip_gen: v7x
topology: tpu7x:2x2x1
jax: 0.10.0
libtpu: 0.0.40
codegen_flags: <defaults>
</compile_context>

<pallas_src>
from functools import partial

import jax
import jax.numpy as jnp
from jax.experimental import pallas as pl
from jax.experimental.pallas import tpu as pltpu


def _layernorm(x, w, b, eps=1e-5):  # PyTorch nn.LayerNorm default eps=1e-5
    mu = jnp.mean(x, axis=-1, keepdims=True)
    var = jnp.mean((x - mu) ** 2, axis=-1, keepdims=True)
    return (x - mu) * jax.lax.rsqrt(var + eps) * w + b


def slot_attention_kernel(
    feat_ref, slots_init_ref,
    ln_feat_ref, ln_slots_ref, w_kv_ref, wq_ref,
    w_ih_ref, w_hh_ref, b_gru_ref,
    mlp_w1_ref, mlp_b1_ref, mlp_w2_ref, mlp_b2_ref,
    slots_out_ref, attn_out_ref,
    k_scr, v_scr,
    *, num_iters, epsilon, num_slots, num_tokens, n_pad, s_pad, kv_chunk):
    rows_f, Df = feat_ref.shape          # rows_f = Bt * n_pad
    rows_s, H = slots_init_ref.shape     # rows_s = Bt * s_pad
    Bt = rows_f // n_pad

    # --- hoist all parameter loads out of the iteration loop -----------------
    lf = ln_feat_ref[...]
    ln_f_w, ln_f_b = lf[0:1], lf[1:2]
    ls = ln_slots_ref[...]
    ln_s_w, ln_s_b, ln_m_w, ln_m_b = ls[0:1], ls[1:2], ls[2:3], ls[3:4]
    w_kv = w_kv_ref[...]            # bf16 (Df, 2H), columns [K | V]
    wq = wq_ref[...]                # bf16 (H, H), attention scale folded in
    w_ih = w_ih_ref[...]            # bf16 (H, 3H), columns [r | z | n]
    w_hh = w_hh_ref[...]            # bf16 (H, 3H)
    bg = b_gru_ref[...]
    b_ih, b_hh = bg[0:1], bg[1:2]   # (1, 3H)
    mlp_w1 = mlp_w1_ref[...]        # bf16 (H, M)
    mlp_b1 = mlp_b1_ref[...]
    mlp_w2 = mlp_w2_ref[...]        # bf16 (M, H)
    mlp_b2 = mlp_b2_ref[...]

    # --- validity masks only when padding exists (static skip) ---------------
    pad_tokens = num_tokens != n_pad
    pad_slots = num_slots != s_pad
    if pad_tokens:
        tok_valid = (jax.lax.broadcasted_iota(jnp.int32, (1, 1, n_pad), 2)
                     < num_tokens).astype(jnp.float32)           # (1,1,N_pad)
    if pad_slots:
        slot_bias = jnp.where(
            jax.lax.broadcasted_iota(jnp.int32, (1, s_pad, 1), 1) < num_slots,
            0.0, -1e9).astype(jnp.float32)                       # (1,S_pad,1)

    # --- norm_feature + fused K/V projection, chunked over token rows --------
    # Caps the f32 transient at (kv_chunk, 2H) instead of (Bt*N_pad, 2H).
    for start in range(0, rows_f, kv_chunk):
        rows = min(kv_chunk, rows_f - start)
        chunk = feat_ref[pl.ds(start, rows), :]                  # f32 (rows, Df)
        chunk = _layernorm(chunk, ln_f_w, ln_f_b)
        kv = jnp.dot(chunk.astype(jnp.bfloat16), w_kv,
                     preferred_element_type=jnp.float32)         # (rows, 2H)
        k_scr[pl.ds(start, rows), :] = kv[:, :H].astype(jnp.bfloat16)
        v_scr[pl.ds(start, rows), :] = kv[:, H:].astype(jnp.bfloat16)

    k = k_scr[...].reshape(Bt, n_pad, H)                         # bf16
    v = v_scr[...].reshape(Bt, n_pad, H)                         # bf16

    slots = slots_init_ref[...]                                  # f32 (Bt*S_pad, H)

    attn = None
    for _ in range(num_iters):
        # `slots.detach() + slots_init - slots_init.detach()` is a gradient
        # trick; numerically identity in the forward pass, so omitted.
        slots_prev = slots
        s_n = _layernorm(slots, ln_s_w, ln_s_b)                  # norm_slots
        q = jnp.dot(s_n.astype(jnp.bfloat16), wq,
                    preferred_element_type=jnp.float32)          # (Bt*S_pad, H)
        q = q.reshape(Bt, s_pad, H).astype(jnp.bfloat16)

        # attn_logits[b, i, j] = <q_i, k_j> * scale  (scale folded into wq)
        logits = jnp.einsum('bid,bjd->bij', q, k,
                            preferred_element_type=jnp.float32)
        if pad_slots:
            logits = logits + slot_bias
        # softmax over the slot axis (dim=1)
        logits = logits - jnp.max(logits, axis=1, keepdims=True)
        e = jnp.exp(logits)
        attn = e / jnp.sum(e, axis=1, keepdims=True)
        if pad_tokens:
            attn = attn * tok_valid                              # zero pad tokens

        attn_sum = jnp.sum(attn, axis=-1, keepdims=True) + epsilon
        attn_wm = attn / attn_sum
        updates = jnp.einsum('bij,bjd->bid', attn_wm.astype(jnp.bfloat16), v,
                             preferred_element_type=jnp.float32)
        updates = updates.reshape(Bt * s_pad, H)

        # fused nn.GRUCell(updates, slots_prev); gate order [r | z | n]
        gi = jnp.dot(updates.astype(jnp.bfloat16), w_ih,
                     preferred_element_type=jnp.float32) + b_ih
        gh = jnp.dot(slots_prev.astype(jnp.bfloat16), w_hh,
                     preferred_element_type=jnp.float32) + b_hh
        r = jax.nn.sigmoid(gi[:, :H] + gh[:, :H])
        zg = jax.nn.sigmoid(gi[:, H:2 * H] + gh[:, H:2 * H])
        n = jnp.tanh(gi[:, 2 * H:] + r * gh[:, 2 * H:])
        slots = (1.0 - zg) * n + zg * slots_prev

        # residual MLP with pre-layernorm
        m = _layernorm(slots, ln_m_w, ln_m_b)                    # norm_mlp
        h = jnp.maximum(jnp.dot(m.astype(jnp.bfloat16), mlp_w1,
                                preferred_element_type=jnp.float32) + mlp_b1,
                        0.0)
        slots = slots + jnp.dot(h.astype(jnp.bfloat16), mlp_w2,
                                preferred_element_type=jnp.float32) + mlp_b2

    slots_out_ref[...] = slots
    attn_out_ref[...] = attn.reshape(Bt * s_pad, n_pad).astype(jnp.bfloat16)


def slot_attention_pallas(features, slots_init, params, num_iters=3, epsilon=1e-6):
    B, N, Df = features.shape
    _, S, Ds = slots_init.shape
    H = Ds

    # lane-dense padding: tokens to a multiple of 128 (lanes), slots to 8 (sublanes)
    N_pad = ((N + 127) // 128) * 128
    S_pad = ((S + 7) // 8) * 8

    order = ['ln_feat', 'ln_slots', 'w_kv', 'wq', 'w_ih', 'w_hh', 'b_gru',
             'mlp_w1', 'mlp_b1', 'mlp_w2', 'mlp_b2']
    param_list = [params[name] for name in order]
    param_bytes = sum(int(a.size) * a.dtype.itemsize for a in param_list)

    # ---- VMEM-budgeted batch tile -------------------------------------------
    # Per-batch-row VMEM estimate (f32 feat block double-buffered, bf16 k/v
    # scratch, f32 per-iteration attention transients, bf16 attn output
    # double-buffered, plus small slot-sized tensors).
    KV_CHUNK = 512
    per_row = (N_pad * Df * 4 * 2          # feat block (f32, x2 buffers)
               + N_pad * H * 2 * 2         # k + v scratch (bf16)
               + S_pad * N_pad * 4 * 3     # logits / exp / attn transients
               + S_pad * N_pad * 2 * 2     # attn output (bf16, x2 buffers)
               + S_pad * max(H, Df) * 4 * 8)
    VMEM_LIMIT = 48 * 1024 * 1024          # safe under v7x's 64 MiB physical VMEM
    tile_budget = int(VMEM_LIMIT * 0.75) - 2 * param_bytes \
        - KV_CHUNK * (2 * H + Df) * 4
    bt_budget = max(1, tile_budget // max(per_row, 1))
    bt_mxu = -(-128 // S_pad)              # Bt*S_pad >= 128 fills one MXU height
    bt_half = max(1, -(-B // 2))           # keep >= 2 grid steps when B >= 2
    bt_quarter = max(1, -(-B // 4))        # prefer >= 4 steps for per-TC overlap
    Bt = max(1, min(B, bt_budget, bt_half, max(bt_mxu, bt_quarter)))
    grid_b = -(-B // Bt)
    Bt = -(-B // grid_b)                   # rebalance so batch padding is minimal
    B_pad = Bt * grid_b

    kv_chunk = min(KV_CHUNK, Bt * N_pad)

    # ---- single-pad wrapper (skipped when shapes already aligned) -----------
    feat = features.astype(jnp.float32)    # keep f32: LayerNorm input not rounded
    if B_pad != B or N_pad != N:
        feat = jnp.pad(feat, ((0, B_pad - B), (0, N_pad - N), (0, 0)))
    feat = feat.reshape(B_pad * N_pad, Df)

    slots0 = slots_init.astype(jnp.float32)
    if B_pad != B or S_pad != S:
        slots0 = jnp.pad(slots0, ((0, B_pad - B), (0, S_pad - S), (0, 0)))
    slots0 = slots0.reshape(B_pad * S_pad, Ds)

    in_specs = [pl.BlockSpec((Bt * N_pad, Df), lambda b: (b, 0)),
                pl.BlockSpec((Bt * S_pad, Ds), lambda b: (b, 0))]
    for arr in param_list:
        # full-array resident blocks, constant index map (no re-DMA per step)
        in_specs.append(pl.BlockSpec(arr.shape, lambda b, nd=arr.ndim: (0,) * nd))

    out_specs = (pl.BlockSpec((Bt * S_pad, Ds), lambda b: (b, 0)),
                 pl.BlockSpec((Bt * S_pad, N_pad), lambda b: (b, 0)))
    out_shape = (jax.ShapeDtypeStruct((B_pad * S_pad, Ds), jnp.float32),
                 jax.ShapeDtypeStruct((B_pad * S_pad, N_pad), jnp.bfloat16))

    scratch_shapes = [pltpu.VMEM((Bt * N_pad, H), jnp.bfloat16),   # k
                      pltpu.VMEM((Bt * N_pad, H), jnp.bfloat16)]   # v

    kern = partial(slot_attention_kernel, num_iters=num_iters, epsilon=epsilon,
                   num_slots=S, num_tokens=N, n_pad=N_pad, s_pad=S_pad,
                   kv_chunk=kv_chunk)
    slots_out, attn_out = pl.pallas_call(
        kern,
        grid=(grid_b,),
        in_specs=in_specs,
        out_specs=out_specs,
        out_shape=out_shape,
        scratch_shapes=scratch_shapes,
        compiler_params=pltpu.CompilerParams(
            dimension_semantics=("parallel",),
            vmem_limit_bytes=VMEM_LIMIT),
    )(feat, slots0, *param_list)

    slots_out = slots_out.reshape(B_pad, S_pad, Ds)[:B, :S, :]
    attn_out = attn_out.reshape(B_pad, S_pad, N_pad)[:B, :S, :N]
    return slots_out, attn_out.astype(jnp.float32)


def init_params(key, feat_size, slot_size, mlp_size, num_slots):
    """Deterministic parameter init mirroring the module's __init__ shapes.

    Linear weights are stored transposed (in, out) so the kernel computes x @ W;
    K|V and GRU gate weights are packed, and the attention scale is folded into
    the Q projection.
    """
    keys = jax.random.split(key, 8)

    def xavier_t(k, fan_out, fan_in, gain=1.0):
        a = gain * (6.0 / (fan_in + fan_out)) ** 0.5
        w = jax.random.uniform(k, (fan_out, fan_in), jnp.float32, -a, a)
        return w.T

    H = slot_size
    p = {}
    # LayerNorm affine params (identity init), packed: rows [w, b] / [s_w,s_b,m_w,m_b]
    p['ln_feat'] = jnp.stack([jnp.ones((feat_size,), jnp.float32),
                              jnp.zeros((feat_size,), jnp.float32)])
    p['ln_slots'] = jnp.stack([jnp.ones((H,), jnp.float32),
                               jnp.zeros((H,), jnp.float32),
                               jnp.ones((H,), jnp.float32),
                               jnp.zeros((H,), jnp.float32)])
    # projections (bias=False); K and V fused along columns
    wk = xavier_t(keys[0], H, feat_size)
    wv = xavier_t(keys[1], H, feat_size)
    p['w_kv'] = jnp.concatenate([wk, wv], axis=1).astype(jnp.bfloat16)
    # fold the attention scale D**-0.5 into the Q projection
    p['wq'] = (xavier_t(keys[2], H, H) * (H ** -0.5)).astype(jnp.bfloat16)
    # slot init embedding, xavier_uniform
    a = (6.0 / (num_slots + H)) ** 0.5
    p['slots_mu'] = jax.random.uniform(keys[3], (num_slots, H), jnp.float32, -a, a)
    # GRUCell: weight_ih xavier_uniform (3H,H), weight_hh orthogonal (3H,H), zero biases
    a = (6.0 / (3 * H + H)) ** 0.5
    w_ih = jax.random.uniform(keys[4], (3 * H, H), jnp.float32, -a, a)
    w_hh = jax.nn.initializers.orthogonal()(keys[5], (3 * H, H), jnp.float32)
    p['w_ih'] = w_ih.T.astype(jnp.bfloat16)      # (H, 3H), columns [r | z | n]
    p['w_hh'] = w_hh.T.astype(jnp.bfloat16)
    p['b_gru'] = jnp.zeros((2, 3 * H), jnp.float32)   # rows [b_ih, b_hh]
    # MLP: kaiming_uniform(relu) for first layer, xavier for second, zero biases
    bound = (2.0 ** 0.5) * (3.0 / H) ** 0.5
    w1 = jax.random.uniform(keys[6], (mlp_size, H), jnp.float32, -bound, bound)
    p['mlp_w1'] = w1.T.astype(jnp.bfloat16)
    p['mlp_b1'] = jnp.zeros((1, mlp_size), jnp.float32)
    p['mlp_w2'] = xavier_t(keys[7], H, mlp_size).astype(jnp.bfloat16)
    p['mlp_b2'] = jnp.zeros((1, H), jnp.float32)
    return p


if __name__ == "__main__":
    # Small shapes consistent with the module (scaled-down hid_dim/slot_dim):
    B, N = 2, 16                  # batch, number of encoder tokens
    feat_size = 32                # stands in for hid_dim=192
    slot_size = 32                # stands in for slot_dim=128
    mlp_size = 4 * slot_size      # slot_dim * 4
    num_slots = 11                # SlotAttention default used by the autoencoder

    key = jax.random.PRNGKey(0)
    k_feat, k_param, k_noise = jax.random.split(key, 3)

    # features = encoder(image); encoder itself is not translatable (see TODO above).
    features = jax.random.normal(k_feat, (B, N, feat_size), jnp.float32)
    params = init_params(k_param, feat_size, slot_size, mlp_size, num_slots)

    # slots_init = mu + z * sigma * mu   (forward default sigma=0)
    sigma = 0.0
    mu = jnp.broadcast_to(params['slots_mu'][None], (B, num_slots, slot_size))
    z = jax.random.normal(k_noise, mu.shape, jnp.float32)
    slots_init = mu + z * sigma * mu

    slots, attn = slot_attention_pallas(features, slots_init, params,
                                        num_iters=3, epsilon=1e-6)
    jax.block_until_ready((slots, attn))

    assert slots.shape == (B, num_slots, slot_size)
    assert attn.shape == (B, num_slots, N)
    assert bool(jnp.all(jnp.isfinite(slots))) and bool(jnp.all(jnp.isfinite(attn)))
    print("KERNEL_OK")
</pallas_src>

<mosaic_0001>
module attributes {stable_mosaic.version = 11 : i64} {
  func.func @slot_attention_kernel(%arg0: i32, %arg1: memref<128x32xf32, #tpu.memory_space<vmem>>, %arg2: memref<16x32xf32, #tpu.memory_space<vmem>>, %arg3: memref<2x32xf32, #tpu.memory_space<vmem>>, %arg4: memref<4x32xf32, #tpu.memory_space<vmem>>, %arg5: memref<32x64xbf16, #tpu.memory_space<vmem>>, %arg6: memref<32x32xbf16, #tpu.memory_space<vmem>>, %arg7: memref<32x96xbf16, #tpu.memory_space<vmem>>, %arg8: memref<32x96xbf16, #tpu.memory_space<vmem>>, %arg9: memref<2x96xf32, #tpu.memory_space<vmem>>, %arg10: memref<32x128xbf16, #tpu.memory_space<vmem>>, %arg11: memref<1x128xf32, #tpu.memory_space<vmem>>, %arg12: memref<128x32xbf16, #tpu.memory_space<vmem>>, %arg13: memref<1x32xf32, #tpu.memory_space<vmem>>, %arg14: memref<16x32xf32, #tpu.memory_space<vmem>>, %arg15: memref<16x128xbf16, #tpu.memory_space<vmem>>, %arg16: memref<128x32xbf16, #tpu.memory_space<vmem>>, %arg17: memref<128x32xbf16, #tpu.memory_space<vmem>>) attributes {dimension_semantics = [#tpu.dimension_semantics<parallel>], iteration_bounds = array<i64: 2>, scalar_prefetch = 0 : i64, scratch_operands = 2 : i64, tpu.core_type = #tpu.core_type<tc>, window_params = [{transform_indices = @transform_0, window_bounds = array<i64: 128, 32>}, {transform_indices = @transform_1, window_bounds = array<i64: 16, 32>}, {pipeline_mode = #tpu.pipeline_mode<synchronous>, transform_indices = @transform_2, window_bounds = array<i64: 2, 32>}, {pipeline_mode = #tpu.pipeline_mode<synchronous>, transform_indices = @transform_3, window_bounds = array<i64: 4, 32>}, {pipeline_mode = #tpu.pipeline_mode<synchronous>, transform_indices = @transform_4, window_bounds = array<i64: 32, 64>}, {pipeline_mode = #tpu.pipeline_mode<synchronous>, transform_indices = @transform_5, window_bounds = array<i64: 32, 32>}, {pipeline_mode = #tpu.pipeline_mode<synchronous>, transform_indices = @transform_6, window_bounds = array<i64: 32, 96>}, {pipeline_mode = #tpu.pipeline_mode<synchronous>, transform_indices = @transform_7, window_bounds = array<i64: 32, 96>}, {pipeline_mode = #tpu.pipeline_mode<synchronous>, transform_indices = @transform_8, window_bounds = array<i64: 2, 96>}, {pipeline_mode = #tpu.pipeline_mode<synchronous>, transform_indices = @transform_9, window_bounds = array<i64: 32, 128>}, {pipeline_mode = #tpu.pipeline_mode<synchronous>, transform_indices = @transform_10, window_bounds = array<i64: 1, 128>}, {pipeline_mode = #tpu.pipeline_mode<synchronous>, transform_indices = @transform_11, window_bounds = array<i64: 128, 32>}, {pipeline_mode = #tpu.pipeline_mode<synchronous>, transform_indices = @transform_12, window_bounds = array<i64: 1, 32>}, {transform_indices = @transform_13, window_bounds = array<i64: 16, 32>}, {transform_indices = @transform_14, window_bounds = array<i64: 16, 128>}]} {
    %c0 = arith.constant 0 : index
    %c0_0 = arith.constant 0 : index
    %0 = vector.load %arg3[%c0, %c0_0] : memref<2x32xf32, #tpu.memory_space<vmem>>, vector<2x32xf32>
    %1 = vector.extract_strided_slice %0 {offsets = [0, 0], sizes = [1, 32], strides = [1, 1]} : vector<2x32xf32> to vector<1x32xf32>
    %2 = vector.extract_strided_slice %0 {offsets = [1, 0], sizes = [1, 32], strides = [1, 1]} : vector<2x32xf32> to vector<1x32xf32>
    %c0_1 = arith.constant 0 : index
    %c0_2 = arith.constant 0 : index
    %3 = vector.load %arg4[%c0_1, %c0_2] : memref<4x32xf32, #tpu.memory_space<vmem>>, vector<4x32xf32>
    %4 = vector.extract_strided_slice %3 {offsets = [0, 0], sizes = [1, 32], strides = [1, 1]} : vector<4x32xf32> to vector<1x32xf32>
    %5 = vector.extract_strided_slice %3 {offsets = [1, 0], sizes = [1, 32], strides = [1, 1]} : vector<4x32xf32> to vector<1x32xf32>
    %6 = vector.extract_strided_slice %3 {offsets = [2, 0], sizes = [1, 32], strides = [1, 1]} : vector<4x32xf32> to vector<1x32xf32>
    %7 = vector.extract_strided_slice %3 {offsets = [3, 0], sizes = [1, 32], strides = [1, 1]} : vector<4x32xf32> to vector<1x32xf32>
    %c0_3 = arith.constant 0 : index
    %c0_4 = arith.constant 0 : index
    %8 = vector.load %arg5[%c0_3, %c0_4] : memref<32x64xbf16, #tpu.memory_space<vmem>>, vector<32x64xbf16>
    %c0_5 = arith.constant 0 : index
    %c0_6 = arith.constant 0 : index
    %9 = vector.load %arg6[%c0_5, %c0_6] : memref<32x32xbf16, #tpu.memory_space<vmem>>, vector<32x32xbf16>
    %c0_7 = arith.constant 0 : index
    %c0_8 = arith.constant 0 : index
    %10 = vector.load %arg7[%c0_7, %c0_8] : memref<32x96xbf16, #tpu.memory_space<vmem>>, vector<32x96xbf16>
    %c0_9 = arith.constant 0 : index
    %c0_10 = arith.constant 0 : index
    %11 = vector.load %arg8[%c0_9, %c0_10] : memref<32x96xbf16, #tpu.memory_space<vmem>>, vector<32x96xbf16>
    %c0_11 = arith.constant 0 : index
    %c0_12 = arith.constant 0 : index
    %12 = vector.load %arg9[%c0_11, %c0_12] : memref<2x96xf32, #tpu.memory_space<vmem>>, vector<2x96xf32>
    %13 = vector.extract_strided_slice %12 {offsets = [0, 0], sizes = [1, 96], strides = [1, 1]} : vector<2x96xf32> to vector<1x96xf32>
    %14 = vector.extract_strided_slice %12 {offsets = [1, 0], sizes = [1, 96], strides = [1, 1]} : vector<2x96xf32> to vector<1x96xf32>
    %c0_13 = arith.constant 0 : index
    %c0_14 = arith.constant 0 : index
    %15 = vector.load %arg10[%c0_13, %c0_14] : memref<32x128xbf16, #tpu.memory_space<vmem>>, vector<32x128xbf16>
    %c0_15 = arith.constant 0 : index
    %c0_16 = arith.constant 0 : index
    %16 = vector.load %arg11[%c0_15, %c0_16] : memref<1x128xf32, #tpu.memory_space<vmem>>, vector<1x128xf32>
    %c0_17 = arith.constant 0 : index
    %c0_18 = arith.constant 0 : index
    %17 = vector.load %arg12[%c0_17, %c0_18] : memref<128x32xbf16, #tpu.memory_space<vmem>>, vector<128x32xbf16>
    %c0_19 = arith.constant 0 : index
    %c0_20 = arith.constant 0 : index
    %18 = vector.load %arg13[%c0_19, %c0_20] : memref<1x32xf32, #tpu.memory_space<vmem>>, vector<1x32xf32>
    %19 = tpu.iota {dimensions = array<i32: 2>} : vector<1x1x128xi32>
    %c16_i32 = arith.constant 16 : i32
    %20 = vector.broadcast %c16_i32 : i32 to vector<1x1x128xi32>
    %21 = arith.cmpi slt, %19, %20 : vector<1x1x128xi32>
    %22 = arith.extui %21 : vector<1x1x128xi1> to vector<1x1x128xi32>
    %23 = arith.sitofp %22 : vector<1x1x128xi32> to vector<1x1x128xf32>
    %24 = tpu.iota {dimensions = array<i32: 1>} : vector<1x16x1xi32>
    %c11_i32 = arith.constant 11 : i32
    %25 = vector.broadcast %c11_i32 : i32 to vector<1x16x1xi32>
    %26 = arith.cmpi slt, %24, %25 : vector<1x16x1xi32>
    %cst = arith.constant 0.000000e+00 : f32
    %cst_21 = arith.constant -1.000000e+09 : f32
    %27 = vector.broadcast %cst : f32 to vector<1x16x1xf32>
    %28 = vector.broadcast %cst_21 : f32 to vector<1x16x1xf32>
    %29 = arith.select %26, %27, %28 : vector<1x16x1xi1>, vector<1x16x1xf32>
    %c0_22 = arith.constant 0 : index
    %c0_23 = arith.constant 0 : index
    %30 = vector.load %arg1[%c0_22, %c0_23] : memref<128x32xf32, #tpu.memory_space<vmem>>, vector<128x32xf32>
    %cst_24 = arith.constant dense<0.000000e+00> : vector<128xf32>
    %31 = vector.multi_reduction <add>, %30, %cst_24 [1] : vector<128x32xf32> to vector<128xf32>
    %32 = vector.shape_cast %31 : vector<128xf32> to vector<128x1xf32>
    %cst_25 = arith.constant 3.200000e+01 : f32
    %33 = vector.broadcast %cst_25 : f32 to vector<128x1xf32>
    %34 = arith.divf %32, %33 : vector<128x1xf32>
    %35 = vector.broadcast %34 : vector<128x1xf32> to vector<128x32xf32>
    %36 = arith.subf %30, %35 : vector<128x32xf32>
    %37 = arith.mulf %36, %36 : vector<128x32xf32>
    %cst_26 = arith.constant dense<0.000000e+00> : vector<128xf32>
    %38 = vector.multi_reduction <add>, %37, %cst_26 [1] : vector<128x32xf32> to vector<128xf32>
    %39 = vector.shape_cast %38 : vector<128xf32> to vector<128x1xf32>
    %cst_27 = arith.constant 3.200000e+01 : f32
    %40 = vector.broadcast %cst_27 : f32 to vector<128x1xf32>
    %41 = arith.divf %39, %40 : vector<128x1xf32>
    %42 = vector.broadcast %34 : vector<128x1xf32> to vector<128x32xf32>
    %43 = arith.subf %30, %42 : vector<128x32xf32>
    %cst_28 = arith.constant 9.99999974E-6 : f32
    %44 = vector.broadcast %cst_28 : f32 to vector<128x1xf32>
    %45 = arith.addf %41, %44 : vector<128x1xf32>
    %46 = math.rsqrt %45 : vector<128x1xf32>
    %47 = vector.broadcast %46 : vector<128x1xf32> to vector<128x32xf32>
    %48 = arith.mulf %43, %47 : vector<128x32xf32>
    %49 = vector.broadcast %1 : vector<1x32xf32> to vector<128x32xf32>
    %50 = arith.mulf %48, %49 : vector<128x32xf32>
    %51 = vector.broadcast %2 : vector<1x32xf32> to vector<128x32xf32>
    %52 = arith.addf %50, %51 : vector<128x32xf32>
    %53 = arith.truncf %52 : vector<128x32xf32> to vector<128x32xbf16>
    %cst_29 = arith.constant dense<0.000000e+00> : vector<128x64xf32>
    %54 = tpu.matmul %53, %8, %cst_29 {dimension_numbers = #tpu.dot_dimension_numbers<[1], [0], [0], [1], [0, 0, 1, 1], [], []>} : vector<128x32xbf16>, vector<32x64xbf16>, vector<128x64xf32> -> vector<128x64xf32>
    %55 = vector.extract_strided_slice %54 {offsets = [0, 0], sizes = [128, 32], strides = [1, 1]} : vector<128x64xf32> to vector<128x32xf32>
    %56 = arith.truncf %55 : vector<128x32xf32> to vector<128x32xbf16>
    %c0_30 = arith.constant 0 : index
    %c0_31 = arith.constant 0 : index
    %57 = vector.load %arg16[%c0_30, %c0_31] : memref<128x32xbf16, #tpu.memory_space<vmem>>, vector<128x32xbf16>
    tpu.vector_store %arg16[%c0_30, %c0_31], %56 {strides = array<i32>} : memref<128x32xbf16, #tpu.memory_space<vmem>>, vector<128x32xbf16>,
    %58 = vector.extract_strided_slice %54 {offsets = [0, 32], sizes = [128, 32], strides = [1, 1]} : vector<128x64xf32> to vector<128x32xf32>
    %59 = arith.truncf %58 : vector<128x32xf32> to vector<128x32xbf16>
    %c0_32 = arith.constant 0 : index
    %c0_33 = arith.constant 0 : index
    %60 = vector.load %arg17[%c0_32, %c0_33] : memref<128x32xbf16, #tpu.memory_space<vmem>>, vector<128x32xbf16>
    tpu.vector_store %arg17[%c0_32, %c0_33], %59 {strides = array<i32>} : memref<128x32xbf16, #tpu.memory_space<vmem>>, vector<128x32xbf16>,
    %c0_34 = arith.constant 0 : index
    %c0_35 = arith.constant 0 : index
    %61 = vector.load %arg16[%c0_34, %c0_35] : memref<128x32xbf16, #tpu.memory_space<vmem>>, vector<128x32xbf16>
    %62 = vector.shape_cast %61 : vector<128x32xbf16> to vector<1x128x32xbf16>
    %c0_36 = arith.constant 0 : index
    %c0_37 = arith.constant 0 : index
    %63 = vector.load %arg17[%c0_36, %c0_37] : memref<128x32xbf16, #tpu.memory_space<vmem>>, vector<128x32xbf16>
    %64 = vector.shape_cast %63 : vector<128x32xbf16> to vector<1x128x32xbf16>
    %c0_38 = arith.constant 0 : index
    %c0_39 = arith.constant 0 : index
    %65 = vector.load %arg2[%c0_38, %c0_39] : memref<16x32xf32, #tpu.memory_space<vmem>>, vector<16x32xf32>
    %cst_40 = arith.constant dense<0.000000e+00> : vector<16xf32>
    %66 = vector.multi_reduction <add>, %65, %cst_40 [1] : vector<16x32xf32> to vector<16xf32>
    %67 = vector.shape_cast %66 : vector<16xf32> to vector<16x1xf32>
    %cst_41 = arith.constant 3.200000e+01 : f32
    %68 = vector.broadcast %cst_41 : f32 to vector<16x1xf32>
    %69 = arith.divf %67, %68 : vector<16x1xf32>
    %70 = vector.broadcast %69 : vector<16x1xf32> to vector<16x32xf32>
    %71 = arith.subf %65, %70 : vector<16x32xf32>
    %72 = arith.mulf %71, %71 : vector<16x32xf32>
    %cst_42 = arith.constant dense<0.000000e+00> : vector<16xf32>
    %73 = vector.multi_reduction <add>, %72, %cst_42 [1] : vector<16x32xf32> to vector<16xf32>
    %74 = vector.shape_cast %73 : vector<16xf32> to vector<16x1xf32>
    %cst_43 = arith.constant 3.200000e+01 : f32
    %75 = vector.broadcast %cst_43 : f32 to vector<16x1xf32>
    %76 = arith.divf %74, %75 : vector<16x1xf32>
    %77 = vector.broadcast %69 : vector<16x1xf32> to vector<16x32xf32>
    %78 = arith.subf %65, %77 : vector<16x32xf32>
    %cst_44 = arith.constant 9.99999974E-6 : f32
    %79 = vector.broadcast %cst_44 : f32 to vector<16x1xf32>
    %80 = arith.addf %76, %79 : vector<16x1xf32>
    %81 = math.rsqrt %80 : vector<16x1xf32>
    %82 = vector.broadcast %81 : vector<16x1xf32> to vector<16x32xf32>
    %83 = arith.mulf %78, %82 : vector<16x32xf32>
    %84 = vector.broadcast %4 : vector<1x32xf32> to vector<16x32xf32>
    %85 = arith.mulf %83, %84 : vector<16x32xf32>
    %86 = vector.broadcast %5 : vector<1x32xf32> to vector<16x32xf32>
    %87 = arith.addf %85, %86 : vector<16x32xf32>
    %88 = arith.truncf %87 : vector<16x32xf32> to vector<16x32xbf16>
    %cst_45 = arith.constant dense<0.000000e+00> : vector<16x32xf32>
    %89 = tpu.matmul %88, %9, %cst_45 {dimension_numbers = #tpu.dot_dimension_numbers<[1], [0], [0], [1], [0, 0, 1, 1], [], []>} : vector<16x32xbf16>, vector<32x32xbf16>, vector<16x32xf32> -> vector<16x32xf32>
    %90 = vector.shape_cast %89 : vector<16x32xf32> to vector<1x16x32xf32>
    %91 = arith.truncf %90 : vector<1x16x32xf32> to vector<1x16x32xbf16>
    "tpu.trace_start"() <{level = 10 : i32, message = "bid,bjd->bij"}> : () -> ()
    %cst_46 = arith.constant dense<0.000000e+00> : vector<1x16x128xf32>
    %92 = tpu.matmul %91, %62, %cst_46 {dimension_numbers = #tpu.dot_dimension_numbers<[2], [2], [1], [1], [0, 0, 0, 1, 1, 1], [0], [0]>} : vector<1x16x32xbf16>, vector<1x128x32xbf16>, vector<1x16x128xf32> -> vector<1x16x128xf32>
    "tpu.trace_stop"() : () -> ()
    %93 = vector.broadcast %29 : vector<1x16x1xf32> to vector<1x16x128xf32>
    %94 = arith.addf %92, %93 : vector<1x16x128xf32>
    %cst_47 = arith.constant dense<0xFF800000> : vector<1x128xf32>
    %95 = vector.multi_reduction <maximumf>, %94, %cst_47 [1] : vector<1x16x128xf32> to vector<1x128xf32>
    %96 = vector.shape_cast %95 : vector<1x128xf32> to vector<1x1x128xf32>
    %97 = vector.broadcast %96 : vector<1x1x128xf32> to vector<1x16x128xf32>
    %98 = arith.subf %94, %97 : vector<1x16x128xf32>
    %99 = math.exp %98 : vector<1x16x128xf32>
    %cst_48 = arith.constant dense<0.000000e+00> : vector<1x128xf32>
    %100 = vector.multi_reduction <add>, %99, %cst_48 [1] : vector<1x16x128xf32> to vector<1x128xf32>
    %101 = vector.shape_cast %100 : vector<1x128xf32> to vector<1x1x128xf32>
    %102 = vector.broadcast %101 : vector<1x1x128xf32> to vector<1x16x128xf32>
    %103 = arith.divf %99, %102 : vector<1x16x128xf32>
    %104 = vector.broadcast %23 : vector<1x1x128xf32> to vector<1x16x128xf32>
    %105 = arith.mulf %103, %104 : vector<1x16x128xf32>
    %cst_49 = arith.constant dense<0.000000e+00> : vector<1x16xf32>
    %106 = vector.multi_reduction <add>, %105, %cst_49 [2] : vector<1x16x128xf32> to vector<1x16xf32>
    %107 = vector.shape_cast %106 : vector<1x16xf32> to vector<1x16x1xf32>
    %cst_50 = arith.constant 9.99999997E-7 : f32
    %108 = vector.broadcast %cst_50 : f32 to vector<1x16x1xf32>
    %109 = arith.addf %107, %108 : vector<1x16x1xf32>
    %110 = vector.broadcast %109 : vector<1x16x1xf32> to vector<1x16x128xf32>
    %111 = arith.divf %105, %110 : vector<1x16x128xf32>
    %112 = arith.truncf %111 : vector<1x16x128xf32> to vector<1x16x128xbf16>
    "tpu.trace_start"() <{level = 10 : i32, message = "bij,bjd->bid"}> : () -> ()
    %cst_51 = arith.constant dense<0.000000e+00> : vector<1x16x32xf32>
    %113 = tpu.matmul %112, %64, %cst_51 {dimension_numbers = #tpu.dot_dimension_numbers<[2], [1], [1], [2], [0, 0, 0, 1, 1, 2], [0], [0]>} : vector<1x16x128xbf16>, vector<1x128x32xbf16>, vector<1x16x32xf32> -> vector<1x16x32xf32>
    "tpu.trace_stop"() : () -> ()
    %114 = vector.shape_cast %113 : vector<1x16x32xf32> to vector<16x32xf32>
    %115 = arith.truncf %114 : vector<16x32xf32> to vector<16x32xbf16>
    %cst_52 = arith.constant dense<0.000000e+00> : vector<16x96xf32>
    %116 = tpu.matmul %115, %10, %cst_52 {dimension_numbers = #tpu.dot_dimension_numbers<[1], [0], [0], [1], [0, 0, 1, 1], [], []>} : vector<16x32xbf16>, vector<32x96xbf16>, vector<16x96xf32> -> vector<16x96xf32>
    %117 = vector.broadcast %13 : vector<1x96xf32> to vector<16x96xf32>
    %118 = arith.addf %116, %117 : vector<16x96xf32>
    %119 = arith.truncf %65 : vector<16x32xf32> to vector<16x32xbf16>
    %cst_53 = arith.constant dense<0.000000e+00> : vector<16x96xf32>
    %120 = tpu.matmul %119, %11, %cst_53 {dimension_numbers = #tpu.dot_dimension_numbers<[1], [0], [0], [1], [0, 0, 1, 1], [], []>} : vector<16x32xbf16>, vector<32x96xbf16>, vector<16x96xf32> -> vector<16x96xf32>
    %121 = vector.broadcast %14 : vector<1x96xf32> to vector<16x96xf32>
    %122 = arith.addf %120, %121 : vector<16x96xf32>
    %123 = vector.extract_strided_slice %118 {offsets = [0, 0], sizes = [16, 32], strides = [1, 1]} : vector<16x96xf32> to vector<16x32xf32>
    %124 = vector.extract_strided_slice %122 {offsets = [0, 0], sizes = [16, 32], strides = [1, 1]} : vector<16x96xf32> to vector<16x32xf32>
    %125 = arith.addf %123, %124 : vector<16x32xf32>
    %126 = arith.negf %125 : vector<16x32xf32>
    %127 = math.exp %126 : vector<16x32xf32>
    %cst_54 = arith.constant 1.000000e+00 : f32
    %128 = vector.broadcast %cst_54 : f32 to vector<16x32xf32>
    %129 = arith.addf %128, %127 : vector<16x32xf32>
    %130 = arith.divf %128, %129 : vector<16x32xf32>
    %131 = vector.extract_strided_slice %118 {offsets = [0, 32], sizes = [16, 32], strides = [1, 1]} : vector<16x96xf32> to vector<16x32xf32>
    %132 = vector.extract_strided_slice %122 {offsets = [0, 32], sizes = [16, 32], strides = [1, 1]} : vector<16x96xf32> to vector<16x32xf32>
    %133 = arith.addf %131, %132 : vector<16x32xf32>
    %134 = arith.negf %133 : vector<16x32xf32>
    %135 = math.exp %134 : vector<16x32xf32>
    %cst_55 = arith.constant 1.000000e+00 : f32
    %136 = vector.broadcast %cst_55 : f32 to vector<16x32xf32>
    %137 = arith.addf %136, %135 : vector<16x32xf32>
    %138 = arith.divf %136, %137 : vector<16x32xf32>
    %139 = vector.extract_strided_slice %118 {offsets = [0, 64], sizes = [16, 32], strides = [1, 1]} : vector<16x96xf32> to vector<16x32xf32>
    %140 = vector.extract_strided_slice %122 {offsets = [0, 64], sizes = [16, 32], strides = [1, 1]} : vector<16x96xf32> to vector<16x32xf32>
    %141 = arith.mulf %130, %140 : vector<16x32xf32>
    %142 = arith.addf %139, %141 : vector<16x32xf32>
    %143 = math.tanh %142 : vector<16x32xf32>
    %cst_56 = arith.constant 1.000000e+00 : f32
    %144 = vector.broadcast %cst_56 : f32 to vector<16x32xf32>
    %145 = arith.subf %144, %138 : vector<16x32xf32>
    %146 = arith.mulf %145, %143 : vector<16x32xf32>
    %147 = arith.mulf %138, %65 : vector<16x32xf32>
    %148 = arith.addf %146, %147 : vector<16x32xf32>
    %cst_57 = arith.constant dense<0.000000e+00> : vector<16xf32>
    %149 = vector.multi_reduction <add>, %148, %cst_57 [1] : vector<16x32xf32> to vector<16xf32>
    %150 = vector.shape_cast %149 : vector<16xf32> to vector<16x1xf32>
    %cst_58 = arith.constant 3.200000e+01 : f32
    %151 = vector.broadcast %cst_58 : f32 to vector<16x1xf32>
    %152 = arith.divf %150, %151 : vector<16x1xf32>
    %153 = vector.broadcast %152 : vector<16x1xf32> to vector<16x32xf32>
    %154 = arith.subf %148, %153 : vector<16x32xf32>
    %155 = arith.mulf %154, %154 : vector<16x32xf32>
    %cst_59 = arith.constant dense<0.000000e+00> : vector<16xf32>
    %156 = vector.multi_reduction <add>, %155, %cst_59 [1] : vector<16x32xf32> to vector<16xf32>
    %157 = vector.shape_cast %156 : vector<16xf32> to vector<16x1xf32>
    %cst_60 = arith.constant 3.200000e+01 : f32
    %158 = vector.broadcast %cst_60 : f32 to vector<16x1xf32>
    %159 = arith.divf %157, %158 : vector<16x1xf32>
    %160 = vector.broadcast %152 : vector<16x1xf32> to vector<16x32xf32>
    %161 = arith.subf %148, %160 : vector<16x32xf32>
    %cst_61 = arith.constant 9.99999974E-6 : f32
    %162 = vector.broadcast %cst_61 : f32 to vector<16x1xf32>
    %163 = arith.addf %159, %162 : vector<16x1xf32>
    %164 = math.rsqrt %163 : vector<16x1xf32>
    %165 = vector.broadcast %164 : vector<16x1xf32> to vector<16x32xf32>
    %166 = arith.mulf %161, %165 : vector<16x32xf32>
    %167 = vector.broadcast %6 : vector<1x32xf32> to vector<16x32xf32>
    %168 = arith.mulf %166, %167 : vector<16x32xf32>
    %169 = vector.broadcast %7 : vector<1x32xf32> to vector<16x32xf32>
    %170 = arith.addf %168, %169 : vector<16x32xf32>
    %171 = arith.truncf %170 : vector<16x32xf32> to vector<16x32xbf16>
    %cst_62 = arith.constant dense<0.000000e+00> : vector<16x128xf32>
    %172 = tpu.matmul %171, %15, %cst_62 {dimension_numbers = #tpu.dot_dimension_numbers<[1], [0], [0], [1], [0, 0, 1, 1], [], []>} : vector<16x32xbf16>, vector<32x128xbf16>, vector<16x128xf32> -> vector<16x128xf32>
    %173 = vector.broadcast %16 : vector<1x128xf32> to vector<16x128xf32>
    %174 = arith.addf %172, %173 : vector<16x128xf32>
    %cst_63 = arith.constant 0.000000e+00 : f32
    %175 = vector.broadcast %cst_63 : f32 to vector<16x128xf32>
    %176 = arith.maximumf %174, %175 : vector<16x128xf32>
    %177 = arith.truncf %176 : vector<16x128xf32> to vector<16x128xbf16>
    %cst_64 = arith.constant dense<0.000000e+00> : vector<16x32xf32>
    %178 = tpu.matmul %177, %17, %cst_64 {dimension_numbers = #tpu.dot_dimension_numbers<[1], [0], [0], [1], [0, 0, 1, 1], [], []>} : vector<16x128xbf16>, vector<128x32xbf16>, vector<16x32xf32> -> vector<16x32xf32>
    %179 = arith.addf %148, %178 : vector<16x32xf32>
    %180 = vector.broadcast %18 : vector<1x32xf32> to vector<16x32xf32>
    %181 = arith.addf %179, %180 : vector<16x32xf32>
    %cst_65 = arith.constant dense<0.000000e+00> : vector<16xf32>
    %182 = vector.multi_reduction <add>, %181, %cst_65 [1] : vector<16x32xf32> to vector<16xf32>
    %183 = vector.shape_cast %182 : vector<16xf32> to vector<16x1xf32>
    %cst_66 = arith.constant 3.200000e+01 : f32
    %184 = vector.broadcast %cst_66 : f32 to vector<16x1xf32>
    %185 = arith.divf %183, %184 : vector<16x1xf32>
    %186 = vector.broadcast %185 : vector<16x1xf32> to vector<16x32xf32>
    %187 = arith.subf %181, %186 : vector<16x32xf32>
    %188 = arith.mulf %187, %187 : vector<16x32xf32>
    %cst_67 = arith.constant dense<0.000000e+00> : vector<16xf32>
    %189 = vector.multi_reduction <add>, %188, %cst_67 [1] : vector<16x32xf32> to vector<16xf32>
    %190 = vector.shape_cast %189 : vector<16xf32> to vector<16x1xf32>
    %cst_68 = arith.constant 3.200000e+01 : f32
    %191 = vector.broadcast %cst_68 : f32 to vector<16x1xf32>
    %192 = arith.divf %190, %191 : vector<16x1xf32>
    %193 = vector.broadcast %185 : vector<16x1xf32> to vector<16x32xf32>
    %194 = arith.subf %181, %193 : vector<16x32xf32>
    %cst_69 = arith.constant 9.99999974E-6 : f32
    %195 = vector.broadcast %cst_69 : f32 to vector<16x1xf32>
    %196 = arith.addf %192, %195 : vector<16x1xf32>
    %197 = math.rsqrt %196 : vector<16x1xf32>
    %198 = vector.broadcast %197 : vector<16x1xf32> to vector<16x32xf32>
    %199 = arith.mulf %194, %198 : vector<16x32xf32>
    %200 = vector.broadcast %4 : vector<1x32xf32> to vector<16x32xf32>
    %201 = arith.mulf %199, %200 : vector<16x32xf32>
    %202 = vector.broadcast %5 : vector<1x32xf32> to vector<16x32xf32>
    %203 = arith.addf %201, %202 : vector<16x32xf32>
    %204 = arith.truncf %203 : vector<16x32xf32> to vector<16x32xbf16>
    %cst_70 = arith.constant dense<0.000000e+00> : vector<16x32xf32>
    %205 = tpu.matmul %204, %9, %cst_70 {dimension_numbers = #tpu.dot_dimension_numbers<[1], [0], [0], [1], [0, 0, 1, 1], [], []>} : vector<16x32xbf16>, vector<32x32xbf16>, vector<16x32xf32> -> vector<16x32xf32>
    %206 = vector.shape_cast %205 : vector<16x32xf32> to vector<1x16x32xf32>
    %207 = arith.truncf %206 : vector<1x16x32xf32> to vector<1x16x32xbf16>
    "tpu.trace_start"() <{level = 10 : i32, message = "bid,bjd->bij"}> : () -> ()
    %cst_71 = arith.constant dense<0.000000e+00> : vector<1x16x128xf32>
    %208 = tpu.matmul %207, %62, %cst_71 {dimension_numbers = #tpu.dot_dimension_numbers<[2], [2], [1], [1], [0, 0, 0, 1, 1, 1], [0], [0]>} : vector<1x16x32xbf16>, vector<1x128x32xbf16>, vector<1x16x128xf32> -> vector<1x16x128xf32>
    "tpu.trace_stop"() : () -> ()
    %209 = vector.broadcast %29 : vector<1x16x1xf32> to vector<1x16x128xf32>
    %210 = arith.addf %208, %209 : vector<1x16x128xf32>
    %cst_72 = arith.constant dense<0xFF800000> : vector<1x128xf32>
    %211 = vector.multi_reduction <maximumf>, %210, %cst_72 [1] : vector<1x16x128xf32> to vector<1x128xf32>
    %212 = vector.shape_cast %211 : vector<1x128xf32> to vector<1x1x128xf32>
    %213 = vector.broadcast %212 : vector<1x1x128xf32> to vector<1x16x128xf32>
    %214 = arith.subf %210, %213 : vector<1x16x128xf32>
    %215 = math.exp %214 : vector<1x16x128xf32>
    %cst_73 = arith.constant dense<0.000000e+00> : vector<1x128xf32>
    %216 = vector.multi_reduction <add>, %215, %cst_73 [1] : vector<1x16x128xf32> to vector<1x128xf32>
    %217 = vector.shape_cast %216 : vector<1x128xf32> to vector<1x1x128xf32>
    %218 = vector.broadcast %217 : vector<1x1x128xf32> to vector<1x16x128xf32>
    %219 = arith.divf %215, %218 : vector<1x16x128xf32>
    %220 = vector.broadcast %23 : vector<1x1x128xf32> to vector<1x16x128xf32>
    %221 = arith.mulf %219, %220 : vector<1x16x128xf32>
    %cst_74 = arith.constant dense<0.000000e+00> : vector<1x16xf32>
    %222 = vector.multi_reduction <add>, %221, %cst_74 [2] : vector<1x16x128xf32> to vector<1x16xf32>
    %223 = vector.shape_cast %222 : vector<1x16xf32> to vector<1x16x1xf32>
    %cst_75 = arith.constant 9.99999997E-7 : f32
    %224 = vector.broadcast %cst_75 : f32 to vector<1x16x1xf32>
    %225 = arith.addf %223, %224 : vector<1x16x1xf32>
    %226 = vector.broadcast %225 : vector<1x16x1xf32> to vector<1x16x128xf32>
    %227 = arith.divf %221, %226 : vector<1x16x128xf32>
    %228 = arith.truncf %227 : vector<1x16x128xf32> to vector<1x16x128xbf16>
    "tpu.trace_start"() <{level = 10 : i32, message = "bij,bjd->bid"}> : () -> ()
    %cst_76 = arith.constant dense<0.000000e+00> : vector<1x16x32xf32>
    %229 = tpu.matmul %228, %64, %cst_76 {dimension_numbers = #tpu.dot_dimension_numbers<[2], [1], [1], [2], [0, 0, 0, 1, 1, 2], [0], [0]>} : vector<1x16x128xbf16>, vector<1x128x32xbf16>, vector<1x16x32xf32> -> vector<1x16x32xf32>
    "tpu.trace_stop"() : () -> ()
    %230 = vector.shape_cast %229 : vector<1x16x32xf32> to vector<16x32xf32>
    %231 = arith.truncf %230 : vector<16x32xf32> to vector<16x32xbf16>
    %cst_77 = arith.constant dense<0.000000e+00> : vector<16x96xf32>
    %232 = tpu.matmul %231, %10, %cst_77 {dimension_numbers = #tpu.dot_dimension_numbers<[1], [0], [0], [1], [0, 0, 1, 1], [], []>} : vector<16x32xbf16>, vector<32x96xbf16>, vector<16x96xf32> -> vector<16x96xf32>
    %233 = vector.broadcast %13 : vector<1x96xf32> to vector<16x96xf32>
    %234 = arith.addf %232, %233 : vector<16x96xf32>
    %235 = arith.truncf %181 : vector<16x32xf32> to vector<16x32xbf16>
    %cst_78 = arith.constant dense<0.000000e+00> : vector<16x96xf32>
    %236 = tpu.matmul %235, %11, %cst_78 {dimension_numbers = #tpu.dot_dimension_numbers<[1], [0], [0], [1], [0, 0, 1, 1], [], []>} : vector<16x32xbf16>, vector<32x96xbf16>, vector<16x96xf32> -> vector<16x96xf32>
    %237 = vector.broadcast %14 : vector<1x96xf32> to vector<16x96xf32>
    %238 = arith.addf %236, %237 : vector<16x96xf32>
    %239 = vector.extract_strided_slice %234 {offsets = [0, 0], sizes = [16, 32], strides = [1, 1]} : vector<16x96xf32> to vector<16x32xf32>
    %240 = vector.extract_strided_slice %238 {offsets = [0, 0], sizes = [16, 32], strides = [1, 1]} : vector<16x96xf32> to vector<16x32xf32>
    %241 = arith.addf %239, %240 : vector<16x32xf32>
    %242 = arith.negf %241 : vector<16x32xf32>
    %243 = math.exp %242 : vector<16x32xf32>
    %cst_79 = arith.constant 1.000000e+00 : f32
    %244 = vector.broadcast %cst_79 : f32 to vector<16x32xf32>
    %245 = arith.addf %244, %243 : vector<16x32xf32>
    %246 = arith.divf %244, %245 : vector<16x32xf32>
    %247 = vector.extract_strided_slice %234 {offsets = [0, 32], sizes = [16, 32], strides = [1, 1]} : vector<16x96xf32> to vector<16x32xf32>
    %248 = vector.extract_strided_slice %238 {offsets = [0, 32], sizes = [16, 32], strides = [1, 1]} : vector<16x96xf32> to vector<16x32xf32>
    %249 = arith.addf %247, %248 : vector<16x32xf32>
    %250 = arith.negf %249 : vector<16x32xf32>
    %251 = math.exp %250 : vector<16x32xf32>
    %cst_80 = arith.constant 1.000000e+00 : f32
    %252 = vector.broadcast %cst_80 : f32 to vector<16x32xf32>
    %253 = arith.addf %252, %251 : vector<16x32xf32>
    %254 = arith.divf %252, %253 : vector<16x32xf32>
    %255 = vector.extract_strided_slice %234 {offsets = [0, 64], sizes = [16, 32], strides = [1, 1]} : vector<16x96xf32> to vector<16x32xf32>
    %256 = vector.extract_strided_slice %238 {offsets = [0, 64], sizes = [16, 32], strides = [1, 1]} : vector<16x96xf32> to vector<16x32xf32>
    %257 = arith.mulf %246, %256 : vector<16x32xf32>
    %258 = arith.addf %255, %257 : vector<16x32xf32>
    %259 = math.tanh %258 : vector<16x32xf32>
    %cst_81 = arith.constant 1.000000e+00 : f32
    %260 = vector.broadcast %cst_81 : f32 to vector<16x32xf32>
    %261 = arith.subf %260, %254 : vector<16x32xf32>
    %262 = arith.mulf %261, %259 : vector<16x32xf32>
    %263 = arith.mulf %254, %181 : vector<16x32xf32>
    %264 = arith.addf %262, %263 : vector<16x32xf32>
    %cst_82 = arith.constant dense<0.000000e+00> : vector<16xf32>
    %265 = vector.multi_reduction <add>, %264, %cst_82 [1] : vector<16x32xf32> to vector<16xf32>
    %266 = vector.shape_cast %265 : vector<16xf32> to vector<16x1xf32>
    %cst_83 = arith.constant 3.200000e+01 : f32
    %267 = vector.broadcast %cst_83 : f32 to vector<16x1xf32>
    %268 = arith.divf %266, %267 : vector<16x1xf32>
    %269 = vector.broadcast %268 : vector<16x1xf32> to vector<16x32xf32>
    %270 = arith.subf %264, %269 : vector<16x32xf32>
    %271 = arith.mulf %270, %270 : vector<16x32xf32>
    %cst_84 = arith.constant dense<0.000000e+00> : vector<16xf32>
    %272 = vector.multi_reduction <add>, %271, %cst_84 [1] : vector<16x32xf32> to vector<16xf32>
    %273 = vector.shape_cast %272 : vector<16xf32> to vector<16x1xf32>
    %cst_85 = arith.constant 3.200000e+01 : f32
    %274 = vector.broadcast %cst_85 : f32 to vector<16x1xf32>
    %275 = arith.divf %273, %274 : vector<16x1xf32>
    %276 = vector.broadcast %268 : vector<16x1xf32> to vector<16x32xf32>
    %277 = arith.subf %264, %276 : vector<16x32xf32>
    %cst_86 = arith.constant 9.99999974E-6 : f32
    %278 = vector.broadcast %cst_86 : f32 to vector<16x1xf32>
    %279 = arith.addf %275, %278 : vector<16x1xf32>
    %280 = math.rsqrt %279 : vector<16x1xf32>
    %281 = vector.broadcast %280 : vector<16x1xf32> to vector<16x32xf32>
    %282 = arith.mulf %277, %281 : vector<16x32xf32>
    %283 = vector.broadcast %6 : vector<1x32xf32> to vector<16x32xf32>
    %284 = arith.mulf %282, %283 : vector<16x32xf32>
    %285 = vector.broadcast %7 : vector<1x32xf32> to vector<16x32xf32>
    %286 = arith.addf %284, %285 : vector<16x32xf32>
    %287 = arith.truncf %286 : vector<16x32xf32> to vector<16x32xbf16>
    %cst_87 = arith.constant dense<0.000000e+00> : vector<16x128xf32>
    %288 = tpu.matmul %287, %15, %cst_87 {dimension_numbers = #tpu.dot_dimension_numbers<[1], [0], [0], [1], [0, 0, 1, 1], [], []>} : vector<16x32xbf16>, vector<32x128xbf16>, vector<16x128xf32> -> vector<16x128xf32>
    %289 = vector.broadcast %16 : vector<1x128xf32> to vector<16x128xf32>
    %290 = arith.addf %288, %289 : vector<16x128xf32>
    %cst_88 = arith.constant 0.000000e+00 : f32
    %291 = vector.broadcast %cst_88 : f32 to vector<16x128xf32>
    %292 = arith.maximumf %290, %291 : vector<16x128xf32>
    %293 = arith.truncf %292 : vector<16x128xf32> to vector<16x128xbf16>
    %cst_89 = arith.constant dense<0.000000e+00> : vector<16x32xf32>
    %294 = tpu.matmul %293, %17, %cst_89 {dimension_numbers = #tpu.dot_dimension_numbers<[1], [0], [0], [1], [0, 0, 1, 1], [], []>} : vector<16x128xbf16>, vector<128x32xbf16>, vector<16x32xf32> -> vector<16x32xf32>
    %295 = arith.addf %264, %294 : vector<16x32xf32>
    %296 = vector.broadcast %18 : vector<1x32xf32> to vector<16x32xf32>
    %297 = arith.addf %295, %296 : vector<16x32xf32>
    %cst_90 = arith.constant dense<0.000000e+00> : vector<16xf32>
    %298 = vector.multi_reduction <add>, %297, %cst_90 [1] : vector<16x32xf32> to vector<16xf32>
    %299 = vector.shape_cast %298 : vector<16xf32> to vector<16x1xf32>
    %cst_91 = arith.constant 3.200000e+01 : f32
    %300 = vector.broadcast %cst_91 : f32 to vector<16x1xf32>
    %301 = arith.divf %299, %300 : vector<16x1xf32>
    %302 = vector.broadcast %301 : vector<16x1xf32> to vector<16x32xf32>
    %303 = arith.subf %297, %302 : vector<16x32xf32>
    %304 = arith.mulf %303, %303 : vector<16x32xf32>
    %cst_92 = arith.constant dense<0.000000e+00> : vector<16xf32>
    %305 = vector.multi_reduction <add>, %304, %cst_92 [1] : vector<16x32xf32> to vector<16xf32>
    %306 = vector.shape_cast %305 : vector<16xf32> to vector<16x1xf32>
    %cst_93 = arith.constant 3.200000e+01 : f32
    %307 = vector.broadcast %cst_93 : f32 to vector<16x1xf32>
    %308 = arith.divf %306, %307 : vector<16x1xf32>
    %309 = vector.broadcast %301 : vector<16x1xf32> to vector<16x32xf32>
    %310 = arith.subf %297, %309 : vector<16x32xf32>
    %cst_94 = arith.constant 9.99999974E-6 : f32
    %311 = vector.broadcast %cst_94 : f32 to vector<16x1xf32>
    %312 = arith.addf %308, %311 : vector<16x1xf32>
    %313 = math.rsqrt %312 : vector<16x1xf32>
    %314 = vector.broadcast %313 : vector<16x1xf32> to vector<16x32xf32>
    %315 = arith.mulf %310, %314 : vector<16x32xf32>
    %316 = vector.broadcast %4 : vector<1x32xf32> to vector<16x32xf32>
    %317 = arith.mulf %315, %316 : vector<16x32xf32>
    %318 = vector.broadcast %5 : vector<1x32xf32> to vector<16x32xf32>
    %319 = arith.addf %317, %318 : vector<16x32xf32>
    %320 = arith.truncf %319 : vector<16x32xf32> to vector<16x32xbf16>
    %cst_95 = arith.constant dense<0.000000e+00> : vector<16x32xf32>
    %321 = tpu.matmul %320, %9, %cst_95 {dimension_numbers = #tpu.dot_dimension_numbers<[1], [0], [0], [1], [0, 0, 1, 1], [], []>} : vector<16x32xbf16>, vector<32x32xbf16>, vector<16x32xf32> -> vector<16x32xf32>
    %322 = vector.shape_cast %321 : vector<16x32xf32> to vector<1x16x32xf32>
    %323 = arith.truncf %322 : vector<1x16x32xf32> to vector<1x16x32xbf16>
    "tpu.trace_start"() <{level = 10 : i32, message = "bid,bjd->bij"}> : () -> ()
    %cst_96 = arith.constant dense<0.000000e+00> : vector<1x16x128xf32>
    %324 = tpu.matmul %323, %62, %cst_96 {dimension_numbers = #tpu.dot_dimension_numbers<[2], [2], [1], [1], [0, 0, 0, 1, 1, 1], [0], [0]>} : vector<1x16x32xbf16>, vector<1x128x32xbf16>, vector<1x16x128xf32> -> vector<1x16x128xf32>
    "tpu.trace_stop"() : () -> ()
    %325 = vector.broadcast %29 : vector<1x16x1xf32> to vector<1x16x128xf32>
    %326 = arith.addf %324, %325 : vector<1x16x128xf32>
    %cst_97 = arith.constant dense<0xFF800000> : vector<1x128xf32>
    %327 = vector.multi_reduction <maximumf>, %326, %cst_97 [1] : vector<1x16x128xf32> to vector<1x128xf32>
    %328 = vector.shape_cast %327 : vector<1x128xf32> to vector<1x1x128xf32>
    %329 = vector.broadcast %328 : vector<1x1x128xf32> to vector<1x16x128xf32>
    %330 = arith.subf %326, %329 : vector<1x16x128xf32>
    %331 = math.exp %330 : vector<1x16x128xf32>
    %cst_98 = arith.constant dense<0.000000e+00> : vector<1x128xf32>
    %332 = vector.multi_reduction <add>, %331, %cst_98 [1] : vector<1x16x128xf32> to vector<1x128xf32>
    %333 = vector.shape_cast %332 : vector<1x128xf32> to vector<1x1x128xf32>
    %334 = vector.broadcast %333 : vector<1x1x128xf32> to vector<1x16x128xf32>
    %335 = arith.divf %331, %334 : vector<1x16x128xf32>
    %336 = vector.broadcast %23 : vector<1x1x128xf32> to vector<1x16x128xf32>
    %337 = arith.mulf %335, %336 : vector<1x16x128xf32>
    %cst_99 = arith.constant dense<0.000000e+00> : vector<1x16xf32>
    %338 = vector.multi_reduction <add>, %337, %cst_99 [2] : vector<1x16x128xf32> to vector<1x16xf32>
    %339 = vector.shape_cast %338 : vector<1x16xf32> to vector<1x16x1xf32>
    %cst_100 = arith.constant 9.99999997E-7 : f32
    %340 = vector.broadcast %cst_100 : f32 to vector<1x16x1xf32>
    %341 = arith.addf %339, %340 : vector<1x16x1xf32>
    %342 = vector.broadcast %341 : vector<1x16x1xf32> to vector<1x16x128xf32>
    %343 = arith.divf %337, %342 : vector<1x16x128xf32>
    %344 = arith.truncf %343 : vector<1x16x128xf32> to vector<1x16x128xbf16>
    "tpu.trace_start"() <{level = 10 : i32, message = "bij,bjd->bid"}> : () -> ()
    %cst_101 = arith.constant dense<0.000000e+00> : vector<1x16x32xf32>
    %345 = tpu.matmul %344, %64, %cst_101 {dimension_numbers = #tpu.dot_dimension_numbers<[2], [1], [1], [2], [0, 0, 0, 1, 1, 2], [0], [0]>} : vector<1x16x128xbf16>, vector<1x128x32xbf16>, vector<1x16x32xf32> -> vector<1x16x32xf32>
    "tpu.trace_stop"() : () -> ()
    %346 = vector.shape_cast %345 : vector<1x16x32xf32> to vector<16x32xf32>
    %347 = arith.truncf %346 : vector<16x32xf32> to vector<16x32xbf16>
    %cst_102 = arith.constant dense<0.000000e+00> : vector<16x96xf32>
    %348 = tpu.matmul %347, %10, %cst_102 {dimension_numbers = #tpu.dot_dimension_numbers<[1], [0], [0], [1], [0, 0, 1, 1], [], []>} : vector<16x32xbf16>, vector<32x96xbf16>, vector<16x96xf32> -> vector<16x96xf32>
    %349 = vector.broadcast %13 : vector<1x96xf32> to vector<16x96xf32>
    %350 = arith.addf %348, %349 : vector<16x96xf32>
    %351 = arith.truncf %297 : vector<16x32xf32> to vector<16x32xbf16>
    %cst_103 = arith.constant dense<0.000000e+00> : vector<16x96xf32>
    %352 = tpu.matmul %351, %11, %cst_103 {dimension_numbers = #tpu.dot_dimension_numbers<[1], [0], [0], [1], [0, 0, 1, 1], [], []>} : vector<16x32xbf16>, vector<32x96xbf16>, vector<16x96xf32> -> vector<16x96xf32>
    %353 = vector.broadcast %14 : vector<1x96xf32> to vector<16x96xf32>
    %354 = arith.addf %352, %353 : vector<16x96xf32>
    %355 = vector.extract_strided_slice %350 {offsets = [0, 0], sizes = [16, 32], strides = [1, 1]} : vector<16x96xf32> to vector<16x32xf32>
    %356 = vector.extract_strided_slice %354 {offsets = [0, 0], sizes = [16, 32], strides = [1, 1]} : vector<16x96xf32> to vector<16x32xf32>
    %357 = arith.addf %355, %356 : vector<16x32xf32>
    %358 = arith.negf %357 : vector<16x32xf32>
    %359 = math.exp %358 : vector<16x32xf32>
    %cst_104 = arith.constant 1.000000e+00 : f32
    %360 = vector.broadcast %cst_104 : f32 to vector<16x32xf32>
    %361 = arith.addf %360, %359 : vector<16x32xf32>
    %362 = arith.divf %360, %361 : vector<16x32xf32>
    %363 = vector.extract_strided_slice %350 {offsets = [0, 32], sizes = [16, 32], strides = [1, 1]} : vector<16x96xf32> to vector<16x32xf32>
    %364 = vector.extract_strided_slice %354 {offsets = [0, 32], sizes = [16, 32], strides = [1, 1]} : vector<16x96xf32> to vector<16x32xf32>
    %365 = arith.addf %363, %364 : vector<16x32xf32>
    %366 = arith.negf %365 : vector<16x32xf32>
    %367 = math.exp %366 : vector<16x32xf32>
    %cst_105 = arith.constant 1.000000e+00 : f32
    %368 = vector.broadcast %cst_105 : f32 to vector<16x32xf32>
    %369 = arith.addf %368, %367 : vector<16x32xf32>
    %370 = arith.divf %368, %369 : vector<16x32xf32>
    %371 = vector.extract_strided_slice %350 {offsets = [0, 64], sizes = [16, 32], strides = [1, 1]} : vector<16x96xf32> to vector<16x32xf32>
    %372 = vector.extract_strided_slice %354 {offsets = [0, 64], sizes = [16, 32], strides = [1, 1]} : vector<16x96xf32> to vector<16x32xf32>
    %373 = arith.mulf %362, %372 : vector<16x32xf32>
    %374 = arith.addf %371, %373 : vector<16x32xf32>
    %375 = math.tanh %374 : vector<16x32xf32>
    %cst_106 = arith.constant 1.000000e+00 : f32
    %376 = vector.broadcast %cst_106 : f32 to vector<16x32xf32>
    %377 = arith.subf %376, %370 : vector<16x32xf32>
    %378 = arith.mulf %377, %375 : vector<16x32xf32>
    %379 = arith.mulf %370, %297 : vector<16x32xf32>
    %380 = arith.addf %378, %379 : vector<16x32xf32>
    %cst_107 = arith.constant dense<0.000000e+00> : vector<16xf32>
    %381 = vector.multi_reduction <add>, %380, %cst_107 [1] : vector<16x32xf32> to vector<16xf32>
    %382 = vector.shape_cast %381 : vector<16xf32> to vector<16x1xf32>
    %cst_108 = arith.constant 3.200000e+01 : f32
    %383 = vector.broadcast %cst_108 : f32 to vector<16x1xf32>
    %384 = arith.divf %382, %383 : vector<16x1xf32>
    %385 = vector.broadcast %384 : vector<16x1xf32> to vector<16x32xf32>
    %386 = arith.subf %380, %385 : vector<16x32xf32>
    %387 = arith.mulf %386, %386 : vector<16x32xf32>
    %cst_109 = arith.constant dense<0.000000e+00> : vector<16xf32>
    %388 = vector.multi_reduction <add>, %387, %cst_109 [1] : vector<16x32xf32> to vector<16xf32>
    %389 = vector.shape_cast %388 : vector<16xf32> to vector<16x1xf32>
    %cst_110 = arith.constant 3.200000e+01 : f32
    %390 = vector.broadcast %cst_110 : f32 to vector<16x1xf32>
    %391 = arith.divf %389, %390 : vector<16x1xf32>
    %392 = vector.broadcast %384 : vector<16x1xf32> to vector<16x32xf32>
    %393 = arith.subf %380, %392 : vector<16x32xf32>
    %cst_111 = arith.constant 9.99999974E-6 : f32
    %394 = vector.broadcast %cst_111 : f32 to vector<16x1xf32>
    %395 = arith.addf %391, %394 : vector<16x1xf32>
    %396 = math.rsqrt %395 : vector<16x1xf32>
    %397 = vector.broadcast %396 : vector<16x1xf32> to vector<16x32xf32>
    %398 = arith.mulf %393, %397 : vector<16x32xf32>
    %399 = vector.broadcast %6 : vector<1x32xf32> to vector<16x32xf32>
    %400 = arith.mulf %398, %399 : vector<16x32xf32>
    %401 = vector.broadcast %7 : vector<1x32xf32> to vector<16x32xf32>
    %402 = arith.addf %400, %401 : vector<16x32xf32>
    %403 = arith.truncf %402 : vector<16x32xf32> to vector<16x32xbf16>
    %cst_112 = arith.constant dense<0.000000e+00> : vector<16x128xf32>
    %404 = tpu.matmul %403, %15, %cst_112 {dimension_numbers = #tpu.dot_dimension_numbers<[1], [0], [0], [1], [0, 0, 1, 1], [], []>} : vector<16x32xbf16>, vector<32x128xbf16>, vector<16x128xf32> -> vector<16x128xf32>
    %405 = vector.broadcast %16 : vector<1x128xf32> to vector<16x128xf32>
    %406 = arith.addf %404, %405 : vector<16x128xf32>
    %cst_113 = arith.constant 0.000000e+00 : f32
    %407 = vector.broadcast %cst_113 : f32 to vector<16x128xf32>
    %408 = arith.maximumf %406, %407 : vector<16x128xf32>
    %409 = arith.truncf %408 : vector<16x128xf32> to vector<16x128xbf16>
    %cst_114 = arith.constant dense<0.000000e+00> : vector<16x32xf32>
    %410 = tpu.matmul %409, %17, %cst_114 {dimension_numbers = #tpu.dot_dimension_numbers<[1], [0], [0], [1], [0, 0, 1, 1], [], []>} : vector<16x128xbf16>, vector<128x32xbf16>, vector<16x32xf32> -> vector<16x32xf32>
    %411 = arith.addf %380, %410 : vector<16x32xf32>
    %412 = vector.broadcast %18 : vector<1x32xf32> to vector<16x32xf32>
    %413 = arith.addf %411, %412 : vector<16x32xf32>
    %c0_115 = arith.constant 0 : index
    %c0_116 = arith.constant 0 : index
    %414 = vector.load %arg14[%c0_115, %c0_116] : memref<16x32xf32, #tpu.memory_space<vmem>>, vector<16x32xf32>
    tpu.vector_store %arg14[%c0_115, %c0_116], %413 {strides = array<i32>} : memref<16x32xf32, #tpu.memory_space<vmem>>, vector<16x32xf32>,
    %415 = vector.shape_cast %337 : vector<1x16x128xf32> to vector<16x128xf32>
    %416 = arith.truncf %415 : vector<16x128xf32> to vector<16x128xbf16>
    %c0_117 = arith.constant 0 : index
    %c0_118 = arith.constant 0 : index
    %417 = vector.load %arg15[%c0_117, %c0_118] : memref<16x128xbf16, #tpu.memory_space<vmem>>, vector<16x128xbf16>
    tpu.vector_store %arg15[%c0_117, %c0_118], %416 {strides = array<i32>} : memref<16x128xbf16, #tpu.memory_space<vmem>>, vector<16x128xbf16>,
    return
  }
  func.func @transform_0(%arg0: i32) -> (i32, i32) {
    %c0_i32 = arith.constant 0 : i32
    %c0_i32_0 = arith.constant 0 : i32
    return %arg0, %c0_i32 : i32, i32
  }
  func.func @transform_1(%arg0: i32) -> (i32, i32) {
    %c0_i32 = arith.constant 0 : i32
    %c0_i32_0 = arith.constant 0 : i32
    return %arg0, %c0_i32 : i32, i32
  }
  func.func @transform_2(%arg0: i32) -> (i32, i32) {
    %c0_i32 = arith.constant 0 : i32
    %c0_i32_0 = arith.constant 0 : i32
    %c0_i32_1 = arith.constant 0 : i32
    return %c0_i32, %c0_i32_0 : i32, i32
  }
  func.func @transform_3(%arg0: i32) -> (i32, i32) {
    %c0_i32 = arith.constant 0 : i32
    %c0_i32_0 = arith.constant 0 : i32
    %c0_i32_1 = arith.constant 0 : i32
    return %c0_i32, %c0_i32_0 : i32, i32
  }
  func.func @transform_4(%arg0: i32) -> (i32, i32) {
    %c0_i32 = arith.constant 0 : i32
    %c0_i32_0 = arith.constant 0 : i32
    %c0_i32_1 = arith.constant 0 : i32
    return %c0_i32, %c0_i32_0 : i32, i32
  }
  func.func @transform_5(%arg0: i32) -> (i32, i32) {
    %c0_i32 = arith.constant 0 : i32
    %c0_i32_0 = arith.constant 0 : i32
    %c0_i32_1 = arith.constant 0 : i32
    return %c0_i32, %c0_i32_0 : i32, i32
  }
  func.func @transform_6(%arg0: i32) -> (i32, i32) {
    %c0_i32 = arith.constant 0 : i32
    %c0_i32_0 = arith.constant 0 : i32
    %c0_i32_1 = arith.constant 0 : i32
    return %c0_i32, %c0_i32_0 : i32, i32
  }
  func.func @transform_7(%arg0: i32) -> (i32, i32) {
    %c0_i32 = arith.constant 0 : i32
    %c0_i32_0 = arith.constant 0 : i32
    %c0_i32_1 = arith.constant 0 : i32
    return %c0_i32, %c0_i32_0 : i32, i32
  }
  func.func @transform_8(%arg0: i32) -> (i32, i32) {
    %c0_i32 = arith.constant 0 : i32
    %c0_i32_0 = arith.constant 0 : i32
    %c0_i32_1 = arith.constant 0 : i32
    return %c0_i32, %c0_i32_0 : i32, i32
  }
  func.func @transform_9(%arg0: i32) -> (i32, i32) {
    %c0_i32 = arith.constant 0 : i32
    %c0_i32_0 = arith.constant 0 : i32
    %c0_i32_1 = arith.constant 0 : i32
    return %c0_i32, %c0_i32_0 : i32, i32
  }
  func.func @transform_10(%arg0: i32) -> (i32, i32) {
    %c0_i32 = arith.constant 0 : i32
    %c0_i32_0 = arith.constant 0 : i32
    %c0_i32_1 = arith.constant 0 : i32
    return %c0_i32, %c0_i32_0 : i32, i32
  }
  func.func @transform_11(%arg0: i32) -> (i32, i32) {
    %c0_i32 = arith.constant 0 : i32
    %c0_i32_0 = arith.constant 0 : i32
    %c0_i32_1 = arith.constant 0 : i32
    return %c0_i32, %c0_i32_0 : i32, i32
  }
  func.func @transform_12(%arg0: i32) -> (i32, i32) {
    %c0_i32 = arith.constant 0 : i32
    %c0_i32_0 = arith.constant 0 : i32
    %c0_i32_1 = arith.constant 0 : i32
    return %c0_i32, %c0_i32_0 : i32, i32
  }
  func.func @transform_13(%arg0: i32) -> (i32, i32) {
    %c0_i32 = arith.constant 0 : i32
    %c0_i32_0 = arith.constant 0 : i32
    return %arg0, %c0_i32 : i32, i32
  }
  func.func @transform_14(%arg0: i32) -> (i32, i32) {
    %c0_i32 = arith.constant 0 : i32
    %c0_i32_0 = arith.constant 0 : i32
    return %arg0, %c0_i32 : i32, i32
  }
}

</mosaic_0001>

<llo_original>
// kernel: tpu_custom_call.1
$region0: #{tpu_custom_call.1}
  #allocation0 [shape = 'u32[]', space=smem, size = 0x4, offset = 0x4, fixed_abs, tag = 'smem constant byte address 0x4 - core index']
  #allocation1 [shape = 'u32[144,128]{1,0:T(1,128)}', space=vmem, size = 0x12000, scoped, tag = 'internal scratch']
  #allocation2 [shape = 'bf16[128,32]{1,0:T(16,128)(2,1)}', space=vmem, size = 0x8000, scoped, tag = 'scratch operand']
  #allocation3 [shape = 'bf16[128,32]{1,0:T(16,128)(2,1)}', space=vmem, size = 0x8000, scoped, tag = 'scratch operand']
  %s0 = inlined_call_operand.vmem [shape: f32[256,32], index: 0, kind: input, shape index: {}]
  %s1 = inlined_call_operand.vmem [shape: f32[32,32], index: 1, kind: input, shape index: {}]
  %s2 = inlined_call_operand.vmem [shape: f32[2,32], index: 2, kind: input, shape index: {}]
  %s3 = inlined_call_operand.vmem [shape: f32[4,32], index: 3, kind: input, shape index: {}]
  %s4 = inlined_call_operand.vmem [shape: bf16[32,64], index: 4, kind: input, shape index: {}]
  %s5 = inlined_call_operand.vmem [shape: bf16[32,32], index: 5, kind: input, shape index: {}]
  %s6 = inlined_call_operand.vmem [shape: bf16[32,96], index: 6, kind: input, shape index: {}]
  %s7 = inlined_call_operand.vmem [shape: bf16[32,96], index: 7, kind: input, shape index: {}]
  %s8 = inlined_call_operand.vmem [shape: f32[2,96], index: 8, kind: input, shape index: {}]
  %s9 = inlined_call_operand.vmem [shape: bf16[32,128], index: 9, kind: input, shape index: {}]
  %s10 = inlined_call_operand.vmem [shape: f32[1,128], index: 10, kind: input, shape index: {}]
  %s11 = inlined_call_operand.vmem [shape: bf16[128,32], index: 11, kind: input, shape index: {}]
  %s12 = inlined_call_operand.vmem [shape: f32[1,32], index: 12, kind: input, shape index: {}]
  %s13 = inlined_call_operand.hbm [shape: f32[32,32], index: 13, kind: output, shape index: {0}]
  %s14 = inlined_call_operand.hbm [shape: bf16[32,128], index: 14, kind: output, shape index: {1}]
  %15 = xla_tuple %s13, %s14
  %s16 = sld [smem:[#allocation0]]
  $region93: #{tpu_custom_call.1} parent=0
    _
  %s18 = ssub.s32 1, %s16
  %s19 = scalar_select 0, %s18, %s16
  $region1: #{tpu_custom_call.1} parent=0
    #allocation4 [shape = 'u8[16384]{0}', space=vmem, size = 0x4000, scoped, tag = 'output window, operand 0']
    #allocation5 [shape = 's32[2]{0}', space=sflag, size = 0x8, scoped, tag = 'scoped memory for tpu_custom_call.1']
    #allocation6 [shape = 'u8[8192]{0}', space=vmem, size = 0x2000, scoped, tag = 'output window, operand 1']
    #allocation7 [shape = 's32[2]{0}', space=sflag, size = 0x8, scoped, tag = 'scoped memory for tpu_custom_call.1']
    %20 = vsyncpa [#allocation5], 0
    %s21 = scalar_lea.sflag [#allocation5], 1
    %22 = vsyncpa %s21, 0
    %23 = vsyncpa [#allocation7], 0
    %s24 = scalar_lea.sflag [#allocation7], 1
    %25 = vsyncpa %s24, 0
    loop: start=0, step=1, limit=4
    $region2: #{tpu_custom_call.1} parent=1 // loop_pre_header
      _
    $region3: #{tpu_custom_call.1} parent=1 // loop_header
      %s27 = sphi 0, %s31
      %p28 = scmp.ge.s32.totalorder %s27, 4
      %s37 = sphi 0, %s39
      %s40 = sphi 0, %s37
      %s41 = sphi 0, %s40
      %s57 = sphi 0, %s41
      %s63 = sphi 0, %s65
      %s66 = sphi 0, %s63
      %s67 = sphi 0, %s66
      %s83 = sphi 0, %s67
      %s87 = sphi 0, %s87
      %s89 = sphi 0, %s87
      %s90 = sphi 0, %s89
      %s104 = sphi 0, %s90
      %s108 = sphi 0, %s108
      %s110 = sphi 0, %s108
      %s111 = sphi 0, %s110
      %s125 = sphi 0, %s111
      %s129 = sphi 0, %s129
      %s131 = sphi 0, %s129
      %s132 = sphi 0, %s131
      %s146 = sphi 0, %s132
      %s150 = sphi 0, %s150
      %s152 = sphi 0, %s150
      %s153 = sphi 0, %s152
      %s167 = sphi 0, %s153
      %s171 = sphi 0, %s171
      %s173 = sphi 0, %s171
      %s174 = sphi 0, %s173
      %s188 = sphi 0, %s174
      %s192 = sphi 0, %s192
      %s194 = sphi 0, %s192
      %s195 = sphi 0, %s194
      %s209 = sphi 0, %s195
      %s213 = sphi 0, %s213
      %s215 = sphi 0, %s213
      %s216 = sphi 0, %s215
      %s230 = sphi 0, %s216
      %s234 = sphi 0, %s234
      %s236 = sphi 0, %s234
      %s237 = sphi 0, %s236
      %s251 = sphi 0, %s237
      %s255 = sphi 0, %s255
      %s257 = sphi 0, %s255
      %s258 = sphi 0, %s257
      %s272 = sphi 0, %s258
      %s276 = sphi 0, %s276
      %s278 = sphi 0, %s276
      %s279 = sphi 0, %s278
      %s293 = sphi 0, %s279
      %s297 = sphi 0, %s297
      %s299 = sphi 0, %s297
      %s300 = sphi 0, %s299
      %s314 = sphi 0, %s300
      %s320 = sphi 0, %s322
      %s323 = sphi 0, %s320
      %s324 = sphi 0, %s323
      %s340 = sphi 0, %s324
      %s346 = sphi 0, %s348
      %s349 = sphi 0, %s346
      %s350 = sphi 0, %s349
      %s366 = sphi 0, %s350
    $region4: #{tpu_custom_call.1} parent=1 // loop_header_branch
      %30 = sbr.rel (%p28) target = $region8
    $region5: #{tpu_custom_call.1} parent=1 // loop_body
      %s32 = ssub.s32 %s27, 1
      %s33 = ssub.s32 %s27, 2
      %s34 = sadd.s32 %s27, 1
      %s35 = ssub.s32 %s27, %s34
      %p36 = scmp.eq.s32.totalorder %s35, 0
      %s38 = sadd.s32 %s37, 1
      %s39 = scalar_select %p36, %s37, %s38
      %p42 = pneg %p36
      %p43 = scmp.eq.s32.totalorder %s27, 1
      %p44 = por %p42, %p43
      %p45 = scmp.ne.s32.totalorder %s37, %s40
      %p46 = scmp.eq.s32.totalorder %s27, 0
      %p47 = por %p45, %p46
      %p48 = scmp.ne.s32.totalorder %s37, %s40
      %p49 = scmp.eq.s32.totalorder %s32, 1
      %p50 = por %p48, %p49
      %p51 = scmp.ne.s32.totalorder %s40, %s41
      %p52 = scmp.eq.s32.totalorder %s32, 0
      %p53 = por %p51, %p52
      %p54 = scmp.ne.s32.totalorder %s40, %s41
      %p55 = scmp.eq.s32.totalorder %s33, 1
      %p56 = por %p54, %p55
      %p58 = scmp.ne.s32.totalorder %s41, %s57
      %p59 = scmp.eq.s32.totalorder %s33, 0
      %p60 = por %p58, %p59
      %s61 = ssub.s32 %s27, %s34
      %p62 = scmp.eq.s32.totalorder %s61, 0
      %s64 = sadd.s32 %s63, 1
      %s65 = scalar_select %p62, %s63, %s64
      %p68 = pneg %p62
      %p69 = scmp.eq.s32.totalorder %s27, 1
      %p70 = por %p68, %p69
      %p71 = scmp.ne.s32.totalorder %s63, %s66
      %p72 = scmp.eq.s32.totalorder %s27, 0
      %p73 = por %p71, %p72
      %p74 = scmp.ne.s32.totalorder %s63, %s66
      %p75 = scmp.eq.s32.totalorder %s32, 1
      %p76 = por %p74, %p75
      %p77 = scmp.ne.s32.totalorder %s66, %s67
      %p78 = scmp.eq.s32.totalorder %s32, 0
      %p79 = por %p77, %p78
      %p80 = scmp.ne.s32.totalorder %s66, %s67
      %p81 = scmp.eq.s32.totalorder %s33, 1
      %p82 = por %p80, %p81
      %p84 = scmp.ne.s32.totalorder %s67, %s83
      %p85 = scmp.eq.s32.totalorder %s33, 0
      %p86 = por %p84, %p85
      %s88 = sadd.s32 %s87, 1
      %p91 = scmp.eq.s32.totalorder %s27, 1
      %p92 = scmp.ne.s32.totalorder %s87, %s89
      %p93 = scmp.eq.s32.totalorder %s27, 0
      %p94 = por %p92, %p93
      %p95 = scmp.ne.s32.totalorder %s87, %s89
      %p96 = scmp.eq.s32.totalorder %s32, 1
      %p97 = por %p95, %p96
      %p98 = scmp.ne.s32.totalorder %s89, %s90
      %p99 = scmp.eq.s32.totalorder %s32, 0
      %p100 = por %p98, %p99
      %p101 = scmp.ne.s32.totalorder %s89, %s90
      %p102 = scmp.eq.s32.totalorder %s33, 1
      %p103 = por %p101, %p102
      %p105 = scmp.ne.s32.totalorder %s90, %s104
      %p106 = scmp.eq.s32.totalorder %s33, 0
      %p107 = por %p105, %p106
      %s109 = sadd.s32 %s108, 1
      %p112 = scmp.eq.s32.totalorder %s27, 1
      %p113 = scmp.ne.s32.totalorder %s108, %s110
      %p114 = scmp.eq.s32.totalorder %s27, 0
      %p115 = por %p113, %p114
      %p116 = scmp.ne.s32.totalorder %s108, %s110
      %p117 = scmp.eq.s32.totalorder %s32, 1
      %p118 = por %p116, %p117
      %p119 = scmp.ne.s32.totalorder %s110, %s111
      %p120 = scmp.eq.s32.totalorder %s32, 0
      %p121 = por %p119, %p120
      %p122 = scmp.ne.s32.totalorder %s110, %s111
      %p123 = scmp.eq.s32.totalorder %s33, 1
      %p124 = por %p122, %p123
      %p126 = scmp.ne.s32.totalorder %s111, %s125
      %p127 = scmp.eq.s32.totalorder %s33, 0
      %p128 = por %p126, %p127
      %s130 = sadd.s32 %s129, 1
      %p133 = scmp.eq.s32.totalorder %s27, 1
      %p134 = scmp.ne.s32.totalorder %s129, %s131
      %p135 = scmp.eq.s32.totalorder %s27, 0
      %p136 = por %p134, %p135
      %p137 = scmp.ne.s32.totalorder %s129, %s131
      %p138 = scmp.eq.s32.totalorder %s32, 1
      %p139 = por %p137, %p138
      %p140 = scmp.ne.s32.totalorder %s131, %s132
      %p141 = scmp.eq.s32.totalorder %s32, 0
      %p142 = por %p140, %p141
      %p143 = scmp.ne.s32.totalorder %s131, %s132
      %p144 = scmp.eq.s32.totalorder %s33, 1
      %p145 = por %p143, %p144
      %p147 = scmp.ne.s32.totalorder %s132, %s146
      %p148 = scmp.eq.s32.totalorder %s33, 0
      %p149 = por %p147, %p148
      %s151 = sadd.s32 %s150, 1
      %p154 = scmp.eq.s32.totalorder %s27, 1
      %p155 = scmp.ne.s32.totalorder %s150, %s152
      %p156 = scmp.eq.s32.totalorder %s27, 0
      %p157 = por %p155, %p156
      %p158 = scmp.ne.s32.totalorder %s150, %s152
      %p159 = scmp.eq.s32.totalorder %s32, 1
      %p160 = por %p158, %p159
      %p161 = scmp.ne.s32.totalorder %s152, %s153
      %p162 = scmp.eq.s32.totalorder %s32, 0
      %p163 = por %p161, %p162
      %p164 = scmp.ne.s32.totalorder %s152, %s153
      %p165 = scmp.eq.s32.totalorder %s33, 1
      %p166 = por %p164, %p165
      %p168 = scmp.ne.s32.totalorder %s153, %s167
      %p169 = scmp.eq.s32.totalorder %s33, 0
      %p170 = por %p168, %p169
      %s172 = sadd.s32 %s171, 1
      %p175 = scmp.eq.s32.totalorder %s27, 1
      %p176 = scmp.ne.s32.totalorder %s171, %s173
      %p177 = scmp.eq.s32.totalorder %s27, 0
      %p178 = por %p176, %p177
      %p179 = scmp.ne.s32.totalorder %s171, %s173
      %p180 = scmp.eq.s32.totalorder %s32, 1
      %p181 = por %p179, %p180
      %p182 = scmp.ne.s32.totalorder %s173, %s174
      %p183 = scmp.eq.s32.totalorder %s32, 0
      %p184 = por %p182, %p183
      %p185 = scmp.ne.s32.totalorder %s173, %s174
      %p186 = scmp.eq.s32.totalorder %s33, 1
      %p187 = por %p185, %p186
      %p189 = scmp.ne.s32.totalorder %s174, %s188
      %p190 = scmp.eq.s32.totalorder %s33, 0
      %p191 = por %p189, %p190
      %s193 = sadd.s32 %s192, 1
      %p196 = scmp.eq.s32.totalorder %s27, 1
      %p197 = scmp.ne.s32.totalorder %s192, %s194
      %p198 = scmp.eq.s32.totalorder %s27, 0
      %p199 = por %p197, %p198
      %p200 = scmp.ne.s32.totalorder %s192, %s194
      %p201 = scmp.eq.s32.totalorder %s32, 1
      %p202 = por %p200, %p201
      %p203 = scmp.ne.s32.totalorder %s194, %s195
      %p204 = scmp.eq.s32.totalorder %s32, 0
      %p205 = por %p203, %p204
      %p206 = scmp.ne.s32.totalorder %s194, %s195
      %p207 = scmp.eq.s32.totalorder %s33, 1
      %p208 = por %p206, %p207
      %p210 = scmp.ne.s32.totalorder %s195, %s209
      %p211 = scmp.eq.s32.totalorder %s33, 0
      %p212 = por %p210, %p211
      %s214 = sadd.s32 %s213, 1
      %p217 = scmp.eq.s32.totalorder %s27, 1
      %p218 = scmp.ne.s32.totalorder %s213, %s215
      %p219 = scmp.eq.s32.totalorder %s27, 0
      %p220 = por %p218, %p219
      %p221 = scmp.ne.s32.totalorder %s213, %s215
      %p222 = scmp.eq.s32.totalorder %s32, 1
      %p223 = por %p221, %p222
      %p224 = scmp.ne.s32.totalorder %s215, %s216
      %p225 = scmp.eq.s32.totalorder %s32, 0
      %p226 = por %p224, %p225
      %p227 = scmp.ne.s32.totalorder %s215, %s216
      %p228 = scmp.eq.s32.totalorder %s33, 1
      %p229 = por %p227, %p228
      %p231 = scmp.ne.s32.totalorder %s216, %s230
      %p232 = scmp.eq.s32.totalorder %s33, 0
      %p233 = por %p231, %p232
      %s235 = sadd.s32 %s234, 1
      %p238 = scmp.eq.s32.totalorder %s27, 1
      %p239 = scmp.ne.s32.totalorder %s234, %s236
      %p240 = scmp.eq.s32.totalorder %s27, 0
      %p241 = por %p239, %p240
      %p242 = scmp.ne.s32.totalorder %s234, %s236
      %p243 = scmp.eq.s32.totalorder %s32, 1
      %p244 = por %p242, %p243
      %p245 = scmp.ne.s32.totalorder %s236, %s237
      %p246 = scmp.eq.s32.totalorder %s32, 0
      %p247 = por %p245, %p246
      %p248 = scmp.ne.s32.totalorder %s236, %s237
      %p249 = scmp.eq.s32.totalorder %s33, 1
      %p250 = por %p248, %p249
      %p252 = scmp.ne.s32.totalorder %s237, %s251
      %p253 = scmp.eq.s32.totalorder %s33, 0
      %p254 = por %p252, %p253
      %s256 = sadd.s32 %s255, 1
      %p259 = scmp.eq.s32.totalorder %s27, 1
      %p260 = scmp.ne.s32.totalorder %s255, %s257
      %p261 = scmp.eq.s32.totalorder %s27, 0
      %p262 = por %p260, %p261
      %p263 = scmp.ne.s32.totalorder %s255, %s257
      %p264 = scmp.eq.s32.totalorder %s32, 1
      %p265 = por %p263, %p264
      %p266 = scmp.ne.s32.totalorder %s257, %s258
      %p267 = scmp.eq.s32.totalorder %s32, 0
      %p268 = por %p266, %p267
      %p269 = scmp.ne.s32.totalorder %s257, %s258
      %p270 = scmp.eq.s32.totalorder %s33, 1
      %p271 = por %p269, %p270
      %p273 = scmp.ne.s32.totalorder %s258, %s272
      %p274 = scmp.eq.s32.totalorder %s33, 0
      %p275 = por %p273, %p274
      %s277 = sadd.s32 %s276, 1
      %p280 = scmp.eq.s32.totalorder %s27, 1
      %p281 = scmp.ne.s32.totalorder %s276, %s278
      %p282 = scmp.eq.s32.totalorder %s27, 0
      %p283 = por %p281, %p282
      %p284 = scmp.ne.s32.totalorder %s276, %s278
      %p285 = scmp.eq.s32.totalorder %s32, 1
      %p286 = por %p284, %p285
      %p287 = scmp.ne.s32.totalorder %s278, %s279
      %p288 = scmp.eq.s32.totalorder %s32, 0
      %p289 = por %p287, %p288
      %p290 = scmp.ne.s32.totalorder %s278, %s279
      %p291 = scmp.eq.s32.totalorder %s33, 1
      %p292 = por %p290, %p291
      %p294 = scmp.ne.s32.totalorder %s279, %s293
      %p295 = scmp.eq.s32.totalorder %s33, 0
      %p296 = por %p294, %p295
      %s298 = sadd.s32 %s297, 1
      %p301 = scmp.eq.s32.totalorder %s27, 1
      %p302 = scmp.ne.s32.totalorder %s297, %s299
      %p303 = scmp.eq.s32.totalorder %s27, 0
      %p304 = por %p302, %p303
      %p305 = scmp.ne.s32.totalorder %s297, %s299
      %p306 = scmp.eq.s32.totalorder %s32, 1
      %p307 = por %p305, %p306
      %p308 = scmp.ne.s32.totalorder %s299, %s300
      %p309 = scmp.eq.s32.totalorder %s32, 0
      %p310 = por %p308, %p309
      %p311 = scmp.ne.s32.totalorder %s299, %s300
      %p312 = scmp.eq.s32.totalorder %s33, 1
      %p313 = por %p311, %p312
      %p315 = scmp.ne.s32.totalorder %s300, %s314
      %p316 = scmp.eq.s32.totalorder %s33, 0
      %p317 = por %p315, %p316
      %s318 = ssub.s32 %s27, %s34
      %p319 = scmp.eq.s32.totalorder %s318, 0
      %s321 = sadd.s32 %s320, 1
      %s322 = scalar_select %p319, %s320, %s321
      %p325 = pneg %p319
      %p326 = scmp.eq.s32.totalorder %s27, 1
      %p327 = por %p325, %p326
      %p328 = scmp.ne.s32.totalorder %s320, %s323
      %p329 = scmp.eq.s32.totalorder %s27, 0
      %p330 = por %p328, %p329
      %p331 = scmp.ne.s32.totalorder %s320, %s323
      %p332 = scmp.eq.s32.totalorder %s32, 1
      %p333 = por %p331, %p332
      %p334 = scmp.ne.s32.totalorder %s323, %s324
      %p335 = scmp.eq.s32.totalorder %s32, 0
      %p336 = por %p334, %p335
      %p337 = scmp.ne.s32.totalorder %s323, %s324
      %p338 = scmp.eq.s32.totalorder %s33, 1
      %p339 = por %p337, %p338
      %p341 = scmp.ne.s32.totalorder %s324, %s340
      %p342 = scmp.eq.s32.totalorder %s33, 0
      %p343 = por %p341, %p342
      %s344 = ssub.s32 %s27, %s34
      %p345 = scmp.eq.s32.totalorder %s344, 0
      %s347 = sadd.s32 %s346, 1
      %s348 = scalar_select %p345, %s346, %s347
      %p351 = pneg %p345
      %p352 = scmp.eq.s32.totalorder %s27, 1
      %p353 = por %p351, %p352
      %p354 = scmp.ne.s32.totalorder %s346, %s349
      %p355 = scmp.eq.s32.totalorder %s27, 0
      %p356 = por %p354, %p355
      %p357 = scmp.ne.s32.totalorder %s346, %s349
      %p358 = scmp.eq.s32.totalorder %s32, 1
      %p359 = por %p357, %p358
      %p360 = scmp.ne.s32.totalorder %s349, %s350
      %p361 = scmp.eq.s32.totalorder %s32, 0
      %p362 = por %p360, %p361
      %p363 = scmp.ne.s32.totalorder %s349, %s350
      %p364 = scmp.eq.s32.totalorder %s33, 1
      %p365 = por %p363, %p364
      %p367 = scmp.ne.s32.totalorder %s350, %s366
      %p368 = scmp.eq.s32.totalorder %s33, 0
      %p369 = por %p367, %p368
      %p370 = scmp.le.s32.totalorder 1, %s27
      %p371 = scmp.lt.s32.totalorder %s27, 3
      %p372 = pnand %p370, %p371
      %p373 = pneg %p372
      // Predicated region
      $region9: #{tpu_custom_call.1} parent=5 // pred_check
        _
      $region10: #{tpu_custom_call.1} parent=5 // pred_check_branch
        %375 = sbr.rel (%p372) target = $region12
      $region11: #{tpu_custom_call.1} parent=5 // pred_region
        %s376 = ssub.s32 %s27, 1
        // Predicated region
        $region13: #{tpu_custom_call.1} parent=11 // pred_check
          %p377 = pneg %p100
        $region14: #{tpu_custom_call.1} parent=11 // pred_check_branch
          %379 = sbr.rel (%p377) target = $region16
        $region15: #{tpu_custom_call.1} parent=11 // pred_region
          _
        $region16: #{tpu_custom_call.1} parent=11 // pred_fallthru
          _
        // Predicated region
        $region17: #{tpu_custom_call.1} parent=11 // pred_check
          %p380 = pneg %p121
        $region18: #{tpu_custom_call.1} parent=11 // pred_check_branch
          %382 = sbr.rel (%p380) target = $region20
        $region19: #{tpu_custom_call.1} parent=11 // pred_region
          _
        $region20: #{tpu_custom_call.1} parent=11 // pred_fallthru
          _
        // Predicated region
        $region21: #{tpu_custom_call.1} parent=11 // pred_check
          %p383 = pneg %p142
        $region22: #{tpu_custom_call.1} parent=11 // pred_check_branch
          %385 = sbr.rel (%p383) target = $region24
        $region23: #{tpu_custom_call.1} parent=11 // pred_region
          _
        $region24: #{tpu_custom_call.1} parent=11 // pred_fallthru
          _
        // Predicated region
        $region25: #{tpu_custom_call.1} parent=11 // pred_check
          %p386 = pneg %p163
        $region26: #{tpu_custom_call.1} parent=11 // pred_check_branch
          %388 = sbr.rel (%p386) target = $region28
        $region27: #{tpu_custom_call.1} parent=11 // pred_region
          _
        $region28: #{tpu_custom_call.1} parent=11 // pred_fallthru
          _
        // Predicated region
        $region29: #{tpu_custom_call.1} parent=11 // pred_check
          %p389 = pneg %p184
        $region30: #{tpu_custom_call.1} parent=11 // pred_check_branch
          %391 = sbr.rel (%p389) target = $region32
        $region31: #{tpu_custom_call.1} parent=11 // pred_region
          _
        $region32: #{tpu_custom_call.1} parent=11 // pred_fallthru
          _
        // Predicated region
        $region33: #{tpu_custom_call.1} parent=11 // pred_check
          %p392 = pneg %p205
        $region34: #{tpu_custom_call.1} parent=11 // pred_check_branch
          %394 = sbr.rel (%p392) target = $region36
        $region35: #{tpu_custom_call.1} parent=11 // pred_region
          _
        $region36: #{tpu_custom_call.1} parent=11 // pred_fallthru
          _
        // Predicated region
        $region37: #{tpu_custom_call.1} parent=11 // pred_check
          %p395 = pneg %p226
        $region38: #{tpu_custom_call.1} parent=11 // pred_check_branch
          %397 = sbr.rel (%p395) target = $region40
        $region39: #{tpu_custom_call.1} parent=11 // pred_region
          _
        $region40: #{tpu_custom_call.1} parent=11 // pred_fallthru
          _
        // Predicated region
        $region41: #{tpu_custom_call.1} parent=11 // pred_check
          %p398 = pneg %p247
        $region42: #{tpu_custom_call.1} parent=11 // pred_check_branch
          %400 = sbr.rel (%p398) target = $region44
        $region43: #{tpu_custom_call.1} parent=11 // pred_region
          _
        $region44: #{tpu_custom_call.1} parent=11 // pred_fallthru
          _
        // Predicated region
        $region45: #{tpu_custom_call.1} parent=11 // pred_check
          %p401 = pneg %p268
        $region46: #{tpu_custom_call.1} parent=11 // pred_check_branch
          %403 = sbr.rel (%p401) target = $region48
        $region47: #{tpu_custom_call.1} parent=11 // pred_region
          _
        $region48: #{tpu_custom_call.1} parent=11 // pred_fallthru
          _
        // Predicated region
        $region49: #{tpu_custom_call.1} parent=11 // pred_check
          %p404 = pneg %p289
        $region50: #{tpu_custom_call.1} parent=11 // pred_check_branch
          %406 = sbr.rel (%p404) target = $region52
        $region51: #{tpu_custom_call.1} parent=11 // pred_region
          _
        $region52: #{tpu_custom_call.1} parent=11 // pred_fallthru
          _
        // Predicated region
        $region53: #{tpu_custom_call.1} parent=11 // pred_check
          %p407 = pneg %p310
        $region54: #{tpu_custom_call.1} parent=11 // pred_check_branch
          %409 = sbr.rel (%p407) target = $region56
        $region55: #{tpu_custom_call.1} parent=11 // pred_region
          _
        $region56: #{tpu_custom_call.1} parent=11 // pred_fallthru
          _
      $region12: #{tpu_custom_call.1} parent=5 // pred_fallthru
        _
      %p410 = scmp.lt.s32.totalorder %s27, 2
      // Predicated region
      $region57: #{tpu_custom_call.1} parent=5 // pred_check
        %p411 = pneg %p410
      $region58: #{tpu_custom_call.1} parent=5 // pred_check_branch
        %413 = sbr.rel (%p411) target = $region60
      $region59: #{tpu_custom_call.1} parent=5 // pred_region
        // Predicated region
        $region61: #{tpu_custom_call.1} parent=59 // pred_check
          %p414 = pneg %p47
        $region62: #{tpu_custom_call.1} parent=59 // pred_check_branch
          %416 = sbr.rel (%p414) target = $region64
        $region63: #{tpu_custom_call.1} parent=59 // pred_region
          %s417 = smul.u32 16, %s27
          %p418 = scmp.lt.s32.totalorder %s417, 31
          %s419 = scalar_select %p418, %s417, 31
          %s420 = smul.addr %s419, 8
          %s421 = scalar_lea.vmem %s0, %s420
          %s422 = smul.u32 16, %s27
        $region64: #{tpu_custom_call.1} parent=59 // pred_fallthru
          _
        // Predicated region
        $region65: #{tpu_custom_call.1} parent=59 // pred_check
          %p423 = pneg %p73
        $region66: #{tpu_custom_call.1} parent=59 // pred_check_branch
          %425 = sbr.rel (%p423) target = $region68
        $region67: #{tpu_custom_call.1} parent=59 // pred_region
          %s426 = smul.u32 2, %s27
          %p427 = scmp.lt.s32.totalorder %s426, 3
          %s428 = scalar_select %p427, %s426, 3
          %s429 = smul.addr %s428, 8
          %s430 = scalar_lea.vmem %s1, %s429
          %s431 = smul.u32 2, %s27
        $region68: #{tpu_custom_call.1} parent=59 // pred_fallthru
          _
      $region60: #{tpu_custom_call.1} parent=5 // pred_fallthru
        _
      %p432 = scmp.le.s32.totalorder 1, %s27
      %p433 = scmp.lt.s32.totalorder %s27, 3
      %p434 = pnand %p432, %p433
      %p435 = pneg %p434
      // Predicated region
      $region69: #{tpu_custom_call.1} parent=5 // pred_check
        _
      $region70: #{tpu_custom_call.1} parent=5 // pred_check_branch
        %437 = sbr.rel (%p434) target = $region72
      $region71: #{tpu_custom_call.1} parent=5 // pred_region
        %s438 = ssub.s32 %s27, 1
        %s439 = smul.u32 16, %s32
        %p440 = scmp.lt.s32.totalorder %s439, 31
        %s441 = scalar_select %p440, %s439, 31
        %s442 = smul.addr %s441, 8
        %s443 = scalar_lea.vmem %s0, %s442
        %p444 = pneg %p53
        %p445 = pneg %p50
        %s446 = smul.u32 2, %s32
        %p447 = scmp.lt.s32.totalorder %s446, 3
        %s448 = scalar_select %p447, %s446, 3
        %s449 = smul.addr %s448, 8
        %s450 = scalar_lea.vmem %s1, %s449
        %p451 = pneg %p79
        %p452 = pneg %p76
        %p453 = pneg %p100
        %p454 = pneg %p97
        %p455 = pneg %p121
        %p456 = pneg %p118
        %p457 = pneg %p142
        %p458 = pneg %p139
        %p459 = pneg %p163
        %p460 = pneg %p160
        %p461 = pneg %p184
        %p462 = pneg %p181
        %p463 = pneg %p205
        %p464 = pneg %p202
        %p465 = pneg %p226
        %p466 = pneg %p223
        %p467 = pneg %p247
        %p468 = pneg %p244
        %p469 = pneg %p268
        %p470 = pneg %p265
        %p471 = pneg %p289
        %p472 = pneg %p286
        %p473 = pneg %p310
        %p474 = pneg %p307
        %p475 = pneg %p336
        %p476 = pneg %p333
        %s477 = sand.u32 %s323, 1
        %s478 = scalar_lea.sflag [#allocation5], %s477
        %s479 = sand.u32 %s323, 1
        %s480 = smul.addr %s479, 16
        %s481 = scalar_lea.vmem [#allocation4], %s480
        %p482 = pneg %p362
        %p483 = pneg %p359
        %s484 = sand.u32 %s349, 1
        %s485 = scalar_lea.sflag [#allocation7], %s484
        %s486 = sand.u32 %s349, 1
        %s487 = smul.addr %s486, 8
        %s488 = scalar_lea.vmem [#allocation6], %s487
        %s489 = smul.u32 16, %s32
        %p490 = scmp.lt.s32.totalorder %s489, 31
        %s491 = scalar_select %p490, %s489, 31
        %s492 = smul.addr %s491, 8
        %s493 = scalar_lea.vmem %s0, %s492
        %s494 = smul.u32 16, %s32
        %s495 = smul.u32 2, %s32
        %p496 = scmp.lt.s32.totalorder %s495, 3
        %s497 = scalar_select %p496, %s495, 3
        %s498 = smul.addr %s497, 8
        %s499 = scalar_lea.vmem %s1, %s498
        %s500 = smul.u32 2, %s32
        %s501 = smul.u32 2, %s32
        %s502 = smul.u32 2, %s32
        %v504 = vld [vmem:[%s2] sm:$0x3]
        %v505 = vld [vmem:[%s3] sm:$0xf]
        %v506 = vld [vmem:[%s4] sm:$0xf]
        %v507 = vld [vmem:[%s4 + $0x4] sm:$0xf]
        %v508 = vld [vmem:[%s4 + $0x8] sm:$0xf]
        %v509 = vld [vmem:[%s4 + $0xc] sm:$0xf]
        %v510 = vld [vmem:[%s5] sm:$0xf]
        %v511 = vld [vmem:[%s5 + $0x4] sm:$0xf]
        %v512 = vld [vmem:[%s5 + $0x8] sm:$0xf]
        %v513 = vld [vmem:[%s5 + $0xc] sm:$0xf]
        %v514 = vld [vmem:[%s6] sm:$0xf]
        %v515 = vld [vmem:[%s6 + $0x4] sm:$0xf]
        %v516 = vld [vmem:[%s6 + $0x8] sm:$0xf]
        %v517 = vld [vmem:[%s6 + $0xc] sm:$0xf]
        %v518 = vld [vmem:[%s7] sm:$0xf]
        %v519 = vld [vmem:[%s7 + $0x4] sm:$0xf]
        %v520 = vld [vmem:[%s7 + $0x8] sm:$0xf]
        %v521 = vld [vmem:[%s7 + $0xc] sm:$0xf]
        %v522 = vld [vmem:[%s8] sm:$0x3]
        %v523 = vld [vmem:[%s9] sm:$0xf]
        %v524 = vld [vmem:[%s9 + $0x4] sm:$0xf]
        %v525 = vld [vmem:[%s9 + $0x8] sm:$0xf]
        %v526 = vld [vmem:[%s9 + $0xc] sm:$0xf]
        %v527 = vld [vmem:[%s10] sm:$0x1]
        %v528 = vld [vmem:[%s11] sm:$0xf]
        %v529 = vld [vmem:[%s11 + $0x4] sm:$0xf]
        %v530 = vld [vmem:[%s11 + $0x8] sm:$0xf]
        %v531 = vld [vmem:[%s11 + $0xc] sm:$0xf]
        %v532 = vld [vmem:[%s11 + $0x10] sm:$0xf]
        %v533 = vld [vmem:[%s11 + $0x14] sm:$0xf]
        %v534 = vld [vmem:[%s11 + $0x18] sm:$0xf]
        %v535 = vld [vmem:[%s11 + $0x1c] sm:$0xf]
        %v536 = vld [vmem:[%s11 + $0x20] sm:$0xf]
        %v537 = vld [vmem:[%s11 + $0x24] sm:$0xf]
        %v538 = vld [vmem:[%s11 + $0x28] sm:$0xf]
        %v539 = vld [vmem:[%s11 + $0x2c] sm:$0xf]
        %v540 = vld [vmem:[%s11 + $0x30] sm:$0xf]
        %v541 = vld [vmem:[%s11 + $0x34] sm:$0xf]
        %v542 = vld [vmem:[%s11 + $0x38] sm:$0xf]
        %v543 = vld [vmem:[%s11 + $0x3c] sm:$0xf]
        %v544 = vld [vmem:[%s12] sm:$0x1]
        %v545 = vlaneseq
        %v546 = vand.u32 %v545, 127
        %vm547 = vcmp.lt.s32.totalorder %v546, 16
        %v548 = vsel %vm547, 1, 0
        %v549 = vcvt.s32.f32 %v548
        %v550 = vlaneseq
        %v551 = vshrl.u32 %v550, 7
        %v552 = vadd.s32 %v551, 8
        %vm553 = vcmp.lt.s32.totalorder %v551, 11
        %vm554 = vcmp.lt.s32.totalorder %v552, 11
        %v555 = vsel %vm553, 0.0, -1e+09
        %v556 = vsel %vm554, 0.0, -1e+09
        %v557 = vld [vmem:[%s493] sm:$0xff]
        %v558 = vld [vmem:[%s493 + $0x8] sm:$0xff]
        %v559 = vld [vmem:[%s493 + $0x10] sm:$0xff]
        %v560 = vld [vmem:[%s493 + $0x18] sm:$0xff]
        %v561 = vld [vmem:[%s493 + $0x20] sm:$0xff]
        %v562 = vld [vmem:[%s493 + $0x28] sm:$0xff]
        %v563 = vld [vmem:[%s493 + $0x30] sm:$0xff]
        %v564 = vld [vmem:[%s493 + $0x38] sm:$0xff]
        %v565 = vld [vmem:[%s493 + $0x40] sm:$0xff]
        %v566 = vld [vmem:[%s493 + $0x48] sm:$0xff]
        %v567 = vld [vmem:[%s493 + $0x50] sm:$0xff]
        %v568 = vld [vmem:[%s493 + $0x58] sm:$0xff]
        %v569 = vld [vmem:[%s493 + $0x60] sm:$0xff]
        %v570 = vld [vmem:[%s493 + $0x68] sm:$0xff]
        %v571 = vld [vmem:[%s493 + $0x70] sm:$0xff]
        %v572 = vld [vmem:[%s493 + $0x78] sm:$0xff]
        %vm573 = vcmask 261120
        %v574 = vsel %vm573, %v557, 0.0
        %575 = vadd.xlane.f32.xlu0 %v574
        %v576 = vpop.xlane.xlu0 %575
        %v577 = vsel %vm573, %v558, 0.0
        %578 = vadd.xlane.f32.xlu0 %v577
        %v579 = vpop.xlane.xlu0 %578
        %v580 = vsel %vm573, %v559, 0.0
        %581 = vadd.xlane.f32.xlu0 %v580
        %v582 = vpop.xlane.xlu0 %581
        %v583 = vsel %vm573, %v560, 0.0
        %584 = vadd.xlane.f32.xlu0 %v583
        %v585 = vpop.xlane.xlu0 %584
        %v586 = vsel %vm573, %v561, 0.0
        %587 = vadd.xlane.f32.xlu0 %v586
        %v588 = vpop.xlane.xlu0 %587
        %v589 = vsel %vm573, %v562, 0.0
        %590 = vadd.xlane.f32.xlu0 %v589
        %v591 = vpop.xlane.xlu0 %590
        %v592 = vsel %vm573, %v563, 0.0
        %593 = vadd.xlane.f32.xlu0 %v592
        %v594 = vpop.xlane.xlu0 %593
        %v595 = vsel %vm573, %v564, 0.0
        %596 = vadd.xlane.f32.xlu0 %v595
        %v597 = vpop.xlane.xlu0 %596
        %v598 = vsel %vm573, %v565, 0.0
        %599 = vadd.xlane.f32.xlu0 %v598
        %v600 = vpop.xlane.xlu0 %599
        %v601 = vsel %vm573, %v566, 0.0
        %602 = vadd.xlane.f32.xlu0 %v601
        %v603 = vpop.xlane.xlu0 %602
        %v604 = vsel %vm573, %v567, 0.0
        %605 = vadd.xlane.f32.xlu0 %v604
        %v606 = vpop.xlane.xlu0 %605
        %v607 = vsel %vm573, %v568, 0.0
        %608 = vadd.xlane.f32.xlu0 %v607
        %v609 = vpop.xlane.xlu0 %608
        %v610 = vsel %vm573, %v569, 0.0
        %611 = vadd.xlane.f32.xlu0 %v610
        %v612 = vpop.xlane.xlu0 %611
        %v613 = vsel %vm573, %v570, 0.0
        %614 = vadd.xlane.f32.xlu0 %v613
        %v615 = vpop.xlane.xlu0 %614
        %v616 = vsel %vm573, %v571, 0.0
        %617 = vadd.xlane.f32.xlu0 %v616
        %v618 = vpop.xlane.xlu0 %617
        %v619 = vsel %vm573, %v572, 0.0
        %620 = vadd.xlane.f32.xlu0 %v619
        %v621 = vpop.xlane.xlu0 %620
        %v622 = vrcp.pop 32.0
        %v623 = vmul.f32 %v576, %v622
        %v624 = vmul.f32 %v579, %v622
        %v625 = vmul.f32 %v582, %v622
        %v626 = vmul.f32 %v585, %v622
        %v627 = vmul.f32 %v588, %v622
        %v628 = vmul.f32 %v591, %v622
        %v629 = vmul.f32 %v594, %v622
        %v630 = vmul.f32 %v597, %v622
        %v631 = vmul.f32 %v600, %v622
        %v632 = vmul.f32 %v603, %v622
        %v633 = vmul.f32 %v606, %v622
        %v634 = vmul.f32 %v609, %v622
        %v635 = vmul.f32 %v612, %v622
        %v636 = vmul.f32 %v615, %v622
        %v637 = vmul.f32 %v618, %v622
        %v638 = vmul.f32 %v621, %v622
        %v639 = vsub.f32 %v557, %v623
        %v640 = vsub.f32 %v558, %v624
        %v641 = vsub.f32 %v559, %v625
        %v642 = vsub.f32 %v560, %v626
        %v643 = vsub.f32 %v561, %v627
        %v644 = vsub.f32 %v562, %v628
        %v645 = vsub.f32 %v563, %v629
        %v646 = vsub.f32 %v564, %v630
        %v647 = vsub.f32 %v565, %v631
        %v648 = vsub.f32 %v566, %v632
        %v649 = vsub.f32 %v567, %v633
        %v650 = vsub.f32 %v568, %v634
        %v651 = vsub.f32 %v569, %v635
        %v652 = vsub.f32 %v570, %v636
        %v653 = vsub.f32 %v571, %v637
        %v654 = vsub.f32 %v572, %v638
        %v655 = vmul.f32 %v639, %v639
        %v656 = vmul.f32 %v640, %v640
        %v657 = vmul.f32 %v641, %v641
        %v658 = vmul.f32 %v642, %v642
        %v659 = vmul.f32 %v643, %v643
        %v660 = vmul.f32 %v644, %v644
        %v661 = vmul.f32 %v645, %v645
        %v662 = vmul.f32 %v646, %v646
        %v663 = vmul.f32 %v647, %v647
        %v664 = vmul.f32 %v648, %v648
        %v665 = vmul.f32 %v649, %v649
        %v666 = vmul.f32 %v650, %v650
        %v667 = vmul.f32 %v651, %v651
        %v668 = vmul.f32 %v652, %v652
        %v669 = vmul.f32 %v653, %v653
        %v670 = vmul.f32 %v654, %v654
        %v671 = vsel %vm573, %v655, 0.0
        %672 = vadd.xlane.f32.xlu0 %v671
        %v673 = vpop.xlane.xlu0 %672
        %v674 = vsel %vm573, %v656, 0.0
        %675 = vadd.xlane.f32.xlu0 %v674
        %v676 = vpop.xlane.xlu0 %675
        %v677 = vsel %vm573, %v657, 0.0
        %678 = vadd.xlane.f32.xlu0 %v677
        %v679 = vpop.xlane.xlu0 %678
        %v680 = vsel %vm573, %v658, 0.0
        %681 = vadd.xlane.f32.xlu0 %v680
        %v682 = vpop.xlane.xlu0 %681
        %v683 = vsel %vm573, %v659, 0.0
        %684 = vadd.xlane.f32.xlu0 %v683
        %v685 = vpop.xlane.xlu0 %684
        %v686 = vsel %vm573, %v660, 0.0
        %687 = vadd.xlane.f32.xlu0 %v686
        %v688 = vpop.xlane.xlu0 %687
        %v689 = vsel %vm573, %v661, 0.0
        %690 = vadd.xlane.f32.xlu0 %v689
        %v691 = vpop.xlane.xlu0 %690
        %v692 = vsel %vm573, %v662, 0.0
        %693 = vadd.xlane.f32.xlu0 %v692
        %v694 = vpop.xlane.xlu0 %693
        %v695 = vsel %vm573, %v663, 0.0
        %696 = vadd.xlane.f32.xlu0 %v695
        %v697 = vpop.xlane.xlu0 %696
        %v698 = vsel %vm573, %v664, 0.0
        %699 = vadd.xlane.f32.xlu0 %v698
        %v700 = vpop.xlane.xlu0 %699
        %v701 = vsel %vm573, %v665, 0.0
        %702 = vadd.xlane.f32.xlu0 %v701
        %v703 = vpop.xlane.xlu0 %702
        %v704 = vsel %vm573, %v666, 0.0
        %705 = vadd.xlane.f32.xlu0 %v704
        %v706 = vpop.xlane.xlu0 %705
        %v707 = vsel %vm573, %v667, 0.0
        %708 = vadd.xlane.f32.xlu0 %v707
        %v709 = vpop.xlane.xlu0 %708
        %v710 = vsel %vm573, %v668, 0.0
        %711 = vadd.xlane.f32.xlu0 %v710
        %v712 = vpop.xlane.xlu0 %711
        %v713 = vsel %vm573, %v669, 0.0
        %714 = vadd.xlane.f32.xlu0 %v713
        %v715 = vpop.xlane.xlu0 %714
        %v716 = vsel %vm573, %v670, 0.0
        %717 = vadd.xlane.f32.xlu0 %v716
        %v718 = vpop.xlane.xlu0 %717
        %v719 = vmul.f32 %v673, %v622
        %v720 = vmul.f32 %v676, %v622
        %v721 = vmul.f32 %v679, %v622
        %v722 = vmul.f32 %v682, %v622
        %v723 = vmul.f32 %v685, %v622
        %v724 = vmul.f32 %v688, %v622
        %v725 = vmul.f32 %v691, %v622
        %v726 = vmul.f32 %v694, %v622
        %v727 = vmul.f32 %v697, %v622
        %v728 = vmul.f32 %v700, %v622
        %v729 = vmul.f32 %v703, %v622
        %v730 = vmul.f32 %v706, %v622
        %v731 = vmul.f32 %v709, %v622
        %v732 = vmul.f32 %v712, %v622
        %v733 = vmul.f32 %v715, %v622
        %v734 = vmul.f32 %v718, %v622
        %v735 = vadd.f32 %v719, 1e-05
        %v736 = vadd.f32 %v720, 1e-05
        %v737 = vadd.f32 %v721, 1e-05
        %v738 = vadd.f32 %v722, 1e-05
        %v739 = vadd.f32 %v723, 1e-05
        %v740 = vadd.f32 %v724, 1e-05
        %v741 = vadd.f32 %v725, 1e-05
        %v742 = vadd.f32 %v726, 1e-05
        %v743 = vadd.f32 %v727, 1e-05
        %v744 = vadd.f32 %v728, 1e-05
        %v745 = vadd.f32 %v729, 1e-05
        %v746 = vadd.f32 %v730, 1e-05
        %v747 = vadd.f32 %v731, 1e-05
        %v748 = vadd.f32 %v732, 1e-05
        %v749 = vadd.f32 %v733, 1e-05
        %v750 = vadd.f32 %v734, 1e-05
        %v751 = vrsqrt.pop %v735
        %v752 = vrsqrt.pop %v736
        %v753 = vrsqrt.pop %v737
        %v754 = vrsqrt.pop %v738
        %v755 = vrsqrt.pop %v739
        %v756 = vrsqrt.pop %v740
        %v757 = vrsqrt.pop %v741
        %v758 = vrsqrt.pop %v742
        %v759 = vrsqrt.pop %v743
        %v760 = vrsqrt.pop %v744
        %v761 = vrsqrt.pop %v745
        %v762 = vrsqrt.pop %v746
        %v763 = vrsqrt.pop %v747
        %v764 = vrsqrt.pop %v748
        %v765 = vrsqrt.pop %v749
        %v766 = vrsqrt.pop %v750
        %v767 = vmul.f32 %v639, %v751
        %v768 = vmul.f32 %v640, %v752
        %v769 = vmul.f32 %v641, %v753
        %v770 = vmul.f32 %v642, %v754
        %v771 = vmul.f32 %v643, %v755
        %v772 = vmul.f32 %v644, %v756
        %v773 = vmul.f32 %v645, %v757
        %v774 = vmul.f32 %v646, %v758
        %v775 = vmul.f32 %v647, %v759
        %v776 = vmul.f32 %v648, %v760
        %v777 = vmul.f32 %v649, %v761
        %v778 = vmul.f32 %v650, %v762
        %v779 = vmul.f32 %v651, %v763
        %v780 = vmul.f32 %v652, %v764
        %v781 = vmul.f32 %v653, %v765
        %v782 = vmul.f32 %v654, %v766
        %v783 = vlaneseq
        %v784 = vshrl.u32 %v783, 7
        %v785 = vsub.s32 0, %v784
        %v786 = vrot.slane %v504, %v785
        %v787 = vmul.f32 %v767, %v786
        %v788 = vmul.f32 %v768, %v786
        %v789 = vmul.f32 %v769, %v786
        %v790 = vmul.f32 %v770, %v786
        %v791 = vmul.f32 %v771, %v786
        %v792 = vmul.f32 %v772, %v786
        %v793 = vmul.f32 %v773, %v786
        %v794 = vmul.f32 %v774, %v786
        %v795 = vmul.f32 %v775, %v786
        %v796 = vmul.f32 %v776, %v786
        %v797 = vmul.f32 %v777, %v786
        %v798 = vmul.f32 %v778, %v786
        %v799 = vmul.f32 %v779, %v786
        %v800 = vmul.f32 %v780, %v786
        %v801 = vmul.f32 %v781, %v786
        %v802 = vmul.f32 %v782, %v786
        %v803 = vlaneseq
        %v804 = vshrl.u32 %v803, 7
        %v805 = vsub.s32 1, %v804
        %v806 = vrot.slane %v504, %v805
        %v807 = vadd.f32 %v787, %v806
        %v808 = vadd.f32 %v788, %v806
        %v809 = vadd.f32 %v789, %v806
        %v810 = vadd.f32 %v790, %v806
        %v811 = vadd.f32 %v791, %v806
        %v812 = vadd.f32 %v792, %v806
        %v813 = vadd.f32 %v793, %v806
        %v814 = vadd.f32 %v794, %v806
        %v815 = vadd.f32 %v795, %v806
        %v816 = vadd.f32 %v796, %v806
        %v817 = vadd.f32 %v797, %v806
        %v818 = vadd.f32 %v798, %v806
        %v819 = vadd.f32 %v799, %v806
        %v820 = vadd.f32 %v800, %v806
        %v821 = vadd.f32 %v801, %v806
        %v822 = vadd.f32 %v802, %v806
        %v823 = vpack.c.bf16 %v808, %v807
        %v824 = vpack.c.bf16 %v810, %v809
        %v825 = vpack.c.bf16 %v812, %v811
        %v826 = vpack.c.bf16 %v814, %v813
        %v827 = vpack.c.bf16 %v816, %v815
        %v828 = vpack.c.bf16 %v818, %v817
        %v829 = vpack.c.bf16 %v820, %v819
        %v830 = vpack.c.bf16 %v822, %v821
        %v835 = vunpack.c.l.b16 %v506
        %v836 = vunpack.c.l.b16 %v507
        %v837 = vunpack.c.l.b16 %v508
        %v838 = vunpack.c.l.b16 %v509
        %v839 = vpack.c.b16 %v836, %v835
        %v840 = vpack.c.b16 %v838, %v837
        %v844 = vsel %vm573, %v823, 0
        %v847 = vsel %vm573, %v824, 0
        %v850 = vsel %vm573, %v825, 0
        %v853 = vsel %vm573, %v826, 0
        %v856 = vsel %vm573, %v827, 0
        %v859 = vsel %vm573, %v828, 0
        %v862 = vsel %vm573, %v829, 0
        %v865 = vsel %vm573, %v830, 0
        %867 = vmatprep.subr.bf16.mxu0 0
        %868 = vmatpush1.bf16.msra.mxu0 %v839
        %869 = vmatprep.subr.bf16.mxu0 0
        %870 = vmatpush1.bf16.msra.mxu0 %v840
        %871 = vmatprep.subr.bf16.mxu0 0
        %872 = vmatpush1.bf16.msra.mxu0 0
        %873 = vmatprep.subr.bf16.mxu0 0
        %874 = vmatpush1.bf16.msra.mxu0 0
        %875 = vmatprep.subr.bf16.mxu0 0
        %876 = vmatpush1.bf16.msra.mxu0 0
        %877 = vmatprep.subr.bf16.mxu0 0
        %878 = vmatpush1.bf16.msra.mxu0 0
        %879 = vmatprep.subr.bf16.mxu0 0
        %880 = vmatpush1.bf16.msra.mxu0 0
        %881 = vmatprep.subr.bf16.mxu0 0
        %882 = vmatpush1.bf16.msra.mxu0 0
        %883 = vmatprep.subr.bf16.mxu0 0
        %884 = vmatpush1.bf16.msra.mxu0 0
        %885 = vmatprep.subr.bf16.mxu0 0
        %886 = vmatpush1.bf16.msra.mxu0 0
        %887 = vmatprep.subr.bf16.mxu0 0
        %888 = vmatpush1.bf16.msra.mxu0 0
        %889 = vmatprep.subr.bf16.mxu0 0
        %890 = vmatpush1.bf16.msra.mxu0 0
        %891 = vmatprep.subr.bf16.mxu0 0
        %892 = vmatpush1.bf16.msra.mxu0 0
        %893 = vmatprep.subr.bf16.mxu0 0
        %894 = vmatpush1.bf16.msra.mxu0 0
        %895 = vmatprep.subr.bf16.mxu0 0
        %896 = vmatpush1.bf16.msra.mxu0 0
        %897 = vmatprep.subr.bf16.mxu0 0
        %898 = vmatpush1.bf16.msra.mxu0 0
        %899 = vmatprep.mubr.bf16.mxu0 0
        %900 = vmatmul.mubr.bf16.gmra.mrb[0].mxu0 %v844
        %v901 = vpop.f32.mrb[0].mxu0
        %v902 = vadd.f32 0.0, %v901
        %v903 = vpop.f32.mrb[0].mxu0
        %v904 = vpop.f32.mrb[0].mxu0
        %v905 = vadd.f32 0.0, %v904
        %v906 = vpop.f32.mrb[0].mxu0
        %907 = vmatprep.mubr.bf16.mxu0 0
        %908 = vmatmul.mubr.bf16.gmra.mrb[0].mxu0 %v847
        %v909 = vpop.f32.mrb[0].mxu0
        %v910 = vadd.f32 0.0, %v909
        %v911 = vpop.f32.mrb[0].mxu0
        %v912 = vpop.f32.mrb[0].mxu0
        %v913 = vadd.f32 0.0, %v912
        %v914 = vpop.f32.mrb[0].mxu0
        %915 = vmatprep.mubr.bf16.mxu0 0
        %916 = vmatmul.mubr.bf16.gmra.mrb[0].mxu0 %v850
        %v917 = vpop.f32.mrb[0].mxu0
        %v918 = vadd.f32 0.0, %v917
        %v919 = vpop.f32.mrb[0].mxu0
        %v920 = vpop.f32.mrb[0].mxu0
        %v921 = vadd.f32 0.0, %v920
        %v922 = vpop.f32.mrb[0].mxu0
        %923 = vmatprep.mubr.bf16.mxu0 0
        %924 = vmatmul.mubr.bf16.gmra.mrb[0].mxu0 %v853
        %v925 = vpop.f32.mrb[0].mxu0
        %v926 = vadd.f32 0.0, %v925
        %v927 = vpop.f32.mrb[0].mxu0
        %v928 = vpop.f32.mrb[0].mxu0
        %v929 = vadd.f32 0.0, %v928
        %v930 = vpop.f32.mrb[0].mxu0
        %931 = vmatprep.mubr.bf16.mxu0 0
        %932 = vmatmul.mubr.bf16.gmra.mrb[0].mxu0 %v856
        %v933 = vpop.f32.mrb[0].mxu0
        %v934 = vadd.f32 0.0, %v933
        %v935 = vpop.f32.mrb[0].mxu0
        %v936 = vpop.f32.mrb[0].mxu0
        %v937 = vadd.f32 0.0, %v936
        %v938 = vpop.f32.mrb[0].mxu0
        %939 = vmatprep.mubr.bf16.mxu0 0
        %940 = vmatmul.mubr.bf16.gmra.mrb[0].mxu0 %v859
        %v941 = vpop.f32.mrb[0].mxu0
        %v942 = vadd.f32 0.0, %v941
        %v943 = vpop.f32.mrb[0].mxu0
        %v944 = vpop.f32.mrb[0].mxu0
        %v945 = vadd.f32 0.0, %v944
        %v946 = vpop.f32.mrb[0].mxu0
        %947 = vmatprep.mubr.bf16.mxu0 0
        %948 = vmatmul.mubr.bf16.gmra.mrb[0].mxu0 %v862
        %v949 = vpop.f32.mrb[0].mxu0
        %v950 = vadd.f32 0.0, %v949
        %v951 = vpop.f32.mrb[0].mxu0
        %v952 = vpop.f32.mrb[0].mxu0
        %v953 = vadd.f32 0.0, %v952
        %v954 = vpop.f32.mrb[0].mxu0
        %955 = vmatprep.mubr.bf16.mxu0 0
        %956 = vmatmul.mubr.bf16.gmra.mrb[0].mxu0 %v865
        %v957 = vpop.f32.mrb[0].mxu0
        %v958 = vadd.f32 0.0, %v957
        %v959 = vpop.f32.mrb[0].mxu0
        %v960 = vpop.f32.mrb[0].mxu0
        %v961 = vadd.f32 0.0, %v960
        %v962 = vpop.f32.mrb[0].mxu0
        %963 = vdwg.mxu0
        %v964 = vpack.c.bf16 %v905, %v902
        %v965 = vpack.c.bf16 %v913, %v910
        %v966 = vpack.c.bf16 %v921, %v918
        %v967 = vpack.c.bf16 %v929, %v926
        %v968 = vpack.c.bf16 %v937, %v934
        %v969 = vpack.c.bf16 %v945, %v942
        %v970 = vpack.c.bf16 %v953, %v950
        %v971 = vpack.c.bf16 %v961, %v958
        %972 = vst.msk [vmem:[#allocation2] sm:$0xff] %vm573, %v964
        %973 = vst.msk [vmem:[#allocation2 + $0x8] sm:$0xff] %vm573, %v965
        %974 = vst.msk [vmem:[#allocation2 + $0x10] sm:$0xff] %vm573, %v966
        %975 = vst.msk [vmem:[#allocation2 + $0x18] sm:$0xff] %vm573, %v967
        %976 = vst.msk [vmem:[#allocation2 + $0x20] sm:$0xff] %vm573, %v968
        %977 = vst.msk [vmem:[#allocation2 + $0x28] sm:$0xff] %vm573, %v969
        %978 = vst.msk [vmem:[#allocation2 + $0x30] sm:$0xff] %vm573, %v970
        %979 = vst.msk [vmem:[#allocation2 + $0x38] sm:$0xff] %vm573, %v971
        %988 = vrot.lane.b32.xlu0 %v964, 96
        %v989 = vpop.permute.xlu0 %988
        %990 = vrot.lane.b32.xlu0 %v965, 96
        %v991 = vpop.permute.xlu0 %990
        %992 = vrot.lane.b32.xlu0 %v966, 96
        %v993 = vpop.permute.xlu0 %992
        %994 = vrot.lane.b32.xlu0 %v967, 96
        %v995 = vpop.permute.xlu0 %994
        %996 = vrot.lane.b32.xlu0 %v968, 96
        %v997 = vpop.permute.xlu0 %996
        %998 = vrot.lane.b32.xlu0 %v969, 96
        %v999 = vpop.permute.xlu0 %998
        %1000 = vrot.lane.b32.xlu0 %v970, 96
        %v1001 = vpop.permute.xlu0 %1000
        %1002 = vrot.lane.b32.xlu0 %v971, 96
        %v1003 = vpop.permute.xlu0 %1002
        %1012 = vst.msk [vmem:[#allocation3] sm:$0xff] %vm573, %v989
        %1013 = vst.msk [vmem:[#allocation3 + $0x8] sm:$0xff] %vm573, %v991
        %1014 = vst.msk [vmem:[#allocation3 + $0x10] sm:$0xff] %vm573, %v993
        %1015 = vst.msk [vmem:[#allocation3 + $0x18] sm:$0xff] %vm573, %v995
        %1016 = vst.msk [vmem:[#allocation3 + $0x20] sm:$0xff] %vm573, %v997
        %1017 = vst.msk [vmem:[#allocation3 + $0x28] sm:$0xff] %vm573, %v999
        %1018 = vst.msk [vmem:[#allocation3 + $0x30] sm:$0xff] %vm573, %v1001
        %1019 = vst.msk [vmem:[#allocation3 + $0x38] sm:$0xff] %vm573, %v1003
        %v1020 = vld [vmem:[#allocation2] sm:$0xff]
        %v1021 = vld [vmem:[#allocation2 + $0x8] sm:$0xff]
        %v1022 = vld [vmem:[#allocation2 + $0x10] sm:$0xff]
        %v1023 = vld [vmem:[#allocation2 + $0x18] sm:$0xff]
        %v1024 = vld [vmem:[#allocation2 + $0x20] sm:$0xff]
        %v1025 = vld [vmem:[#allocation2 + $0x28] sm:$0xff]
        %v1026 = vld [vmem:[#allocation2 + $0x30] sm:$0xff]
        %v1027 = vld [vmem:[#allocation2 + $0x38] sm:$0xff]
        %v1028 = vld [vmem:[#allocation3] sm:$0xff]
        %v1029 = vld [vmem:[#allocation3 + $0x8] sm:$0xff]
        %v1030 = vld [vmem:[#allocation3 + $0x10] sm:$0xff]
        %v1031 = vld [vmem:[#allocation3 + $0x18] sm:$0xff]
        %v1032 = vld [vmem:[#allocation3 + $0x20] sm:$0xff]
        %v1033 = vld [vmem:[#allocation3 + $0x28] sm:$0xff]
        %v1034 = vld [vmem:[#allocation3 + $0x30] sm:$0xff]
        %v1035 = vld [vmem:[#allocation3 + $0x38] sm:$0xff]
        %v1036 = vld [vmem:[%s499] sm:$0xff]
        %v1037 = vld [vmem:[%s499 + $0x8] sm:$0xff]
        %v1038 = vsel %vm573, %v1036, 0.0
        %1039 = vadd.xlane.f32.xlu0 %v1038
        %v1040 = vpop.xlane.xlu0 %1039
        %v1041 = vsel %vm573, %v1037, 0.0
        %1042 = vadd.xlane.f32.xlu0 %v1041
        %v1043 = vpop.xlane.xlu0 %1042
        %v1044 = vmul.f32 %v1040, %v622
        %v1045 = vmul.f32 %v1043, %v622
        %v1046 = vsub.f32 %v1036, %v1044
        %v1047 = vsub.f32 %v1037, %v1045
        %v1048 = vmul.f32 %v1046, %v1046
        %v1049 = vmul.f32 %v1047, %v1047
        %v1050 = vsel %vm573, %v1048, 0.0
        %1051 = vadd.xlane.f32.xlu0 %v1050
        %v1052 = vpop.xlane.xlu0 %1051
        %v1053 = vsel %vm573, %v1049, 0.0
        %1054 = vadd.xlane.f32.xlu0 %v1053
        %v1055 = vpop.xlane.xlu0 %1054
        %v1056 = vmul.f32 %v1052, %v622
        %v1057 = vmul.f32 %v1055, %v622
        %v1058 = vadd.f32 %v1056, 1e-05
        %v1059 = vadd.f32 %v1057, 1e-05
        %v1060 = vrsqrt.pop %v1058
        %v1061 = vrsqrt.pop %v1059
        %v1062 = vmul.f32 %v1046, %v1060
        %v1063 = vmul.f32 %v1047, %v1061
        %v1064 = vlaneseq
        %v1065 = vshrl.u32 %v1064, 7
        %v1066 = vsub.s32 0, %v1065
        %v1067 = vrot.slane %v505, %v1066
        %v1068 = vmul.f32 %v1062, %v1067
        %v1069 = vmul.f32 %v1063, %v1067
        %v1070 = vlaneseq
        %v1071 = vshrl.u32 %v1070, 7
        %v1072 = vsub.s32 1, %v1071
        %v1073 = vrot.slane %v505, %v1072
        %v1074 = vadd.f32 %v1068, %v1073
        %v1075 = vadd.f32 %v1069, %v1073
        %v1076 = vpack.c.bf16 %v1075, %v1074
        %v1081 = vunpack.c.l.b16 %v510
        %v1082 = vunpack.c.l.b16 %v511
        %v1083 = vunpack.c.l.b16 %v512
        %v1084 = vunpack.c.l.b16 %v513
        %v1085 = vpack.c.b16 %v1082, %v1081
        %v1086 = vpack.c.b16 %v1084, %v1083
        %v1090 = vsel %vm573, %v1076, 0
        %1092 = vmatprep.subr.bf16.mxu0 0
        %1093 = vmatpush1.bf16.msra.mxu0 %v1085
        %1094 = vmatprep.subr.bf16.mxu0 0
        %1095 = vmatpush1.bf16.msra.mxu0 %v1086
        %1096 = vmatprep.subr.bf16.mxu0 0
        %1097 = vmatpush1.bf16.msra.mxu0 0
        %1098 = vmatprep.subr.bf16.mxu0 0
        %1099 = vmatpush1.bf16.msra.mxu0 0
        %1100 = vmatprep.subr.bf16.mxu0 0
        %1101 = vmatpush1.bf16.msra.mxu0 0
        %1102 = vmatprep.subr.bf16.mxu0 0
        %1103 = vmatpush1.bf16.msra.mxu0 0
        %1104 = vmatprep.subr.bf16.mxu0 0
        %1105 = vmatpush1.bf16.msra.mxu0 0
        %1106 = vmatprep.subr.bf16.mxu0 0
        %1107 = vmatpush1.bf16.msra.mxu0 0
        %1108 = vmatprep.subr.bf16.mxu0 0
        %1109 = vmatpush1.bf16.msra.mxu0 0
        %1110 = vmatprep.subr.bf16.mxu0 0
        %1111 = vmatpush1.bf16.msra.mxu0 0
        %1112 = vmatprep.subr.bf16.mxu0 0
        %1113 = vmatpush1.bf16.msra.mxu0 0
        %1114 = vmatprep.subr.bf16.mxu0 0
        %1115 = vmatpush1.bf16.msra.mxu0 0
        %1116 = vmatprep.subr.bf16.mxu0 0
        %1117 = vmatpush1.bf16.msra.mxu0 0
        %1118 = vmatprep.subr.bf16.mxu0 0
        %1119 = vmatpush1.bf16.msra.mxu0 0
        %1120 = vmatprep.subr.bf16.mxu0 0
        %1121 = vmatpush1.bf16.msra.mxu0 0
        %1122 = vmatprep.subr.bf16.mxu0 0
        %1123 = vmatpush1.bf16.msra.mxu0 0
        %1124 = vmatprep.mubr.bf16.mxu0 0
        %1125 = vmatmul.mubr.bf16.gmra.mrb[0].mxu0 %v1090
        %v1126 = vpop.f32.mrb[0].mxu0
        %v1127 = vadd.f32 0.0, %v1126
        %v1128 = vpop.f32.mrb[0].mxu0
        %v1129 = vpop.f32.mrb[0].mxu0
        %v1130 = vadd.f32 0.0, %v1129
        %v1131 = vpop.f32.mrb[0].mxu0
        %1132 = vdwg.mxu0
        %v1133 = vpack.c.bf16 %v1130, %v1127
        %v1135 = vsel %vm573, %v1133, 0
        %v1138 = vsel %vm573, %v1020, 0
        %v1141 = vsel %vm573, %v1021, 0
        %v1144 = vsel %vm573, %v1022, 0
        %v1147 = vsel %vm573, %v1023, 0
        %v1150 = vsel %vm573, %v1024, 0
        %v1153 = vsel %vm573, %v1025, 0
        %v1156 = vsel %vm573, %v1026, 0
        %v1159 = vsel %vm573, %v1027, 0
        %1161 = vmatprep.subr.bf16.mxu0 0
        %1162 = vmatpush1.bf16.xpose.msra.mxu0 %v1138
        %1163 = vmatprep.subr.bf16.mxu0 0
        %1164 = vmatpush1.bf16.xpose.msra.mxu0 %v1141
        %1165 = vmatprep.subr.bf16.mxu0 0
        %1166 = vmatpush1.bf16.xpose.msra.mxu0 %v1144
        %1167 = vmatprep.subr.bf16.mxu0 0
        %1168 = vmatpush1.bf16.xpose.msra.mxu0 %v1147
        %1169 = vmatprep.subr.bf16.mxu0 0
        %1170 = vmatpush1.bf16.xpose.msra.mxu0 %v1150
        %1171 = vmatprep.subr.bf16.mxu0 0
        %1172 = vmatpush1.bf16.xpose.msra.mxu0 %v1153
        %1173 = vmatprep.subr.bf16.mxu0 0
        %1174 = vmatpush1.bf16.xpose.msra.mxu0 %v1156
        %1175 = vmatprep.subr.bf16.mxu0 0
        %1176 = vmatpush1.bf16.xpose.msra.mxu0 %v1159
        %1177 = vmatprep.subr.bf16.mxu0 0
        %1178 = vmatpush1.bf16.xpose.msra.mxu0 0
        %1179 = vmatprep.subr.bf16.mxu0 0
        %1180 = vmatpush1.bf16.xpose.msra.mxu0 0
        %1181 = vmatprep.subr.bf16.mxu0 0
        %1182 = vmatpush1.bf16.xpose.msra.mxu0 0
        %1183 = vmatprep.subr.bf16.mxu0 0
        %1184 = vmatpush1.bf16.xpose.msra.mxu0 0
        %1185 = vmatprep.subr.bf16.mxu0 0
        %1186 = vmatpush1.bf16.xpose.msra.mxu0 0
        %1187 = vmatprep.subr.bf16.mxu0 0
        %1188 = vmatpush1.bf16.xpose.msra.mxu0 0
        %1189 = vmatprep.subr.bf16.mxu0 0
        %1190 = vmatpush1.bf16.xpose.msra.mxu0 0
        %1191 = vmatprep.subr.bf16.mxu0 0
        %1192 = vmatpush1.bf16.xpose.msra.mxu0 0
        %1193 = vmatprep.mubr.bf16.mxu0 0
        %1194 = vmatmul.mubr.bf16.gmra.mrb[0].mxu0 %v1135
        %v1195 = vpop.f32.mrb[0].mxu0
        %v1196 = vadd.f32 %v555, %v1195
        %v1197 = vpop.f32.mrb[0].mxu0
        %v1198 = vpop.f32.mrb[0].mxu0
        %v1199 = vadd.f32 %v556, %v1198
        %v1200 = vpop.f32.mrb[0].mxu0
        %1201 = vdwg.mxu0
        %v1202 = vmax.f32 %v1196, %v1199
        %v1203 = vrot.slane %v1202, 4
        %v1204 = vmax.f32 %v1202, %v1203
        %v1205 = vrot.slane %v1204, 2
        %v1206 = vmax.f32 %v1204, %v1205
        %v1207 = vrot.slane %v1206, 1
        %v1208 = vmax.f32 %v1206, %v1207
        %v1209 = vsub.f32 %v1196, %v1208
        %v1210 = vsub.f32 %v1199, %v1208
        %v1211 = vmul.f32 %v1209, 1.442695
        %v1212 = vpow.pop %v1211
        %v1213 = vmul.f32 %v1210, 1.442695
        %v1214 = vpow.pop %v1213
        %v1215 = vadd.f32 %v1212, %v1214
        %v1216 = vrot.slane %v1215, 4
        %v1217 = vadd.f32 %v1215, %v1216
        %v1218 = vrot.slane %v1217, 2
        %v1219 = vadd.f32 %v1217, %v1218
        %v1220 = vrot.slane %v1219, 1
        %v1221 = vadd.f32 %v1219, %v1220
        %v1222 = vrcp.pop %v1221
        %v1223 = vmul.f32 %v1212, %v1222
        %v1224 = vmul.f32 %v1214, %v1222
        %v1225 = vmul.f32 %v1223, %v549
        %v1226 = vmul.f32 %v1224, %v549
        %1227 = vadd.xlane.f32.xlu0 %v1225
        %v1228 = vpop.xlane.xlu0 %1227
        %1229 = vadd.xlane.f32.xlu0 %v1226
        %v1230 = vpop.xlane.xlu0 %1229
        %v1231 = vadd.f32 %v1228, 1e-06
        %v1232 = vadd.f32 %v1230, 1e-06
        %v1233 = vrcp.pop %v1231
        %v1234 = vmul.f32 %v1225, %v1233
        %v1235 = vrcp.pop %v1232
        %v1236 = vmul.f32 %v1226, %v1235
        %v1237 = vpack.c.bf16 %v1236, %v1234
        %1238 = vmatprep.subr.bf16.mxu0 0
        %1239 = vmatpush1.bf16.msra.mxu0 %v1028
        %1240 = vmatprep.subr.bf16.mxu0 0
        %1241 = vmatpush1.bf16.msra.mxu0 %v1029
        %1242 = vmatprep.subr.bf16.mxu0 0
        %1243 = vmatpush1.bf16.msra.mxu0 %v1030
        %1244 = vmatprep.subr.bf16.mxu0 0
        %1245 = vmatpush1.bf16.msra.mxu0 %v1031
        %1246 = vmatprep.subr.bf16.mxu0 0
        %1247 = vmatpush1.bf16.msra.mxu0 %v1032
        %1248 = vmatprep.subr.bf16.mxu0 0
        %1249 = vmatpush1.bf16.msra.mxu0 %v1033
        %1250 = vmatprep.subr.bf16.mxu0 0
        %1251 = vmatpush1.bf16.msra.mxu0 %v1034
        %1252 = vmatprep.subr.bf16.mxu0 0
        %1253 = vmatpush1.bf16.msra.mxu0 %v1035
        %1254 = vmatprep.subr.bf16.mxu0 0
        %1255 = vmatpush1.bf16.msra.mxu0 0
        %1256 = vmatprep.subr.bf16.mxu0 0
        %1257 = vmatpush1.bf16.msra.mxu0 0
        %1258 = vmatprep.subr.bf16.mxu0 0
        %1259 = vmatpush1.bf16.msra.mxu0 0
        %1260 = vmatprep.subr.bf16.mxu0 0
        %1261 = vmatpush1.bf16.msra.mxu0 0
        %1262 = vmatprep.subr.bf16.mxu0 0
        %1263 = vmatpush1.bf16.msra.mxu0 0
        %1264 = vmatprep.subr.bf16.mxu0 0
        %1265 = vmatpush1.bf16.msra.mxu0 0
        %1266 = vmatprep.subr.bf16.mxu0 0
        %1267 = vmatpush1.bf16.msra.mxu0 0
        %1268 = vmatprep.subr.bf16.mxu0 0
        %1269 = vmatpush1.bf16.msra.mxu0 0
        %1270 = vmatprep.mubr.bf16.mxu0 0
        %1271 = vmatmul.mubr.bf16.gmra.mrb[0].mxu0 %v1237
        %v1272 = vpop.f32.mrb[0].mxu0
        %v1273 = vadd.f32 0.0, %v1272
        %v1274 = vpop.f32.mrb[0].mxu0
        %v1275 = vpop.f32.mrb[0].mxu0
        %v1276 = vadd.f32 0.0, %v1275
        %v1277 = vpop.f32.mrb[0].mxu0
        %1278 = vdwg.mxu0
        %v1279 = vpack.c.bf16 %v1276, %v1273
        %v1280 = vlaneseq
        %v1281 = vshrl.u32 %v1280, 7
        %v1282 = vsub.s32 0, %v1281
        %v1283 = vrot.slane %v522, %v1282
        %v1288 = vunpack.c.l.b16 %v514
        %v1289 = vunpack.c.l.b16 %v515
        %v1290 = vunpack.c.l.b16 %v516
        %v1291 = vunpack.c.l.b16 %v517
        %v1292 = vpack.c.b16 %v1289, %v1288
        %v1293 = vpack.c.b16 %v1291, %v1290
        %v1297 = vsel %vm573, %v1279, 0
        %1299 = vmatprep.subr.bf16.mxu0 0
        %1300 = vmatpush1.bf16.msra.mxu0 %v1292
        %1301 = vmatprep.subr.bf16.mxu0 0
        %1302 = vmatpush1.bf16.msra.mxu0 %v1293
        %1303 = vmatprep.subr.bf16.mxu0 0
        %1304 = vmatpush1.bf16.msra.mxu0 0
        %1305 = vmatprep.subr.bf16.mxu0 0
        %1306 = vmatpush1.bf16.msra.mxu0 0
        %1307 = vmatprep.subr.bf16.mxu0 0
        %1308 = vmatpush1.bf16.msra.mxu0 0
        %1309 = vmatprep.subr.bf16.mxu0 0
        %1310 = vmatpush1.bf16.msra.mxu0 0
        %1311 = vmatprep.subr.bf16.mxu0 0
        %1312 = vmatpush1.bf16.msra.mxu0 0
        %1313 = vmatprep.subr.bf16.mxu0 0
        %1314 = vmatpush1.bf16.msra.mxu0 0
        %1315 = vmatprep.subr.bf16.mxu0 0
        %1316 = vmatpush1.bf16.msra.mxu0 0
        %1317 = vmatprep.subr.bf16.mxu0 0
        %1318 = vmatpush1.bf16.msra.mxu0 0
        %1319 = vmatprep.subr.bf16.mxu0 0
        %1320 = vmatpush1.bf16.msra.mxu0 0
        %1321 = vmatprep.subr.bf16.mxu0 0
        %1322 = vmatpush1.bf16.msra.mxu0 0
        %1323 = vmatprep.subr.bf16.mxu0 0
        %1324 = vmatpush1.bf16.msra.mxu0 0
        %1325 = vmatprep.subr.bf16.mxu0 0
        %1326 = vmatpush1.bf16.msra.mxu0 0
        %1327 = vmatprep.subr.bf16.mxu0 0
        %1328 = vmatpush1.bf16.msra.mxu0 0
        %1329 = vmatprep.subr.bf16.mxu0 0
        %1330 = vmatpush1.bf16.msra.mxu0 0
        %1331 = vmatprep.mubr.bf16.mxu0 0
        %1332 = vmatmul.mubr.bf16.gmra.mrb[0].mxu0 %v1297
        %v1333 = vpop.f32.mrb[0].mxu0
        %v1334 = vadd.f32 %v1283, %v1333
        %v1335 = vpop.f32.mrb[0].mxu0
        %v1336 = vpop.f32.mrb[0].mxu0
        %v1337 = vadd.f32 %v1283, %v1336
        %v1338 = vpop.f32.mrb[0].mxu0
        %1339 = vdwg.mxu0
        %v1340 = vpack.c.bf16 %v1037, %v1036
        %v1341 = vlaneseq
        %v1342 = vshrl.u32 %v1341, 7
        %v1343 = vsub.s32 1, %v1342
        %v1344 = vrot.slane %v522, %v1343
        %v1349 = vunpack.c.l.b16 %v518
        %v1350 = vunpack.c.l.b16 %v519
        %v1351 = vunpack.c.l.b16 %v520
        %v1352 = vunpack.c.l.b16 %v521
        %v1353 = vpack.c.b16 %v1350, %v1349
        %v1354 = vpack.c.b16 %v1352, %v1351
        %v1358 = vsel %vm573, %v1340, 0
        %1360 = vmatprep.subr.bf16.mxu0 0
        %1361 = vmatpush1.bf16.msra.mxu0 %v1353
        %1362 = vmatprep.subr.bf16.mxu0 0
        %1363 = vmatpush1.bf16.msra.mxu0 %v1354
        %1364 = vmatprep.subr.bf16.mxu0 0
        %1365 = vmatpush1.bf16.msra.mxu0 0
        %1366 = vmatprep.subr.bf16.mxu0 0
        %1367 = vmatpush1.bf16.msra.mxu0 0
        %1368 = vmatprep.subr.bf16.mxu0 0
        %1369 = vmatpush1.bf16.msra.mxu0 0
        %1370 = vmatprep.subr.bf16.mxu0 0
        %1371 = vmatpush1.bf16.msra.mxu0 0
        %1372 = vmatprep.subr.bf16.mxu0 0
        %1373 = vmatpush1.bf16.msra.mxu0 0
        %1374 = vmatprep.subr.bf16.mxu0 0
        %1375 = vmatpush1.bf16.msra.mxu0 0
        %1376 = vmatprep.subr.bf16.mxu0 0
        %1377 = vmatpush1.bf16.msra.mxu0 0
        %1378 = vmatprep.subr.bf16.mxu0 0
        %1379 = vmatpush1.bf16.msra.mxu0 0
        %1380 = vmatprep.subr.bf16.mxu0 0
        %1381 = vmatpush1.bf16.msra.mxu0 0
        %1382 = vmatprep.subr.bf16.mxu0 0
        %1383 = vmatpush1.bf16.msra.mxu0 0
        %1384 = vmatprep.subr.bf16.mxu0 0
        %1385 = vmatpush1.bf16.msra.mxu0 0
        %1386 = vmatprep.subr.bf16.mxu0 0
        %1387 = vmatpush1.bf16.msra.mxu0 0
        %1388 = vmatprep.subr.bf16.mxu0 0
        %1389 = vmatpush1.bf16.msra.mxu0 0
        %1390 = vmatprep.subr.bf16.mxu0 0
        %1391 = vmatpush1.bf16.msra.mxu0 0
        %1392 = vmatprep.mubr.bf16.mxu0 0
        %1393 = vmatmul.mubr.bf16.gmra.mrb[0].mxu0 %v1358
        %v1394 = vpop.f32.mrb[0].mxu0
        %v1395 = vadd.f32 %v1344, %v1394
        %v1396 = vpop.f32.mrb[0].mxu0
        %v1397 = vpop.f32.mrb[0].mxu0
        %v1398 = vadd.f32 %v1344, %v1397
        %v1399 = vpop.f32.mrb[0].mxu0
        %1400 = vdwg.mxu0
        %v1401 = vadd.f32 %v1334, %v1395
        %v1402 = vadd.f32 %v1337, %v1398
        %v1403 = vxor.u32 %v1401, 2147483648
        %v1404 = vxor.u32 %v1402, 2147483648
        %v1405 = vmul.f32 %v1403, 1.442695
        %v1406 = vpow.pop %v1405
        %v1407 = vmul.f32 %v1404, 1.442695
        %v1408 = vpow.pop %v1407
        %v1409 = vadd.f32 %v1406, 1.0
        %v1410 = vadd.f32 %v1408, 1.0
        %v1411 = vrcp.pop %v1409
        %v1412 = vmul.f32 1.0, %v1411
        %v1413 = vrcp.pop %v1410
        %v1414 = vmul.f32 1.0, %v1413
        %1417 = vrot.lane.b32.xlu0 %v1395, 64
        %v1418 = vpop.permute.xlu0 %1417
        %1419 = vrot.lane.b32.xlu0 %v1398, 64
        %v1420 = vpop.permute.xlu0 %1419
        %v1423 = vmul.f32 %v1412, %v1418
        %v1424 = vmul.f32 %v1414, %v1420
        %1427 = vrot.lane.b32.xlu0 %v1423, 64
        %v1428 = vpop.permute.xlu0 %1427
        %1429 = vrot.lane.b32.xlu0 %v1424, 64
        %v1430 = vpop.permute.xlu0 %1429
        %v1433 = vadd.f32 %v1334, %v1428
        %v1434 = vadd.f32 %v1337, %v1430
        %v1435 = vtanh.pop %v1433
        %v1436 = vtanh.pop %v1434
        %v1437 = vsub.f32 1.0, %v1412
        %v1438 = vsub.f32 1.0, %v1414
        %1441 = vrot.lane.b32.xlu0 %v1435, 96
        %v1442 = vpop.permute.xlu0 %1441
        %1443 = vrot.lane.b32.xlu0 %v1436, 96
        %v1444 = vpop.permute.xlu0 %1443
        %v1447 = vmul.f32 %v1437, %v1442
        %v1448 = vmul.f32 %v1438, %v1444
        %1451 = vrot.lane.b32.xlu0 %v1036, 32
        %v1452 = vpop.permute.xlu0 %1451
        %1453 = vrot.lane.b32.xlu0 %v1037, 32
        %v1454 = vpop.permute.xlu0 %1453
        %v1457 = vmul.f32 %v1412, %v1452
        %v1458 = vmul.f32 %v1414, %v1454
        %v1459 = vadd.f32 %v1447, %v1457
        %v1460 = vadd.f32 %v1448, %v1458
        %1463 = vrot.lane.b32.xlu0 %v1459, 96
        %v1464 = vpop.permute.xlu0 %1463
        %1465 = vrot.lane.b32.xlu0 %v1460, 96
        %v1466 = vpop.permute.xlu0 %1465
        %v1469 = vsel %vm573, %v1464, 0.0
        %1470 = vadd.xlane.f32.xlu0 %v1469
        %v1471 = vpop.xlane.xlu0 %1470
        %v1472 = vsel %vm573, %v1466, 0.0
        %1473 = vadd.xlane.f32.xlu0 %v1472
        %v1474 = vpop.xlane.xlu0 %1473
        %v1475 = vmul.f32 %v1471, %v622
        %v1476 = vmul.f32 %v1474, %v622
        %v1477 = vsub.f32 %v1459, %v1475
        %v1478 = vsub.f32 %v1460, %v1476
        %v1479 = vmul.f32 %v1477, %v1477
        %v1480 = vmul.f32 %v1478, %v1478
        %1483 = vrot.lane.b32.xlu0 %v1479, 96
        %v1484 = vpop.permute.xlu0 %1483
        %1485 = vrot.lane.b32.xlu0 %v1480, 96
        %v1486 = vpop.permute.xlu0 %1485
        %v1489 = vsel %vm573, %v1484, 0.0
        %1490 = vadd.xlane.f32.xlu0 %v1489
        %v1491 = vpop.xlane.xlu0 %1490
        %v1492 = vsel %vm573, %v1486, 0.0
        %1493 = vadd.xlane.f32.xlu0 %v1492
        %v1494 = vpop.xlane.xlu0 %1493
        %v1495 = vmul.f32 %v1491, %v622
        %v1496 = vmul.f32 %v1494, %v622
        %v1497 = vadd.f32 %v1495, 1e-05
        %v1498 = vadd.f32 %v1496, 1e-05
        %v1499 = vrsqrt.pop %v1497
        %v1500 = vrsqrt.pop %v1498
        %v1501 = vmul.f32 %v1477, %v1499
        %v1502 = vmul.f32 %v1478, %v1500
        %v1503 = vlaneseq
        %v1504 = vshrl.u32 %v1503, 7
        %v1505 = vsub.s32 2, %v1504
        %v1506 = vrot.slane %v505, %v1505
        %1508 = vrot.lane.b32.xlu0 %v1506, 32
        %v1509 = vpop.permute.xlu0 %1508
        %v1511 = vmul.f32 %v1501, %v1509
        %v1512 = vmul.f32 %v1502, %v1509
        %v1513 = vlaneseq
        %v1514 = vshrl.u32 %v1513, 7
        %v1515 = vsub.s32 3, %v1514
        %v1516 = vrot.slane %v505, %v1515
        %1518 = vrot.lane.b32.xlu0 %v1516, 32
        %v1519 = vpop.permute.xlu0 %1518
        %v1521 = vadd.f32 %v1511, %v1519
        %v1522 = vadd.f32 %v1512, %v1519
        %v1523 = vpack.c.bf16 %v1522, %v1521
        %v1525 = vlaneseq
        %v1526 = vshrl.u32 %v1525, 7
        %v1527 = vsub.s32 0, %v1526
        %v1528 = vrot.slane %v527, %v1527
        %1531 = vrot.lane.b32.xlu0 %v1523, 96
        %v1532 = vpop.permute.xlu0 %1531
        %v1537 = vunpack.c.l.b16 %v523
        %v1538 = vunpack.c.l.b16 %v524
        %v1539 = vunpack.c.l.b16 %v525
        %v1540 = vunpack.c.l.b16 %v526
        %v1541 = vpack.c.b16 %v1538, %v1537
        %v1542 = vpack.c.b16 %v1540, %v1539
        %v1546 = vsel %vm573, %v1532, 0
        %1548 = vmatprep.subr.bf16.mxu0 0
        %1549 = vmatpush1.bf16.msra.mxu0 %v1541
        %1550 = vmatprep.subr.bf16.mxu0 0
        %1551 = vmatpush1.bf16.msra.mxu0 %v1542
        %1552 = vmatprep.subr.bf16.mxu0 0
        %1553 = vmatpush1.bf16.msra.mxu0 0
        %1554 = vmatprep.subr.bf16.mxu0 0
        %1555 = vmatpush1.bf16.msra.mxu0 0
        %1556 = vmatprep.subr.bf16.mxu0 0
        %1557 = vmatpush1.bf16.msra.mxu0 0
        %1558 = vmatprep.subr.bf16.mxu0 0
        %1559 = vmatpush1.bf16.msra.mxu0 0
        %1560 = vmatprep.subr.bf16.mxu0 0
        %1561 = vmatpush1.bf16.msra.mxu0 0
        %1562 = vmatprep.subr.bf16.mxu0 0
        %1563 = vmatpush1.bf16.msra.mxu0 0
        %1564 = vmatprep.subr.bf16.mxu0 0
        %1565 = vmatpush1.bf16.msra.mxu0 0
        %1566 = vmatprep.subr.bf16.mxu0 0
        %1567 = vmatpush1.bf16.msra.mxu0 0
        %1568 = vmatprep.subr.bf16.mxu0 0
        %1569 = vmatpush1.bf16.msra.mxu0 0
        %1570 = vmatprep.subr.bf16.mxu0 0
        %1571 = vmatpush1.bf16.msra.mxu0 0
        %1572 = vmatprep.subr.bf16.mxu0 0
        %1573 = vmatpush1.bf16.msra.mxu0 0
        %1574 = vmatprep.subr.bf16.mxu0 0
        %1575 = vmatpush1.bf16.msra.mxu0 0
        %1576 = vmatprep.subr.bf16.mxu0 0
        %1577 = vmatpush1.bf16.msra.mxu0 0
        %1578 = vmatprep.subr.bf16.mxu0 0
        %1579 = vmatpush1.bf16.msra.mxu0 0
        %1580 = vmatprep.mubr.bf16.mxu0 0
        %1581 = vmatmul.mubr.bf16.gmra.mrb[0].mxu0 %v1546
        %v1582 = vpop.f32.mrb[0].mxu0
        %v1583 = vadd.f32 %v1528, %v1582
        %v1584 = vpop.f32.mrb[0].mxu0
        %v1585 = vpop.f32.mrb[0].mxu0
        %v1586 = vadd.f32 %v1528, %v1585
        %v1587 = vpop.f32.mrb[0].mxu0
        %1588 = vdwg.mxu0
        %v1589 = vmax.f32 %v1583, 0.0
        %v1590 = vmax.f32 %v1586, 0.0
        %v1591 = vpack.c.bf16 %v1590, %v1589
        %v1608 = vunpack.c.l.b16 %v528
        %v1609 = vunpack.c.l.b16 %v529
        %v1610 = vunpack.c.l.b16 %v530
        %v1611 = vunpack.c.l.b16 %v531
        %v1612 = vunpack.c.l.b16 %v532
        %v1613 = vunpack.c.l.b16 %v533
        %v1614 = vunpack.c.l.b16 %v534
        %v1615 = vunpack.c.l.b16 %v535
        %v1616 = vunpack.c.l.b16 %v536
        %v1617 = vunpack.c.l.b16 %v537
        %v1618 = vunpack.c.l.b16 %v538
        %v1619 = vunpack.c.l.b16 %v539
        %v1620 = vunpack.c.l.b16 %v540
        %v1621 = vunpack.c.l.b16 %v541
        %v1622 = vunpack.c.l.b16 %v542
        %v1623 = vunpack.c.l.b16 %v543
        %v1624 = vpack.c.b16 %v1609, %v1608
        %v1625 = vpack.c.b16 %v1611, %v1610
        %v1626 = vpack.c.b16 %v1613, %v1612
        %v1627 = vpack.c.b16 %v1615, %v1614
        %v1628 = vpack.c.b16 %v1617, %v1616
        %v1629 = vpack.c.b16 %v1619, %v1618
        %v1630 = vpack.c.b16 %v1621, %v1620
        %v1631 = vpack.c.b16 %v1623, %v1622
        %1640 = vmatprep.subr.bf16.mxu0 0
        %1641 = vmatpush1.bf16.msra.mxu0 %v1624
        %1642 = vmatprep.subr.bf16.mxu0 0
        %1643 = vmatpush1.bf16.msra.mxu0 %v1625
        %1644 = vmatprep.subr.bf16.mxu0 0
        %1645 = vmatpush1.bf16.msra.mxu0 %v1626
        %1646 = vmatprep.subr.bf16.mxu0 0
        %1647 = vmatpush1.bf16.msra.mxu0 %v1627
        %1648 = vmatprep.subr.bf16.mxu0 0
        %1649 = vmatpush1.bf16.msra.mxu0 %v1628
        %1650 = vmatprep.subr.bf16.mxu0 0
        %1651 = vmatpush1.bf16.msra.mxu0 %v1629
        %1652 = vmatprep.subr.bf16.mxu0 0
        %1653 = vmatpush1.bf16.msra.mxu0 %v1630
        %1654 = vmatprep.subr.bf16.mxu0 0
        %1655 = vmatpush1.bf16.msra.mxu0 %v1631
        %1656 = vmatprep.subr.bf16.mxu0 0
        %1657 = vmatpush1.bf16.msra.mxu0 0
        %1658 = vmatprep.subr.bf16.mxu0 0
        %1659 = vmatpush1.bf16.msra.mxu0 0
        %1660 = vmatprep.subr.bf16.mxu0 0
        %1661 = vmatpush1.bf16.msra.mxu0 0
        %1662 = vmatprep.subr.bf16.mxu0 0
        %1663 = vmatpush1.bf16.msra.mxu0 0
        %1664 = vmatprep.subr.bf16.mxu0 0
        %1665 = vmatpush1.bf16.msra.mxu0 0
        %1666 = vmatprep.subr.bf16.mxu0 0
        %1667 = vmatpush1.bf16.msra.mxu0 0
        %1668 = vmatprep.subr.bf16.mxu0 0
        %1669 = vmatpush1.bf16.msra.mxu0 0
        %1670 = vmatprep.subr.bf16.mxu0 0
        %1671 = vmatpush1.bf16.msra.mxu0 0
        %1672 = vmatprep.mubr.bf16.mxu0 0
        %1673 = vmatmul.mubr.bf16.gmra.mrb[0].mxu0 %v1591
        %v1674 = vpop.f32.mrb[0].mxu0
        %v1675 = vadd.f32 0.0, %v1674
        %v1676 = vpop.f32.mrb[0].mxu0
        %v1677 = vpop.f32.mrb[0].mxu0
        %v1678 = vadd.f32 0.0, %v1677
        %v1679 = vpop.f32.mrb[0].mxu0
        %1680 = vdwg.mxu0
        %1683 = vrot.lane.b32.xlu0 %v1675, 32
        %v1684 = vpop.permute.xlu0 %1683
        %1685 = vrot.lane.b32.xlu0 %v1678, 32
        %v1686 = vpop.permute.xlu0 %1685
        %v1689 = vadd.f32 %v1459, %v1684
        %v1690 = vadd.f32 %v1460, %v1686
        %v1692 = vlaneseq
        %v1693 = vshrl.u32 %v1692, 7
        %v1694 = vsub.s32 0, %v1693
        %v1695 = vrot.slane %v544, %v1694
        %1696 = vrot.lane.b32.xlu0 %v1695, 32
        %v1697 = vpop.permute.xlu0 %1696
        %v1699 = vadd.f32 %v1689, %v1697
        %v1700 = vadd.f32 %v1690, %v1697
        %1703 = vrot.lane.b32.xlu0 %v1699, 96
        %v1704 = vpop.permute.xlu0 %1703
        %1705 = vrot.lane.b32.xlu0 %v1700, 96
        %v1706 = vpop.permute.xlu0 %1705
        %v1709 = vsel %vm573, %v1704, 0.0
        %1710 = vadd.xlane.f32.xlu0 %v1709
        %v1711 = vpop.xlane.xlu0 %1710
        %v1712 = vsel %vm573, %v1706, 0.0
        %1713 = vadd.xlane.f32.xlu0 %v1712
        %v1714 = vpop.xlane.xlu0 %1713
        %v1715 = vmul.f32 %v1711, %v622
        %v1716 = vmul.f32 %v1714, %v622
        %v1717 = vsub.f32 %v1699, %v1715
        %v1718 = vsub.f32 %v1700, %v1716
        %v1719 = vmul.f32 %v1717, %v1717
        %v1720 = vmul.f32 %v1718, %v1718
        %1723 = vrot.lane.b32.xlu0 %v1719, 96
        %v1724 = vpop.permute.xlu0 %1723
        %1725 = vrot.lane.b32.xlu0 %v1720, 96
        %v1726 = vpop.permute.xlu0 %1725
        %v1729 = vsel %vm573, %v1724, 0.0
        %1730 = vadd.xlane.f32.xlu0 %v1729
        %v1731 = vpop.xlane.xlu0 %1730
        %v1732 = vsel %vm573, %v1726, 0.0
        %1733 = vadd.xlane.f32.xlu0 %v1732
        %v1734 = vpop.xlane.xlu0 %1733
        %v1735 = vmul.f32 %v1731, %v622
        %v1736 = vmul.f32 %v1734, %v622
        %v1737 = vadd.f32 %v1735, 1e-05
        %v1738 = vadd.f32 %v1736, 1e-05
        %v1739 = vrsqrt.pop %v1737
        %v1740 = vrsqrt.pop %v1738
        %v1741 = vmul.f32 %v1717, %v1739
        %v1742 = vmul.f32 %v1718, %v1740
        %1744 = vrot.lane.b32.xlu0 %v1067, 32
        %v1745 = vpop.permute.xlu0 %1744
        %v1747 = vmul.f32 %v1741, %v1745
        %v1748 = vmul.f32 %v1742, %v1745
        %1750 = vrot.lane.b32.xlu0 %v1073, 32
        %v1751 = vpop.permute.xlu0 %1750
        %v1753 = vadd.f32 %v1747, %v1751
        %v1754 = vadd.f32 %v1748, %v1751
        %v1755 = vpack.c.bf16 %v1754, %v1753
        %1757 = vrot.lane.b32.xlu0 %v1755, 96
        %v1758 = vpop.permute.xlu0 %1757
        %v1760 = vsel %vm573, %v1758, 0
        %1762 = vmatprep.subr.bf16.mxu0 0
        %1763 = vmatpush1.bf16.msra.mxu0 %v1085
        %1764 = vmatprep.subr.bf16.mxu0 0
        %1765 = vmatpush1.bf16.msra.mxu0 %v1086
        %1766 = vmatprep.subr.bf16.mxu0 0
        %1767 = vmatpush1.bf16.msra.mxu0 0
        %1768 = vmatprep.subr.bf16.mxu0 0
        %1769 = vmatpush1.bf16.msra.mxu0 0
        %1770 = vmatprep.subr.bf16.mxu0 0
        %1771 = vmatpush1.bf16.msra.mxu0 0
        %1772 = vmatprep.subr.bf16.mxu0 0
        %1773 = vmatpush1.bf16.msra.mxu0 0
        %1774 = vmatprep.subr.bf16.mxu0 0
        %1775 = vmatpush1.bf16.msra.mxu0 0
        %1776 = vmatprep.subr.bf16.mxu0 0
        %1777 = vmatpush1.bf16.msra.mxu0 0
        %1778 = vmatprep.subr.bf16.mxu0 0
        %1779 = vmatpush1.bf16.msra.mxu0 0
        %1780 = vmatprep.subr.bf16.mxu0 0
        %1781 = vmatpush1.bf16.msra.mxu0 0
        %1782 = vmatprep.subr.bf16.mxu0 0
        %1783 = vmatpush1.bf16.msra.mxu0 0
        %1784 = vmatprep.subr.bf16.mxu0 0
        %1785 = vmatpush1.bf16.msra.mxu0 0
        %1786 = vmatprep.subr.bf16.mxu0 0
        %1787 = vmatpush1.bf16.msra.mxu0 0
        %1788 = vmatprep.subr.bf16.mxu0 0
        %1789 = vmatpush1.bf16.msra.mxu0 0
        %1790 = vmatprep.subr.bf16.mxu0 0
        %1791 = vmatpush1.bf16.msra.mxu0 0
        %1792 = vmatprep.subr.bf16.mxu0 0
        %1793 = vmatpush1.bf16.msra.mxu0 0
        %1794 = vmatprep.mubr.bf16.mxu0 0
        %1795 = vmatmul.mubr.bf16.gmra.mrb[0].mxu0 %v1760
        %v1796 = vpop.f32.mrb[0].mxu0
        %v1797 = vadd.f32 0.0, %v1796
        %v1798 = vpop.f32.mrb[0].mxu0
        %v1799 = vpop.f32.mrb[0].mxu0
        %v1800 = vadd.f32 0.0, %v1799
        %v1801 = vpop.f32.mrb[0].mxu0
        %1802 = vdwg.mxu0
        %v1803 = vpack.c.bf16 %v1800, %v1797
        %v1805 = vsel %vm573, %v1803, 0
        %1807 = vmatprep.subr.bf16.mxu0 0
        %1808 = vmatpush1.bf16.xpose.msra.mxu0 %v1138
        %1809 = vmatprep.subr.bf16.mxu0 0
        %1810 = vmatpush1.bf16.xpose.msra.mxu0 %v1141
        %1811 = vmatprep.subr.bf16.mxu0 0
        %1812 = vmatpush1.bf16.xpose.msra.mxu0 %v1144
        %1813 = vmatprep.subr.bf16.mxu0 0
        %1814 = vmatpush1.bf16.xpose.msra.mxu0 %v1147
        %1815 = vmatprep.subr.bf16.mxu0 0
        %1816 = vmatpush1.bf16.xpose.msra.mxu0 %v1150
        %1817 = vmatprep.subr.bf16.mxu0 0
        %1818 = vmatpush1.bf16.xpose.msra.mxu0 %v1153
        %1819 = vmatprep.subr.bf16.mxu0 0
        %1820 = vmatpush1.bf16.xpose.msra.mxu0 %v1156
        %1821 = vmatprep.subr.bf16.mxu0 0
        %1822 = vmatpush1.bf16.xpose.msra.mxu0 %v1159
        %1823 = vmatprep.subr.bf16.mxu0 0
        %1824 = vmatpush1.bf16.xpose.msra.mxu0 0
        %1825 = vmatprep.subr.bf16.mxu0 0
        %1826 = vmatpush1.bf16.xpose.msra.mxu0 0
        %1827 = vmatprep.subr.bf16.mxu0 0
        %1828 = vmatpush1.bf16.xpose.msra.mxu0 0
        %1829 = vmatprep.subr.bf16.mxu0 0
        %1830 = vmatpush1.bf16.xpose.msra.mxu0 0
        %1831 = vmatprep.subr.bf16.mxu0 0
        %1832 = vmatpush1.bf16.xpose.msra.mxu0 0
        %1833 = vmatprep.subr.bf16.mxu0 0
        %1834 = vmatpush1.bf16.xpose.msra.mxu0 0
        %1835 = vmatprep.subr.bf16.mxu0 0
        %1836 = vmatpush1.bf16.xpose.msra.mxu0 0
        %1837 = vmatprep.subr.bf16.mxu0 0
        %1838 = vmatpush1.bf16.xpose.msra.mxu0 0
        %1839 = vmatprep.mubr.bf16.mxu0 0
        %1840 = vmatmul.mubr.bf16.gmra.mrb[0].mxu0 %v1805
        %v1841 = vpop.f32.mrb[0].mxu0
        %v1842 = vadd.f32 %v555, %v1841
        %v1843 = vpop.f32.mrb[0].mxu0
        %v1844 = vpop.f32.mrb[0].mxu0
        %v1845 = vadd.f32 %v556, %v1844
        %v1846 = vpop.f32.mrb[0].mxu0
        %1847 = vdwg.mxu0
        %v1848 = vmax.f32 %v1842, %v1845
        %v1849 = vrot.slane %v1848, 4
        %v1850 = vmax.f32 %v1848, %v1849
        %v1851 = vrot.slane %v1850, 2
        %v1852 = vmax.f32 %v1850, %v1851
        %v1853 = vrot.slane %v1852, 1
        %v1854 = vmax.f32 %v1852, %v1853
        %v1855 = vsub.f32 %v1842, %v1854
        %v1856 = vsub.f32 %v1845, %v1854
        %v1857 = vmul.f32 %v1855, 1.442695
        %v1858 = vpow.pop %v1857
        %v1859 = vmul.f32 %v1856, 1.442695
        %v1860 = vpow.pop %v1859
        %v1861 = vadd.f32 %v1858, %v1860
        %v1862 = vrot.slane %v1861, 4
        %v1863 = vadd.f32 %v1861, %v1862
        %v1864 = vrot.slane %v1863, 2
        %v1865 = vadd.f32 %v1863, %v1864
        %v1866 = vrot.slane %v1865, 1
        %v1867 = vadd.f32 %v1865, %v1866
        %v1868 = vrcp.pop %v1867
        %v1869 = vmul.f32 %v1858, %v1868
        %v1870 = vmul.f32 %v1860, %v1868
        %v1871 = vmul.f32 %v1869, %v549
        %v1872 = vmul.f32 %v1870, %v549
        %1873 = vadd.xlane.f32.xlu0 %v1871
        %v1874 = vpop.xlane.xlu0 %1873
        %1875 = vadd.xlane.f32.xlu0 %v1872
        %v1876 = vpop.xlane.xlu0 %1875
        %v1877 = vadd.f32 %v1874, 1e-06
        %v1878 = vadd.f32 %v1876, 1e-06
        %v1879 = vrcp.pop %v1877
        %v1880 = vmul.f32 %v1871, %v1879
        %v1881 = vrcp.pop %v1878
        %v1882 = vmul.f32 %v1872, %v1881
        %v1883 = vpack.c.bf16 %v1882, %v1880
        %1884 = vmatprep.subr.bf16.mxu0 0
        %1885 = vmatpush1.bf16.msra.mxu0 %v1028
        %1886 = vmatprep.subr.bf16.mxu0 0
        %1887 = vmatpush1.bf16.msra.mxu0 %v1029
        %1888 = vmatprep.subr.bf16.mxu0 0
        %1889 = vmatpush1.bf16.msra.mxu0 %v1030
        %1890 = vmatprep.subr.bf16.mxu0 0
        %1891 = vmatpush1.bf16.msra.mxu0 %v1031
        %1892 = vmatprep.subr.bf16.mxu0 0
        %1893 = vmatpush1.bf16.msra.mxu0 %v1032
        %1894 = vmatprep.subr.bf16.mxu0 0
        %1895 = vmatpush1.bf16.msra.mxu0 %v1033
        %1896 = vmatprep.subr.bf16.mxu0 0
        %1897 = vmatpush1.bf16.msra.mxu0 %v1034
        %1898 = vmatprep.subr.bf16.mxu0 0
        %1899 = vmatpush1.bf16.msra.mxu0 %v1035
        %1900 = vmatprep.subr.bf16.mxu0 0
        %1901 = vmatpush1.bf16.msra.mxu0 0
        %1902 = vmatprep.subr.bf16.mxu0 0
        %1903 = vmatpush1.bf16.msra.mxu0 0
        %1904 = vmatprep.subr.bf16.mxu0 0
        %1905 = vmatpush1.bf16.msra.mxu0 0
        %1906 = vmatprep.subr.bf16.mxu0 0
        %1907 = vmatpush1.bf16.msra.mxu0 0
        %1908 = vmatprep.subr.bf16.mxu0 0
        %1909 = vmatpush1.bf16.msra.mxu0 0
        %1910 = vmatprep.subr.bf16.mxu0 0
        %1911 = vmatpush1.bf16.msra.mxu0 0
        %1912 = vmatprep.subr.bf16.mxu0 0
        %1913 = vmatpush1.bf16.msra.mxu0 0
        %1914 = vmatprep.subr.bf16.mxu0 0
        %1915 = vmatpush1.bf16.msra.mxu0 0
        %1916 = vmatprep.mubr.bf16.mxu0 0
        %1917 = vmatmul.mubr.bf16.gmra.mrb[0].mxu0 %v1883
        %v1918 = vpop.f32.mrb[0].mxu0
        %v1919 = vadd.f32 0.0, %v1918
        %v1920 = vpop.f32.mrb[0].mxu0
        %v1921 = vpop.f32.mrb[0].mxu0
        %v1922 = vadd.f32 0.0, %v1921
        %v1923 = vpop.f32.mrb[0].mxu0
        %1924 = vdwg.mxu0
        %v1925 = vpack.c.bf16 %v1922, %v1919
        %v1927 = vsel %vm573, %v1925, 0
        %1929 = vmatprep.subr.bf16.mxu0 0
        %1930 = vmatpush1.bf16.msra.mxu0 %v1292
        %1931 = vmatprep.subr.bf16.mxu0 0
        %1932 = vmatpush1.bf16.msra.mxu0 %v1293
        %1933 = vmatprep.subr.bf16.mxu0 0
        %1934 = vmatpush1.bf16.msra.mxu0 0
        %1935 = vmatprep.subr.bf16.mxu0 0
        %1936 = vmatpush1.bf16.msra.mxu0 0
        %1937 = vmatprep.subr.bf16.mxu0 0
        %1938 = vmatpush1.bf16.msra.mxu0 0
        %1939 = vmatprep.subr.bf16.mxu0 0
        %1940 = vmatpush1.bf16.msra.mxu0 0
        %1941 = vmatprep.subr.bf16.mxu0 0
        %1942 = vmatpush1.bf16.msra.mxu0 0
        %1943 = vmatprep.subr.bf16.mxu0 0
        %1944 = vmatpush1.bf16.msra.mxu0 0
        %1945 = vmatprep.subr.bf16.mxu0 0
        %1946 = vmatpush1.bf16.msra.mxu0 0
        %1947 = vmatprep.subr.bf16.mxu0 0
        %1948 = vmatpush1.bf16.msra.mxu0 0
        %1949 = vmatprep.subr.bf16.mxu0 0
        %1950 = vmatpush1.bf16.msra.mxu0 0
        %1951 = vmatprep.subr.bf16.mxu0 0
        %1952 = vmatpush1.bf16.msra.mxu0 0
        %1953 = vmatprep.subr.bf16.mxu0 0
        %1954 = vmatpush1.bf16.msra.mxu0 0
        %1955 = vmatprep.subr.bf16.mxu0 0
        %1956 = vmatpush1.bf16.msra.mxu0 0
        %1957 = vmatprep.subr.bf16.mxu0 0
        %1958 = vmatpush1.bf16.msra.mxu0 0
        %1959 = vmatprep.subr.bf16.mxu0 0
        %1960 = vmatpush1.bf16.msra.mxu0 0
        %1961 = vmatprep.mubr.bf16.mxu0 0
        %1962 = vmatmul.mubr.bf16.gmra.mrb[0].mxu0 %v1927
        %v1963 = vpop.f32.mrb[0].mxu0
        %v1964 = vadd.f32 %v1283, %v1963
        %v1965 = vpop.f32.mrb[0].mxu0
        %v1966 = vpop.f32.mrb[0].mxu0
        %v1967 = vadd.f32 %v1283, %v1966
        %v1968 = vpop.f32.mrb[0].mxu0
        %1969 = vdwg.mxu0
        %v1970 = vpack.c.bf16 %v1700, %v1699
        %1972 = vrot.lane.b32.xlu0 %v1970, 96
        %v1973 = vpop.permute.xlu0 %1972
        %v1975 = vsel %vm573, %v1973, 0
        %1977 = vmatprep.subr.bf16.mxu0 0
        %1978 = vmatpush1.bf16.msra.mxu0 %v1353
        %1979 = vmatprep.subr.bf16.mxu0 0
        %1980 = vmatpush1.bf16.msra.mxu0 %v1354
        %1981 = vmatprep.subr.bf16.mxu0 0
        %1982 = vmatpush1.bf16.msra.mxu0 0
        %1983 = vmatprep.subr.bf16.mxu0 0
        %1984 = vmatpush1.bf16.msra.mxu0 0
        %1985 = vmatprep.subr.bf16.mxu0 0
        %1986 = vmatpush1.bf16.msra.mxu0 0
        %1987 = vmatprep.subr.bf16.mxu0 0
        %1988 = vmatpush1.bf16.msra.mxu0 0
        %1989 = vmatprep.subr.bf16.mxu0 0
        %1990 = vmatpush1.bf16.msra.mxu0 0
        %1991 = vmatprep.subr.bf16.mxu0 0
        %1992 = vmatpush1.bf16.msra.mxu0 0
        %1993 = vmatprep.subr.bf16.mxu0 0
        %1994 = vmatpush1.bf16.msra.mxu0 0
        %1995 = vmatprep.subr.bf16.mxu0 0
        %1996 = vmatpush1.bf16.msra.mxu0 0
        %1997 = vmatprep.subr.bf16.mxu0 0
        %1998 = vmatpush1.bf16.msra.mxu0 0
        %1999 = vmatprep.subr.bf16.mxu0 0
        %2000 = vmatpush1.bf16.msra.mxu0 0
        %2001 = vmatprep.subr.bf16.mxu0 0
        %2002 = vmatpush1.bf16.msra.mxu0 0
        %2003 = vmatprep.subr.bf16.mxu0 0
        %2004 = vmatpush1.bf16.msra.mxu0 0
        %2005 = vmatprep.subr.bf16.mxu0 0
        %2006 = vmatpush1.bf16.msra.mxu0 0
        %2007 = vmatprep.subr.bf16.mxu0 0
        %2008 = vmatpush1.bf16.msra.mxu0 0
        %2009 = vmatprep.mubr.bf16.mxu0 0
        %2010 = vmatmul.mubr.bf16.gmra.mrb[0].mxu0 %v1975
        %v2011 = vpop.f32.mrb[0].mxu0
        %v2012 = vadd.f32 %v1344, %v2011
        %v2013 = vpop.f32.mrb[0].mxu0
        %v2014 = vpop.f32.mrb[0].mxu0
        %v2015 = vadd.f32 %v1344, %v2014
        %v2016 = vpop.f32.mrb[0].mxu0
        %2017 = vdwg.mxu0
        %v2018 = vadd.f32 %v1964, %v2012
        %v2019 = vadd.f32 %v1967, %v2015
        %v2020 = vxor.u32 %v2018, 2147483648
        %v2021 = vxor.u32 %v2019, 2147483648
        %v2022 = vmul.f32 %v2020, 1.442695
        %v2023 = vpow.pop %v2022
        %v2024 = vmul.f32 %v2021, 1.442695
        %v2025 = vpow.pop %v2024
        %v2026 = vadd.f32 %v2023, 1.0
        %v2027 = vadd.f32 %v2025, 1.0
        %v2028 = vrcp.pop %v2026
        %v2029 = vmul.f32 1.0, %v2028
        %v2030 = vrcp.pop %v2027
        %v2031 = vmul.f32 1.0, %v2030
        %2034 = vrot.lane.b32.xlu0 %v2012, 64
        %v2035 = vpop.permute.xlu0 %2034
        %2036 = vrot.lane.b32.xlu0 %v2015, 64
        %v2037 = vpop.permute.xlu0 %2036
        %v2040 = vmul.f32 %v2029, %v2035
        %v2041 = vmul.f32 %v2031, %v2037
        %2044 = vrot.lane.b32.xlu0 %v2040, 64
        %v2045 = vpop.permute.xlu0 %2044
        %2046 = vrot.lane.b32.xlu0 %v2041, 64
        %v2047 = vpop.permute.xlu0 %2046
        %v2050 = vadd.f32 %v1964, %v2045
        %v2051 = vadd.f32 %v1967, %v2047
        %v2052 = vtanh.pop %v2050
        %v2053 = vtanh.pop %v2051
        %v2054 = vsub.f32 1.0, %v2029
        %v2055 = vsub.f32 1.0, %v2031
        %2058 = vrot.lane.b32.xlu0 %v2052, 96
        %v2059 = vpop.permute.xlu0 %2058
        %2060 = vrot.lane.b32.xlu0 %v2053, 96
        %v2061 = vpop.permute.xlu0 %2060
        %v2064 = vmul.f32 %v2054, %v2059
        %v2065 = vmul.f32 %v2055, %v2061
        %v2066 = vmul.f32 %v2029, %v1699
        %v2067 = vmul.f32 %v2031, %v1700
        %v2068 = vadd.f32 %v2064, %v2066
        %v2069 = vadd.f32 %v2065, %v2067
        %2072 = vrot.lane.b32.xlu0 %v2068, 96
        %v2073 = vpop.permute.xlu0 %2072
        %2074 = vrot.lane.b32.xlu0 %v2069, 96
        %v2075 = vpop.permute.xlu0 %2074
        %v2078 = vsel %vm573, %v2073, 0.0
        %2079 = vadd.xlane.f32.xlu0 %v2078
        %v2080 = vpop.xlane.xlu0 %2079
        %v2081 = vsel %vm573, %v2075, 0.0
        %2082 = vadd.xlane.f32.xlu0 %v2081
        %v2083 = vpop.xlane.xlu0 %2082
        %v2084 = vmul.f32 %v2080, %v622
        %v2085 = vmul.f32 %v2083, %v622
        %v2086 = vsub.f32 %v2068, %v2084
        %v2087 = vsub.f32 %v2069, %v2085
        %v2088 = vmul.f32 %v2086, %v2086
        %v2089 = vmul.f32 %v2087, %v2087
        %2092 = vrot.lane.b32.xlu0 %v2088, 96
        %v2093 = vpop.permute.xlu0 %2092
        %2094 = vrot.lane.b32.xlu0 %v2089, 96
        %v2095 = vpop.permute.xlu0 %2094
        %v2098 = vsel %vm573, %v2093, 0.0
        %2099 = vadd.xlane.f32.xlu0 %v2098
        %v2100 = vpop.xlane.xlu0 %2099
        %v2101 = vsel %vm573, %v2095, 0.0
        %2102 = vadd.xlane.f32.xlu0 %v2101
        %v2103 = vpop.xlane.xlu0 %2102
        %v2104 = vmul.f32 %v2100, %v622
        %v2105 = vmul.f32 %v2103, %v622
        %v2106 = vadd.f32 %v2104, 1e-05
        %v2107 = vadd.f32 %v2105, 1e-05
        %v2108 = vrsqrt.pop %v2106
        %v2109 = vrsqrt.pop %v2107
        %v2110 = vmul.f32 %v2086, %v2108
        %v2111 = vmul.f32 %v2087, %v2109
        %v2112 = vmul.f32 %v2110, %v1509
        %v2113 = vmul.f32 %v2111, %v1509
        %v2114 = vadd.f32 %v2112, %v1519
        %v2115 = vadd.f32 %v2113, %v1519
        %v2116 = vpack.c.bf16 %v2115, %v2114
        %2118 = vrot.lane.b32.xlu0 %v2116, 96
        %v2119 = vpop.permute.xlu0 %2118
        %v2121 = vsel %vm573, %v2119, 0
        %2123 = vmatprep.subr.bf16.mxu0 0
        %2124 = vmatpush1.bf16.msra.mxu0 %v1541
        %2125 = vmatprep.subr.bf16.mxu0 0
        %2126 = vmatpush1.bf16.msra.mxu0 %v1542
        %2127 = vmatprep.subr.bf16.mxu0 0
        %2128 = vmatpush1.bf16.msra.mxu0 0
        %2129 = vmatprep.subr.bf16.mxu0 0
        %2130 = vmatpush1.bf16.msra.mxu0 0
        %2131 = vmatprep.subr.bf16.mxu0 0
        %2132 = vmatpush1.bf16.msra.mxu0 0
        %2133 = vmatprep.subr.bf16.mxu0 0
        %2134 = vmatpush1.bf16.msra.mxu0 0
        %2135 = vmatprep.subr.bf16.mxu0 0
        %2136 = vmatpush1.bf16.msra.mxu0 0
        %2137 = vmatprep.subr.bf16.mxu0 0
        %2138 = vmatpush1.bf16.msra.mxu0 0
        %2139 = vmatprep.subr.bf16.mxu0 0
        %2140 = vmatpush1.bf16.msra.mxu0 0
        %2141 = vmatprep.subr.bf16.mxu0 0
        %2142 = vmatpush1.bf16.msra.mxu0 0
        %2143 = vmatprep.subr.bf16.mxu0 0
        %2144 = vmatpush1.bf16.msra.mxu0 0
        %2145 = vmatprep.subr.bf16.mxu0 0
        %2146 = vmatpush1.bf16.msra.mxu0 0
        %2147 = vmatprep.subr.bf16.mxu0 0
        %2148 = vmatpush1.bf16.msra.mxu0 0
        %2149 = vmatprep.subr.bf16.mxu0 0
        %2150 = vmatpush1.bf16.msra.mxu0 0
        %2151 = vmatprep.subr.bf16.mxu0 0
        %2152 = vmatpush1.bf16.msra.mxu0 0
        %2153 = vmatprep.subr.bf16.mxu0 0
        %2154 = vmatpush1.bf16.msra.mxu0 0
        %2155 = vmatprep.mubr.bf16.mxu0 0
        %2156 = vmatmul.mubr.bf16.gmra.mrb[0].mxu0 %v2121
        %v2157 = vpop.f32.mrb[0].mxu0
        %v2158 = vadd.f32 %v1528, %v2157
        %v2159 = vpop.f32.mrb[0].mxu0
        %v2160 = vpop.f32.mrb[0].mxu0
        %v2161 = vadd.f32 %v1528, %v2160
        %v2162 = vpop.f32.mrb[0].mxu0
        %2163 = vdwg.mxu0
        %v2164 = vmax.f32 %v2158, 0.0
        %v2165 = vmax.f32 %v2161, 0.0
        %v2166 = vpack.c.bf16 %v2165, %v2164
        %2167 = vmatprep.subr.bf16.mxu0 0
        %2168 = vmatpush1.bf16.msra.mxu0 %v1624
        %2169 = vmatprep.subr.bf16.mxu0 0
        %2170 = vmatpush1.bf16.msra.mxu0 %v1625
        %2171 = vmatprep.subr.bf16.mxu0 0
        %2172 = vmatpush1.bf16.msra.mxu0 %v1626
        %2173 = vmatprep.subr.bf16.mxu0 0
        %2174 = vmatpush1.bf16.msra.mxu0 %v1627
        %2175 = vmatprep.subr.bf16.mxu0 0
        %2176 = vmatpush1.bf16.msra.mxu0 %v1628
        %2177 = vmatprep.subr.bf16.mxu0 0
        %2178 = vmatpush1.bf16.msra.mxu0 %v1629
        %2179 = vmatprep.subr.bf16.mxu0 0
        %2180 = vmatpush1.bf16.msra.mxu0 %v1630
        %2181 = vmatprep.subr.bf16.mxu0 0
        %2182 = vmatpush1.bf16.msra.mxu0 %v1631
        %2183 = vmatprep.subr.bf16.mxu0 0
        %2184 = vmatpush1.bf16.msra.mxu0 0
        %2185 = vmatprep.subr.bf16.mxu0 0
        %2186 = vmatpush1.bf16.msra.mxu0 0
        %2187 = vmatprep.subr.bf16.mxu0 0
        %2188 = vmatpush1.bf16.msra.mxu0 0
        %2189 = vmatprep.subr.bf16.mxu0 0
        %2190 = vmatpush1.bf16.msra.mxu0 0
        %2191 = vmatprep.subr.bf16.mxu0 0
        %2192 = vmatpush1.bf16.msra.mxu0 0
        %2193 = vmatprep.subr.bf16.mxu0 0
        %2194 = vmatpush1.bf16.msra.mxu0 0
        %2195 = vmatprep.subr.bf16.mxu0 0
        %2196 = vmatpush1.bf16.msra.mxu0 0
        %2197 = vmatprep.subr.bf16.mxu0 0
        %2198 = vmatpush1.bf16.msra.mxu0 0
        %2199 = vmatprep.mubr.bf16.mxu0 0
        %2200 = vmatmul.mubr.bf16.gmra.mrb[0].mxu0 %v2166
        %v2201 = vpop.f32.mrb[0].mxu0
        %v2202 = vadd.f32 0.0, %v2201
        %v2203 = vpop.f32.mrb[0].mxu0
        %v2204 = vpop.f32.mrb[0].mxu0
        %v2205 = vadd.f32 0.0, %v2204
        %v2206 = vpop.f32.mrb[0].mxu0
        %2207 = vdwg.mxu0
        %2210 = vrot.lane.b32.xlu0 %v2202, 32
        %v2211 = vpop.permute.xlu0 %2210
        %2212 = vrot.lane.b32.xlu0 %v2205, 32
        %v2213 = vpop.permute.xlu0 %2212
        %v2216 = vadd.f32 %v2068, %v2211
        %v2217 = vadd.f32 %v2069, %v2213
        %v2218 = vadd.f32 %v2216, %v1697
        %v2219 = vadd.f32 %v2217, %v1697
        %2222 = vrot.lane.b32.xlu0 %v2218, 96
        %v2223 = vpop.permute.xlu0 %2222
        %2224 = vrot.lane.b32.xlu0 %v2219, 96
        %v2225 = vpop.permute.xlu0 %2224
        %v2228 = vsel %vm573, %v2223, 0.0
        %2229 = vadd.xlane.f32.xlu0 %v2228
        %v2230 = vpop.xlane.xlu0 %2229
        %v2231 = vsel %vm573, %v2225, 0.0
        %2232 = vadd.xlane.f32.xlu0 %v2231
        %v2233 = vpop.xlane.xlu0 %2232
        %v2234 = vmul.f32 %v2230, %v622
        %v2235 = vmul.f32 %v2233, %v622
        %v2236 = vsub.f32 %v2218, %v2234
        %v2237 = vsub.f32 %v2219, %v2235
        %v2238 = vmul.f32 %v2236, %v2236
        %v2239 = vmul.f32 %v2237, %v2237
        %2242 = vrot.lane.b32.xlu0 %v2238, 96
        %v2243 = vpop.permute.xlu0 %2242
        %2244 = vrot.lane.b32.xlu0 %v2239, 96
        %v2245 = vpop.permute.xlu0 %2244
        %v2248 = vsel %vm573, %v2243, 0.0
        %2249 = vadd.xlane.f32.xlu0 %v2248
        %v2250 = vpop.xlane.xlu0 %2249
        %v2251 = vsel %vm573, %v2245, 0.0
        %2252 = vadd.xlane.f32.xlu0 %v2251
        %v2253 = vpop.xlane.xlu0 %2252
        %v2254 = vmul.f32 %v2250, %v622
        %v2255 = vmul.f32 %v2253, %v622
        %v2256 = vadd.f32 %v2254, 1e-05
        %v2257 = vadd.f32 %v2255, 1e-05
        %v2258 = vrsqrt.pop %v2256
        %v2259 = vrsqrt.pop %v2257
        %v2260 = vmul.f32 %v2236, %v2258
        %v2261 = vmul.f32 %v2237, %v2259
        %v2262 = vmul.f32 %v2260, %v1745
        %v2263 = vmul.f32 %v2261, %v1745
        %v2264 = vadd.f32 %v2262, %v1751
        %v2265 = vadd.f32 %v2263, %v1751
        %v2266 = vpack.c.bf16 %v2265, %v2264
        %2268 = vrot.lane.b32.xlu0 %v2266, 96
        %v2269 = vpop.permute.xlu0 %2268
        %v2271 = vsel %vm573, %v2269, 0
        %2273 = vmatprep.subr.bf16.mxu0 0
        %2274 = vmatpush1.bf16.msra.mxu0 %v1085
        %2275 = vmatprep.subr.bf16.mxu0 0
        %2276 = vmatpush1.bf16.msra.mxu0 %v1086
        %2277 = vmatprep.subr.bf16.mxu0 0
        %2278 = vmatpush1.bf16.msra.mxu0 0
        %2279 = vmatprep.subr.bf16.mxu0 0
        %2280 = vmatpush1.bf16.msra.mxu0 0
        %2281 = vmatprep.subr.bf16.mxu0 0
        %2282 = vmatpush1.bf16.msra.mxu0 0
        %2283 = vmatprep.subr.bf16.mxu0 0
        %2284 = vmatpush1.bf16.msra.mxu0 0
        %2285 = vmatprep.subr.bf16.mxu0 0
        %2286 = vmatpush1.bf16.msra.mxu0 0
        %2287 = vmatprep.subr.bf16.mxu0 0
        %2288 = vmatpush1.bf16.msra.mxu0 0
        %2289 = vmatprep.subr.bf16.mxu0 0
        %2290 = vmatpush1.bf16.msra.mxu0 0
        %2291 = vmatprep.subr.bf16.mxu0 0
        %2292 = vmatpush1.bf16.msra.mxu0 0
        %2293 = vmatprep.subr.bf16.mxu0 0
        %2294 = vmatpush1.bf16.msra.mxu0 0
        %2295 = vmatprep.subr.bf16.mxu0 0
        %2296 = vmatpush1.bf16.msra.mxu0 0
        %2297 = vmatprep.subr.bf16.mxu0 0
        %2298 = vmatpush1.bf16.msra.mxu0 0
        %2299 = vmatprep.subr.bf16.mxu0 0
        %2300 = vmatpush1.bf16.msra.mxu0 0
        %2301 = vmatprep.subr.bf16.mxu0 0
        %2302 = vmatpush1.bf16.msra.mxu0 0
        %2303 = vmatprep.subr.bf16.mxu0 0
        %2304 = vmatpush1.bf16.msra.mxu0 0
        %2305 = vmatprep.mubr.bf16.mxu0 0
        %2306 = vmatmul.mubr.bf16.gmra.mrb[0].mxu0 %v2271
        %v2307 = vpop.f32.mrb[0].mxu0
        %v2308 = vadd.f32 0.0, %v2307
        %v2309 = vpop.f32.mrb[0].mxu0
        %v2310 = vpop.f32.mrb[0].mxu0
        %v2311 = vadd.f32 0.0, %v2310
        %v2312 = vpop.f32.mrb[0].mxu0
        %2313 = vdwg.mxu0
        %v2314 = vpack.c.bf16 %v2311, %v2308
        %v2316 = vsel %vm573, %v2314, 0
        %2318 = vmatprep.subr.bf16.mxu0 0
        %2319 = vmatpush1.bf16.xpose.msra.mxu0 %v1138
        %2320 = vmatprep.subr.bf16.mxu0 0
        %2321 = vmatpush1.bf16.xpose.msra.mxu0 %v1141
        %2322 = vmatprep.subr.bf16.mxu0 0
        %2323 = vmatpush1.bf16.xpose.msra.mxu0 %v1144
        %2324 = vmatprep.subr.bf16.mxu0 0
        %2325 = vmatpush1.bf16.xpose.msra.mxu0 %v1147
        %2326 = vmatprep.subr.bf16.mxu0 0
        %2327 = vmatpush1.bf16.xpose.msra.mxu0 %v1150
        %2328 = vmatprep.subr.bf16.mxu0 0
        %2329 = vmatpush1.bf16.xpose.msra.mxu0 %v1153
        %2330 = vmatprep.subr.bf16.mxu0 0
        %2331 = vmatpush1.bf16.xpose.msra.mxu0 %v1156
        %2332 = vmatprep.subr.bf16.mxu0 0
        %2333 = vmatpush1.bf16.xpose.msra.mxu0 %v1159
        %2334 = vmatprep.subr.bf16.mxu0 0
        %2335 = vmatpush1.bf16.xpose.msra.mxu0 0
        %2336 = vmatprep.subr.bf16.mxu0 0
        %2337 = vmatpush1.bf16.xpose.msra.mxu0 0
        %2338 = vmatprep.subr.bf16.mxu0 0
        %2339 = vmatpush1.bf16.xpose.msra.mxu0 0
        %2340 = vmatprep.subr.bf16.mxu0 0
        %2341 = vmatpush1.bf16.xpose.msra.mxu0 0
        %2342 = vmatprep.subr.bf16.mxu0 0
        %2343 = vmatpush1.bf16.xpose.msra.mxu0 0
        %2344 = vmatprep.subr.bf16.mxu0 0
        %2345 = vmatpush1.bf16.xpose.msra.mxu0 0
        %2346 = vmatprep.subr.bf16.mxu0 0
        %2347 = vmatpush1.bf16.xpose.msra.mxu0 0
        %2348 = vmatprep.subr.bf16.mxu0 0
        %2349 = vmatpush1.bf16.xpose.msra.mxu0 0
        %2350 = vmatprep.mubr.bf16.mxu0 0
        %2351 = vmatmul.mubr.bf16.gmra.mrb[0].mxu0 %v2316
        %v2352 = vpop.f32.mrb[0].mxu0
        %v2353 = vadd.f32 %v555, %v2352
        %v2354 = vpop.f32.mrb[0].mxu0
        %v2355 = vpop.f32.mrb[0].mxu0
        %v2356 = vadd.f32 %v556, %v2355
        %v2357 = vpop.f32.mrb[0].mxu0
        %2358 = vdwg.mxu0
        %v2359 = vmax.f32 %v2353, %v2356
        %v2360 = vrot.slane %v2359, 4
        %v2361 = vmax.f32 %v2359, %v2360
        %v2362 = vrot.slane %v2361, 2
        %v2363 = vmax.f32 %v2361, %v2362
        %v2364 = vrot.slane %v2363, 1
        %v2365 = vmax.f32 %v2363, %v2364
        %v2366 = vsub.f32 %v2353, %v2365
        %v2367 = vsub.f32 %v2356, %v2365
        %v2368 = vmul.f32 %v2366, 1.442695
        %v2369 = vpow.pop %v2368
        %v2370 = vmul.f32 %v2367, 1.442695
        %v2371 = vpow.pop %v2370
        %v2372 = vadd.f32 %v2369, %v2371
        %v2373 = vrot.slane %v2372, 4
        %v2374 = vadd.f32 %v2372, %v2373
        %v2375 = vrot.slane %v2374, 2
        %v2376 = vadd.f32 %v2374, %v2375
        %v2377 = vrot.slane %v2376, 1
        %v2378 = vadd.f32 %v2376, %v2377
        %v2379 = vrcp.pop %v2378
        %v2380 = vmul.f32 %v2369, %v2379
        %v2381 = vmul.f32 %v2371, %v2379
        %v2382 = vmul.f32 %v2380, %v549
        %v2383 = vmul.f32 %v2381, %v549
        %2384 = vadd.xlane.f32.xlu0 %v2382
        %v2385 = vpop.xlane.xlu0 %2384
        %2386 = vadd.xlane.f32.xlu0 %v2383
        %v2387 = vpop.xlane.xlu0 %2386
        %v2388 = vadd.f32 %v2385, 1e-06
        %v2389 = vadd.f32 %v2387, 1e-06
        %v2390 = vrcp.pop %v2388
        %v2391 = vmul.f32 %v2382, %v2390
        %v2392 = vrcp.pop %v2389
        %v2393 = vmul.f32 %v2383, %v2392
        %v2394 = vpack.c.bf16 %v2393, %v2391
        %2395 = vmatprep.subr.bf16.mxu0 0
        %2396 = vmatpush1.bf16.msra.mxu0 %v1028
        %2397 = vmatprep.subr.bf16.mxu0 0
        %2398 = vmatpush1.bf16.msra.mxu0 %v1029
        %2399 = vmatprep.subr.bf16.mxu0 0
        %2400 = vmatpush1.bf16.msra.mxu0 %v1030
        %2401 = vmatprep.subr.bf16.mxu0 0
        %2402 = vmatpush1.bf16.msra.mxu0 %v1031
        %2403 = vmatprep.subr.bf16.mxu0 0
        %2404 = vmatpush1.bf16.msra.mxu0 %v1032
        %2405 = vmatprep.subr.bf16.mxu0 0
        %2406 = vmatpush1.bf16.msra.mxu0 %v1033
        %2407 = vmatprep.subr.bf16.mxu0 0
        %2408 = vmatpush1.bf16.msra.mxu0 %v1034
        %2409 = vmatprep.subr.bf16.mxu0 0
        %2410 = vmatpush1.bf16.msra.mxu0 %v1035
        %2411 = vmatprep.subr.bf16.mxu0 0
        %2412 = vmatpush1.bf16.msra.mxu0 0
        %2413 = vmatprep.subr.bf16.mxu0 0
        %2414 = vmatpush1.bf16.msra.mxu0 0
        %2415 = vmatprep.subr.bf16.mxu0 0
        %2416 = vmatpush1.bf16.msra.mxu0 0
        %2417 = vmatprep.subr.bf16.mxu0 0
        %2418 = vmatpush1.bf16.msra.mxu0 0
        %2419 = vmatprep.subr.bf16.mxu0 0
        %2420 = vmatpush1.bf16.msra.mxu0 0
        %2421 = vmatprep.subr.bf16.mxu0 0
        %2422 = vmatpush1.bf16.msra.mxu0 0
        %2423 = vmatprep.subr.bf16.mxu0 0
        %2424 = vmatpush1.bf16.msra.mxu0 0
        %2425 = vmatprep.subr.bf16.mxu0 0
        %2426 = vmatpush1.bf16.msra.mxu0 0
        %2427 = vmatprep.mubr.bf16.mxu0 0
        %2428 = vmatmul.mubr.bf16.gmra.mrb[0].mxu0 %v2394
        %v2429 = vpop.f32.mrb[0].mxu0
        %v2430 = vadd.f32 0.0, %v2429
        %v2431 = vpop.f32.mrb[0].mxu0
        %v2432 = vpop.f32.mrb[0].mxu0
        %v2433 = vadd.f32 0.0, %v2432
        %v2434 = vpop.f32.mrb[0].mxu0
        %2435 = vdwg.mxu0
        %v2436 = vpack.c.bf16 %v2433, %v2430
        %v2438 = vsel %vm573, %v2436, 0
        %2440 = vmatprep.subr.bf16.mxu0 0
        %2441 = vmatpush1.bf16.msra.mxu0 %v1292
        %2442 = vmatprep.subr.bf16.mxu0 0
        %2443 = vmatpush1.bf16.msra.mxu0 %v1293
        %2444 = vmatprep.subr.bf16.mxu0 0
        %2445 = vmatpush1.bf16.msra.mxu0 0
        %2446 = vmatprep.subr.bf16.mxu0 0
        %2447 = vmatpush1.bf16.msra.mxu0 0
        %2448 = vmatprep.subr.bf16.mxu0 0
        %2449 = vmatpush1.bf16.msra.mxu0 0
        %2450 = vmatprep.subr.bf16.mxu0 0
        %2451 = vmatpush1.bf16.msra.mxu0 0
        %2452 = vmatprep.subr.bf16.mxu0 0
        %2453 = vmatpush1.bf16.msra.mxu0 0
        %2454 = vmatprep.subr.bf16.mxu0 0
        %2455 = vmatpush1.bf16.msra.mxu0 0
        %2456 = vmatprep.subr.bf16.mxu0 0
        %2457 = vmatpush1.bf16.msra.mxu0 0
        %2458 = vmatprep.subr.bf16.mxu0 0
        %2459 = vmatpush1.bf16.msra.mxu0 0
        %2460 = vmatprep.subr.bf16.mxu0 0
        %2461 = vmatpush1.bf16.msra.mxu0 0
        %2462 = vmatprep.subr.bf16.mxu0 0
        %2463 = vmatpush1.bf16.msra.mxu0 0
        %2464 = vmatprep.subr.bf16.mxu0 0
        %2465 = vmatpush1.bf16.msra.mxu0 0
        %2466 = vmatprep.subr.bf16.mxu0 0
        %2467 = vmatpush1.bf16.msra.mxu0 0
        %2468 = vmatprep.subr.bf16.mxu0 0
        %2469 = vmatpush1.bf16.msra.mxu0 0
        %2470 = vmatprep.subr.bf16.mxu0 0
        %2471 = vmatpush1.bf16.msra.mxu0 0
        %2472 = vmatprep.mubr.bf16.mxu0 0
        %2473 = vmatmul.mubr.bf16.gmra.mrb[0].mxu0 %v2438
        %v2474 = vpop.f32.mrb[0].mxu0
        %v2475 = vadd.f32 %v1283, %v2474
        %v2476 = vpop.f32.mrb[0].mxu0
        %v2477 = vpop.f32.mrb[0].mxu0
        %v2478 = vadd.f32 %v1283, %v2477
        %v2479 = vpop.f32.mrb[0].mxu0
        %2480 = vdwg.mxu0
        %v2481 = vpack.c.bf16 %v2219, %v2218
        %2483 = vrot.lane.b32.xlu0 %v2481, 96
        %v2484 = vpop.permute.xlu0 %2483
        %v2486 = vsel %vm573, %v2484, 0
        %2488 = vmatprep.subr.bf16.mxu0 0
        %2489 = vmatpush1.bf16.msra.mxu0 %v1353
        %2490 = vmatprep.subr.bf16.mxu0 0
        %2491 = vmatpush1.bf16.msra.mxu0 %v1354
        %2492 = vmatprep.subr.bf16.mxu0 0
        %2493 = vmatpush1.bf16.msra.mxu0 0
        %2494 = vmatprep.subr.bf16.mxu0 0
        %2495 = vmatpush1.bf16.msra.mxu0 0
        %2496 = vmatprep.subr.bf16.mxu0 0
        %2497 = vmatpush1.bf16.msra.mxu0 0
        %2498 = vmatprep.subr.bf16.mxu0 0
        %2499 = vmatpush1.bf16.msra.mxu0 0
        %2500 = vmatprep.subr.bf16.mxu0 0
        %2501 = vmatpush1.bf16.msra.mxu0 0
        %2502 = vmatprep.subr.bf16.mxu0 0
        %2503 = vmatpush1.bf16.msra.mxu0 0
        %2504 = vmatprep.subr.bf16.mxu0 0
        %2505 = vmatpush1.bf16.msra.mxu0 0
        %2506 = vmatprep.subr.bf16.mxu0 0
        %2507 = vmatpush1.bf16.msra.mxu0 0
        %2508 = vmatprep.subr.bf16.mxu0 0
        %2509 = vmatpush1.bf16.msra.mxu0 0
        %2510 = vmatprep.subr.bf16.mxu0 0
        %2511 = vmatpush1.bf16.msra.mxu0 0
        %2512 = vmatprep.subr.bf16.mxu0 0
        %2513 = vmatpush1.bf16.msra.mxu0 0
        %2514 = vmatprep.subr.bf16.mxu0 0
        %2515 = vmatpush1.bf16.msra.mxu0 0
        %2516 = vmatprep.subr.bf16.mxu0 0
        %2517 = vmatpush1.bf16.msra.mxu0 0
        %2518 = vmatprep.subr.bf16.mxu0 0
        %2519 = vmatpush1.bf16.msra.mxu0 0
        %2520 = vmatprep.mubr.bf16.mxu0 0
        %2521 = vmatmul.mubr.bf16.gmra.mrb[0].mxu0 %v2486
        %v2522 = vpop.f32.mrb[0].mxu0
        %v2523 = vadd.f32 %v1344, %v2522
        %v2524 = vpop.f32.mrb[0].mxu0
        %v2525 = vpop.f32.mrb[0].mxu0
        %v2526 = vadd.f32 %v1344, %v2525
        %v2527 = vpop.f32.mrb[0].mxu0
        %2528 = vdwg.mxu0
        %v2529 = vadd.f32 %v2475, %v2523
        %v2530 = vadd.f32 %v2478, %v2526
        %v2531 = vxor.u32 %v2529, 2147483648
        %v2532 = vxor.u32 %v2530, 2147483648
        %v2533 = vmul.f32 %v2531, 1.442695
        %v2534 = vpow.pop %v2533
        %v2535 = vmul.f32 %v2532, 1.442695
        %v2536 = vpow.pop %v2535
        %v2537 = vadd.f32 %v2534, 1.0
        %v2538 = vadd.f32 %v2536, 1.0
        %v2539 = vrcp.pop %v2537
        %v2540 = vmul.f32 1.0, %v2539
        %v2541 = vrcp.pop %v2538
        %v2542 = vmul.f32 1.0, %v2541
        %2545 = vrot.lane.b32.xlu0 %v2523, 64
        %v2546 = vpop.permute.xlu0 %2545
        %2547 = vrot.lane.b32.xlu0 %v2526, 64
        %v2548 = vpop.permute.xlu0 %2547
        %v2551 = vmul.f32 %v2540, %v2546
        %v2552 = vmul.f32 %v2542, %v2548
        %2555 = vrot.lane.b32.xlu0 %v2551, 64
        %v2556 = vpop.permute.xlu0 %2555
        %2557 = vrot.lane.b32.xlu0 %v2552, 64
        %v2558 = vpop.permute.xlu0 %2557
        %v2561 = vadd.f32 %v2475, %v2556
        %v2562 = vadd.f32 %v2478, %v2558
        %v2563 = vtanh.pop %v2561
        %v2564 = vtanh.pop %v2562
        %v2565 = vsub.f32 1.0, %v2540
        %v2566 = vsub.f32 1.0, %v2542
        %2569 = vrot.lane.b32.xlu0 %v2563, 96
        %v2570 = vpop.permute.xlu0 %2569
        %2571 = vrot.lane.b32.xlu0 %v2564, 96
        %v2572 = vpop.permute.xlu0 %2571
        %v2575 = vmul.f32 %v2565, %v2570
        %v2576 = vmul.f32 %v2566, %v2572
        %v2577 = vmul.f32 %v2540, %v2218
        %v2578 = vmul.f32 %v2542, %v2219
        %v2579 = vadd.f32 %v2575, %v2577
        %v2580 = vadd.f32 %v2576, %v2578
        %2583 = vrot.lane.b32.xlu0 %v2579, 96
        %v2584 = vpop.permute.xlu0 %2583
        %2585 = vrot.lane.b32.xlu0 %v2580, 96
        %v2586 = vpop.permute.xlu0 %2585
        %v2589 = vsel %vm573, %v2584, 0.0
        %2590 = vadd.xlane.f32.xlu0 %v2589
        %v2591 = vpop.xlane.xlu0 %2590
        %v2592 = vsel %vm573, %v2586, 0.0
        %2593 = vadd.xlane.f32.xlu0 %v2592
        %v2594 = vpop.xlane.xlu0 %2593
        %v2595 = vmul.f32 %v2591, %v622
        %v2596 = vmul.f32 %v2594, %v622
        %v2597 = vsub.f32 %v2579, %v2595
        %v2598 = vsub.f32 %v2580, %v2596
        %v2599 = vmul.f32 %v2597, %v2597
        %v2600 = vmul.f32 %v2598, %v2598
        %2603 = vrot.lane.b32.xlu0 %v2599, 96
        %v2604 = vpop.permute.xlu0 %2603
        %2605 = vrot.lane.b32.xlu0 %v2600, 96
        %v2606 = vpop.permute.xlu0 %2605
        %v2609 = vsel %vm573, %v2604, 0.0
        %2610 = vadd.xlane.f32.xlu0 %v2609
        %v2611 = vpop.xlane.xlu0 %2610
        %v2612 = vsel %vm573, %v2606, 0.0
        %2613 = vadd.xlane.f32.xlu0 %v2612
        %v2614 = vpop.xlane.xlu0 %2613
        %v2615 = vmul.f32 %v2611, %v622
        %v2616 = vmul.f32 %v2614, %v622
        %v2617 = vadd.f32 %v2615, 1e-05
        %v2618 = vadd.f32 %v2616, 1e-05
        %v2619 = vrsqrt.pop %v2617
        %v2620 = vrsqrt.pop %v2618
        %v2621 = vmul.f32 %v2597, %v2619
        %v2622 = vmul.f32 %v2598, %v2620
        %v2623 = vmul.f32 %v2621, %v1509
        %v2624 = vmul.f32 %v2622, %v1509
        %v2625 = vadd.f32 %v2623, %v1519
        %v2626 = vadd.f32 %v2624, %v1519
        %v2627 = vpack.c.bf16 %v2626, %v2625
        %2629 = vrot.lane.b32.xlu0 %v2627, 96
        %v2630 = vpop.permute.xlu0 %2629
        %v2632 = vsel %vm573, %v2630, 0
        %2634 = vmatprep.subr.bf16.mxu0 0
        %2635 = vmatpush1.bf16.msra.mxu0 %v1541
        %2636 = vmatprep.subr.bf16.mxu0 0
        %2637 = vmatpush1.bf16.msra.mxu0 %v1542
        %2638 = vmatprep.subr.bf16.mxu0 0
        %2639 = vmatpush1.bf16.msra.mxu0 0
        %2640 = vmatprep.subr.bf16.mxu0 0
        %2641 = vmatpush1.bf16.msra.mxu0 0
        %2642 = vmatprep.subr.bf16.mxu0 0
        %2643 = vmatpush1.bf16.msra.mxu0 0
        %2644 = vmatprep.subr.bf16.mxu0 0
        %2645 = vmatpush1.bf16.msra.mxu0 0
        %2646 = vmatprep.subr.bf16.mxu0 0
        %2647 = vmatpush1.bf16.msra.mxu0 0
        %2648 = vmatprep.subr.bf16.mxu0 0
        %2649 = vmatpush1.bf16.msra.mxu0 0
        %2650 = vmatprep.subr.bf16.mxu0 0
        %2651 = vmatpush1.bf16.msra.mxu0 0
        %2652 = vmatprep.subr.bf16.mxu0 0
        %2653 = vmatpush1.bf16.msra.mxu0 0
        %2654 = vmatprep.subr.bf16.mxu0 0
        %2655 = vmatpush1.bf16.msra.mxu0 0
        %2656 = vmatprep.subr.bf16.mxu0 0
        %2657 = vmatpush1.bf16.msra.mxu0 0
        %2658 = vmatprep.subr.bf16.mxu0 0
        %2659 = vmatpush1.bf16.msra.mxu0 0
        %2660 = vmatprep.subr.bf16.mxu0 0
        %2661 = vmatpush1.bf16.msra.mxu0 0
        %2662 = vmatprep.subr.bf16.mxu0 0
        %2663 = vmatpush1.bf16.msra.mxu0 0
        %2664 = vmatprep.subr.bf16.mxu0 0
        %2665 = vmatpush1.bf16.msra.mxu0 0
        %2666 = vmatprep.mubr.bf16.mxu0 0
        %2667 = vmatmul.mubr.bf16.gmra.mrb[0].mxu0 %v2632
        %v2668 = vpop.f32.mrb[0].mxu0
        %v2669 = vadd.f32 %v1528, %v2668
        %v2670 = vpop.f32.mrb[0].mxu0
        %v2671 = vpop.f32.mrb[0].mxu0
        %v2672 = vadd.f32 %v1528, %v2671
        %v2673 = vpop.f32.mrb[0].mxu0
        %2674 = vdwg.mxu0
        %v2675 = vmax.f32 %v2669, 0.0
        %v2676 = vmax.f32 %v2672, 0.0
        %v2677 = vpack.c.bf16 %v2676, %v2675
        %2678 = vmatprep.subr.bf16.mxu0 0
        %2679 = vmatpush1.bf16.msra.mxu0 %v1624
        %2680 = vmatprep.subr.bf16.mxu0 0
        %2681 = vmatpush1.bf16.msra.mxu0 %v1625
        %2682 = vmatprep.subr.bf16.mxu0 0
        %2683 = vmatpush1.bf16.msra.mxu0 %v1626
        %2684 = vmatprep.subr.bf16.mxu0 0
        %2685 = vmatpush1.bf16.msra.mxu0 %v1627
        %2686 = vmatprep.subr.bf16.mxu0 0
        %2687 = vmatpush1.bf16.msra.mxu0 %v1628
        %2688 = vmatprep.subr.bf16.mxu0 0
        %2689 = vmatpush1.bf16.msra.mxu0 %v1629
        %2690 = vmatprep.subr.bf16.mxu0 0
        %2691 = vmatpush1.bf16.msra.mxu0 %v1630
        %2692 = vmatprep.subr.bf16.mxu0 0
        %2693 = vmatpush1.bf16.msra.mxu0 %v1631
        %2694 = vmatprep.subr.bf16.mxu0 0
        %2695 = vmatpush1.bf16.msra.mxu0 0
        %2696 = vmatprep.subr.bf16.mxu0 0
        %2697 = vmatpush1.bf16.msra.mxu0 0
        %2698 = vmatprep.subr.bf16.mxu0 0
        %2699 = vmatpush1.bf16.msra.mxu0 0
        %2700 = vmatprep.subr.bf16.mxu0 0
        %2701 = vmatpush1.bf16.msra.mxu0 0
        %2702 = vmatprep.subr.bf16.mxu0 0
        %2703 = vmatpush1.bf16.msra.mxu0 0
        %2704 = vmatprep.subr.bf16.mxu0 0
        %2705 = vmatpush1.bf16.msra.mxu0 0
        %2706 = vmatprep.subr.bf16.mxu0 0
        %2707 = vmatpush1.bf16.msra.mxu0 0
        %2708 = vmatprep.subr.bf16.mxu0 0
        %2709 = vmatpush1.bf16.msra.mxu0 0
        %2710 = vmatprep.mubr.bf16.mxu0 0
        %2711 = vmatmul.mubr.bf16.gmra.mrb[0].mxu0 %v2677
        %v2712 = vpop.f32.mrb[0].mxu0
        %v2713 = vadd.f32 0.0, %v2712
        %v2714 = vpop.f32.mrb[0].mxu0
        %v2715 = vpop.f32.mrb[0].mxu0
        %v2716 = vadd.f32 0.0, %v2715
        %v2717 = vpop.f32.mrb[0].mxu0
        %2718 = vdwg.mxu0
        %2721 = vrot.lane.b32.xlu0 %v2713, 32
        %v2722 = vpop.permute.xlu0 %2721
        %2723 = vrot.lane.b32.xlu0 %v2716, 32
        %v2724 = vpop.permute.xlu0 %2723
        %v2727 = vadd.f32 %v2579, %v2722
        %v2728 = vadd.f32 %v2580, %v2724
        %v2729 = vadd.f32 %v2727, %v1697
        %v2730 = vadd.f32 %v2728, %v1697
        %2733 = vrot.lane.b32.xlu0 %v2729, 96
        %v2734 = vpop.permute.xlu0 %2733
        %2735 = vrot.lane.b32.xlu0 %v2730, 96
        %v2736 = vpop.permute.xlu0 %2735
        %2739 = vst.msk [vmem:[%s481] sm:$0xff] %vm573, %v2734
        %2740 = vst.msk [vmem:[%s481 + $0x8] sm:$0xff] %vm573, %v2736
        %v2741 = vpack.c.bf16 %v2383, %v2382
        %v2743 = vunpack.c.l.b16 %v2741
        %v2744 = vunpack.c.h.b16 %v2741
        %v2745 = vpack.c.b16 %v2743, %v2743
        %v2746 = vpack.c.b16 %v2744, %v2744
        %2749 = vst [vmem:[%s488] sm:$0xf] %v2745
        %2750 = vst [vmem:[%s488 + $0x4] sm:$0xf] %v2746
        %s2751 = sand.u32 %s323, 1
        %s2752 = scalar_lea.sflag [#allocation5], %s2751
        %s2753 = sand.u32 %s323, 1
        %s2754 = smul.addr %s2753, 16
        %s2755 = scalar_lea.vmem [#allocation4], %s2754
        %s2756 = sand.u32 %s349, 1
        %s2757 = scalar_lea.sflag [#allocation7], %s2756
        %s2758 = sand.u32 %s349, 1
        %s2759 = smul.addr %s2758, 8
        %s2760 = scalar_lea.vmem [#allocation6], %s2759
        // Predicated region
        $region73: #{tpu_custom_call.1} parent=71 // pred_check
          %p2761 = pneg %p333
        $region74: #{tpu_custom_call.1} parent=71 // pred_check_branch
          %2763 = sbr.rel (%p2761) target = $region76
        $region75: #{tpu_custom_call.1} parent=71 // pred_region
          %s2764 = smul.u32 2, %s32
          %s2766 = ssub.s32 256, 256
          %2767 = vsyncadd %s2752, %s2766
          %s2768 = smul.addr %s2764, 128
          %s2769 = scalar_lea.hbm %s13, %s2768
          %s2770 = sshll.u32 %s2755, 4
          %s2771 = int_to_ptr.vmem [resolvable:$true] %s2770
          %2776 = dma.vmem_to_hbm [thread:$0]  %s2771, 256, %s2769, %s2752, 128, 128, 8
        $region76: #{tpu_custom_call.1} parent=71 // pred_fallthru
          _
        // Predicated region
        $region77: #{tpu_custom_call.1} parent=71 // pred_check
          %p2777 = pneg %p359
        $region78: #{tpu_custom_call.1} parent=71 // pred_check_branch
          %2779 = sbr.rel (%p2777) target = $region80
        $region79: #{tpu_custom_call.1} parent=71 // pred_region
          %s2780 = smul.u32 2, %s32
          %s2782 = ssub.s32 128, 128
          %2783 = vsyncadd %s2757, %s2782
          %s2784 = smul.addr %s2780, 64
          %s2785 = scalar_lea.hbm %s14, %s2784
          %s2786 = sshll.u32 %s2760, 4
          %s2787 = int_to_ptr.vmem [resolvable:$true] %s2786
          %2792 = dma.vmem_to_hbm [thread:$0]  %s2787, 128, %s2785, %s2757, 64, 64, 4
        $region80: #{tpu_custom_call.1} parent=71 // pred_fallthru
          _
      $region72: #{tpu_custom_call.1} parent=5 // pred_fallthru
        _
      %p2793 = scmp.le.s32.totalorder 2, %s27
      // Predicated region
      $region81: #{tpu_custom_call.1} parent=5 // pred_check
        %p2794 = pneg %p2793
      $region82: #{tpu_custom_call.1} parent=5 // pred_check_branch
        %2796 = sbr.rel (%p2794) target = $region84
      $region83: #{tpu_custom_call.1} parent=5 // pred_region
        %s2797 = ssub.s32 %s27, 2
        // Predicated region
        $region85: #{tpu_custom_call.1} parent=83 // pred_check
          %p2798 = pneg %p339
        $region86: #{tpu_custom_call.1} parent=83 // pred_check_branch
          %2800 = sbr.rel (%p2798) target = $region88
        $region87: #{tpu_custom_call.1} parent=83 // pred_region
          %s2801 = sand.u32 %s324, 1
          %s2802 = scalar_lea.sflag [#allocation5], %s2801
          %s2803 = sand.u32 %s324, 1
          %s2804 = smul.addr %s2803, 16
          %s2805 = scalar_lea.vmem [#allocation4], %s2804
          %2806 = dma.done %s2802, 256
        $region88: #{tpu_custom_call.1} parent=83 // pred_fallthru
          _
        // Predicated region
        $region89: #{tpu_custom_call.1} parent=83 // pred_check
          %p2807 = pneg %p365
        $region90: #{tpu_custom_call.1} parent=83 // pred_check_branch
          %2809 = sbr.rel (%p2807) target = $region92
        $region91: #{tpu_custom_call.1} parent=83 // pred_region
          %s2810 = sand.u32 %s350, 1
          %s2811 = scalar_lea.sflag [#allocation7], %s2810
          %s2812 = sand.u32 %s350, 1
          %s2813 = smul.addr %s2812, 8
          %s2814 = scalar_lea.vmem [#allocation6], %s2813
          %2815 = dma.done %s2811, 128
        $region92: #{tpu_custom_call.1} parent=83 // pred_fallthru
          _
      $region84: #{tpu_custom_call.1} parent=5 // pred_fallthru
        _
    $region6: #{tpu_custom_call.1} parent=1 // loop_footer
      %s31 = sadd.s32 1, %s27
    $region7: #{tpu_custom_call.1} parent=1 // loop_footer_branch
      %26 = sbr.rel target = $region3
    $region8: #{tpu_custom_call.1} parent=1 // loop_exit
      _
    %2816 = vsyncpa [#allocation5], 1
    %s2817 = scalar_lea.sflag [#allocation5], 1
    %2818 = vsyncpa %s2817, 1
    %2819 = vsyncpa [#allocation7], 1
    %s2820 = scalar_lea.sflag [#allocation7], 1
    %2821 = vsyncpa %s2820, 1

</llo_original>
